<compile_context>
chip_gen: v7x
topology: tpu7x:2x2x1
jax: 0.10.0
libtpu: 0.0.40
codegen_flags: <defaults>
</compile_context>

<pallas_src>
import functools

import jax
import jax.numpy as jnp
from jax import lax
from jax.experimental import pallas as pl
from jax.experimental.pallas import tpu as pltpu


def _round_up(v, m):
    return (v + m - 1) // m * m


def _pick_tile_h(h, w, c, max_slab_bytes=2 * 1024 * 1024):
    """Largest divisor of `h` giving ~<=2048 output rows per tile and a small slab."""
    wq = _round_up(w, 8)
    wp = _round_up(wq + 2, 8) + 2
    cap = max(1, max_slab_bytes // (wp * c * 4))
    target = max(1, min(2048 // max(w, 1), cap))
    th = max(1, min(h, target))
    while h % th:
        th -= 1
    return th


# ---------------------------------------------------------------------------
# Fused Pallas kernel: both coupling stages on one halo'd (batch, H-tile) slab
# ---------------------------------------------------------------------------
def _fused_inv_block_kernel(clamp, c1, img_h, img_w, tile_h, wq,
                            x_ref, wEF_ref, bEF_ref, wHG_ref, bHG_ref,
                            y_ref, s_ref):
    slab = x_ref[0]                        # (tile_h+4, wp, c) f32, zero-padded + halo'd
    c = slab.shape[-1]
    c2 = c - c1
    wp = slab.shape[1]
    cp = wp - 2                            # extended y1 width  (multiple of 8)
    r = tile_h + 2                         # extended y1 height (1-pixel halo)

    x1s = slab[:, :, :c1]
    x2s = slab[:, :, c1:]

    # ---- stage 1: y1 = x1 + E(x2) - F(x2) on the (r, cp) extended window --------
    # in-VMEM "im2col": 9 shifted windows concatenated along channels -> one matmul
    p2 = jnp.concatenate(
        [x2s[dy:dy + r, dx:dx + cp, :] for dy in range(3) for dx in range(3)],
        axis=-1).reshape(r * cp, 9 * c2)
    t1 = jnp.dot(p2, wEF_ref[...], preferred_element_type=jnp.float32) + bEF_ref[...]
    x1e = x1s[1:1 + r, 1:1 + cp, :].reshape(r * cp, c1)
    y1e = (x1e + t1[:, :c1] - t1[:, c1:]).reshape(r, cp, c1)

    # zero y1 outside the image so stage 2 sees the conv's 'SAME' zero padding
    row = lax.broadcasted_iota(jnp.int32, (r, cp, 1), 0) + (pl.program_id(1) * tile_h - 1)
    col = lax.broadcasted_iota(jnp.int32, (r, cp, 1), 1) - 1
    inside = (row >= 0) & (row < img_h) & (col >= 0) & (col < img_w)
    y1e = jnp.where(inside, y1e, 0.0)

    # ---- stage 2: s = clamp*tanh(H(y1)/2);  y2 = x2*exp(s) + G(y1) ---------------
    p1 = jnp.concatenate(
        [y1e[dy:dy + tile_h, dx:dx + wq, :] for dy in range(3) for dx in range(3)],
        axis=-1).reshape(tile_h * wq, 9 * c1)
    t2 = jnp.dot(p1, wHG_ref[...], preferred_element_type=jnp.float32) + bHG_ref[...]
    s = clamp * jnp.tanh(0.5 * t2[:, :c2])      # == clamp*(2*sigmoid(h)-1), one EUP op
    x2c = x2s[2:2 + tile_h, 2:2 + wq, :].reshape(tile_h * wq, c2)
    y2 = x2c * jnp.exp(s) + t2[:, c2:]

    y1c = y1e[1:1 + tile_h, 1:1 + wq, :].reshape(tile_h * wq, c1)
    y_full = jnp.concatenate([y1c, y2], axis=-1).reshape(tile_h, wq, c)
    s_full = s.reshape(tile_h, wq, c2)
    y_ref[0] = y_full[:, :img_w, :].astype(y_ref.dtype)
    s_ref[0] = s_full[:, :img_w, :].astype(s_ref.dtype)


# ---------------------------------------------------------------------------
# Wrapper: layout conversion, halo'd slab construction, weight packing
# ---------------------------------------------------------------------------
def enhanced_inv_block_forward(x_nchw, params, clamp=1.0, tile_h=None):
    """Forward pass of EnhancedInvBlock (rev=False). Returns (y_nchw, s_nchw)."""
    wE, bE = params["wE"], params["bE"]
    wF, bF = params["wF"], params["bF"]
    wG, bG = params["wG"], params["bG"]
    wH, bH = params["wH"], params["bH"]
    c1 = wE.shape[-1]                      # split_len1
    c2 = wG.shape[-1]                      # split_len2

    n, c, h, w = x_nchw.shape
    assert c == c1 + c2

    x = jnp.transpose(x_nchw, (0, 2, 3, 1)).astype(jnp.float32)     # NHWC

    hs = tile_h if tile_h is not None else _pick_tile_h(h, w, c)
    assert h % hs == 0, "tile_h must divide H"
    t_tiles = h // hs

    wq = _round_up(w, 8)                   # stage-2 compute width (sublane aligned)
    cp = _round_up(wq + 2, 8)              # extended y1 width    (sublane aligned)
    wp = cp + 2                            # slab width incl. the x2 conv halo

    # zero pad: 2 rows top/bottom, 2 cols left, (wp-2-w) cols right.
    # XLA fuses transpose + pad + the slab stacking below into one HBM pass.
    xp = jnp.pad(x, ((0, 0), (2, 2), (2, wp - 2 - w), (0, 0)))
    slabs = jnp.stack(
        [xp[:, t * hs:t * hs + hs + 4] for t in range(t_tiles)], axis=1
    ).reshape(n * t_tiles, hs + 4, wp, c)                           # halo'd tiles

    # pack subnet weights so each stage is a single matmul: [E|F] and [H|G]
    wEF = jnp.concatenate([wE.reshape(9 * c2, c1), wF.reshape(9 * c2, c1)], axis=1)
    bEF = jnp.concatenate([bE, bF]).reshape(1, 2 * c1)
    wHG = jnp.concatenate([wH.reshape(9 * c1, c2), wG.reshape(9 * c1, c2)], axis=1)
    bHG = jnp.concatenate([bH, bG]).reshape(1, 2 * c2)

    kernel = functools.partial(_fused_inv_block_kernel,
                               float(clamp), c1, h, w, hs, wq)

    y_tiles, s_tiles = pl.pallas_call(
        kernel,
        grid=(n, t_tiles),
        in_specs=[
            # halo'd input slab: pipelined (double-buffered) per grid step
            pl.BlockSpec((1, hs + 4, wp, c),
                         lambda i, t: (i * t_tiles + t, 0, 0, 0)),
            # packed weights/biases: constant index_map -> DMA'd once, VMEM-resident
            pl.BlockSpec((9 * c2, 2 * c1), lambda i, t: (0, 0)),
            pl.BlockSpec((1, 2 * c1), lambda i, t: (0, 0)),
            pl.BlockSpec((9 * c1, 2 * c2), lambda i, t: (0, 0)),
            pl.BlockSpec((1, 2 * c2), lambda i, t: (0, 0)),
        ],
        out_specs=(
            pl.BlockSpec((1, hs, w, c), lambda i, t: (i * t_tiles + t, 0, 0, 0)),
            pl.BlockSpec((1, hs, w, c2), lambda i, t: (i * t_tiles + t, 0, 0, 0)),
        ),
        out_shape=(
            jax.ShapeDtypeStruct((n * t_tiles, hs, w, c), jnp.float32),
            jax.ShapeDtypeStruct((n * t_tiles, hs, w, c2), jnp.float32),
        ),
        compiler_params=pltpu.CompilerParams(
            dimension_semantics=("parallel", "parallel"),   # megacore / v7x 2-TC
            vmem_limit_bytes=32 * 1024 * 1024,              # explicit; tiles sized far below
        ),
    )(slabs, wEF, bEF, wHG, bHG)

    y = y_tiles.reshape(n, h, w, c)
    s = s_tiles.reshape(n, h, w, c2)
    return jnp.transpose(y, (0, 3, 1, 2)), jnp.transpose(s, (0, 3, 1, 2))


# ---------------------------------------------------------------------------
# Deterministic parameter init (HWIO conv weights) and pure-JAX reference
# ---------------------------------------------------------------------------
def init_params(key, channel_num, channel_split_num):
    c1 = channel_split_num
    c2 = channel_num - channel_split_num
    ks = jax.random.split(key, 8)

    def conv_w(k, cin, cout):
        return 0.1 * jax.random.normal(k, (3, 3, cin, cout), jnp.float32)

    def conv_b(k, cout):
        return 0.05 * jax.random.normal(k, (cout,), jnp.float32)

    return dict(
        wE=conv_w(ks[0], c2, c1), bE=conv_b(ks[1], c1),
        wF=conv_w(ks[2], c2, c1), bF=conv_b(ks[3], c1),
        wG=conv_w(ks[4], c1, c2), bG=conv_b(ks[5], c2),
        wH=conv_w(ks[6], c1, c2), bH=conv_b(ks[7], c2),
    )


def _conv3x3_ref(x, w, b):
    return lax.conv_general_dilated(
        x, w, (1, 1), "SAME", dimension_numbers=("NHWC", "HWIO", "NHWC")
    ) + b.reshape(1, 1, 1, -1)


def reference_forward(x_nchw, params, clamp=1.0):
    c1 = params["wE"].shape[-1]
    x = jnp.transpose(x_nchw, (0, 2, 3, 1)).astype(jnp.float32)
    x1, x2 = x[..., :c1], x[..., c1:]
    lr = x1 + _conv3x3_ref(x2, params["wE"], params["bE"])
    y1 = lr - _conv3x3_ref(x2, params["wF"], params["bF"])
    s = clamp * (jax.nn.sigmoid(_conv3x3_ref(y1, params["wH"], params["bH"])) * 2.0 - 1.0)
    y2 = x2 * jnp.exp(s) + _conv3x3_ref(y1, params["wG"], params["bG"])
    y = jnp.concatenate([y1, y2], axis=-1)
    return jnp.transpose(y, (0, 3, 1, 2)), jnp.transpose(s, (0, 3, 1, 2))


if __name__ == "__main__":
    key = jax.random.PRNGKey(0)
    k_x, k_p = jax.random.split(key)

    channel_num, channel_split_num = 4, 2
    batch, height, width = 2, 16, 16
    clamp = 1.0

    x = jax.random.normal(k_x, (batch, channel_num, height, width), jnp.float32)
    params = init_params(k_p, channel_num, channel_split_num)

    y_gold, s_gold = reference_forward(x, params, clamp)

    # auto-picked tile (single H tile for this small image)
    y, s = enhanced_inv_block_forward(x, params, clamp)
    y = jax.block_until_ready(y)
    s = jax.block_until_ready(s)
    assert y.shape == x.shape and y.dtype == jnp.float32
    assert jnp.allclose(y, y_gold, atol=5e-4, rtol=5e-4), "output mismatch (auto tile)"
    assert jnp.allclose(s, s_gold, atol=5e-4, rtol=5e-4), "s mismatch (auto tile)"

    # multi-tile path (exercises the inter-tile halo recomputation of y1)
    y_t, s_t = enhanced_inv_block_forward(x, params, clamp, tile_h=8)
    y_t = jax.block_until_ready(y_t)
    s_t = jax.block_until_ready(s_t)
    assert jnp.allclose(y_t, y_gold, atol=5e-4, rtol=5e-4), "output mismatch (tiled)"
    assert jnp.allclose(s_t, s_gold, atol=5e-4, rtol=5e-4), "s mismatch (tiled)"

    # jacobian (rev=False) equivalent: sum(s) / batch — from the kernel's s output.
    _ = jnp.sum(s) / x.shape[0]

    print("KERNEL_OK")
</pallas_src>

<mosaic_0001>
module attributes {stable_mosaic.version = 11 : i64} {
  func.func @_fused_inv_block_kernel(%arg0: i32, %arg1: i32, %arg2: memref<1x20x26x4xf32, #tpu.memory_space<vmem>>, %arg3: memref<18x4xf32, #tpu.memory_space<vmem>>, %arg4: memref<1x4xf32, #tpu.memory_space<vmem>>, %arg5: memref<18x4xf32, #tpu.memory_space<vmem>>, %arg6: memref<1x4xf32, #tpu.memory_space<vmem>>, %arg7: memref<1x16x16x4xf32, #tpu.memory_space<vmem>>, %arg8: memref<1x16x16x2xf32, #tpu.memory_space<vmem>>) attributes {dimension_semantics = [#tpu.dimension_semantics<parallel>, #tpu.dimension_semantics<parallel>], iteration_bounds = array<i64: 2, 1>, scalar_prefetch = 0 : i64, scratch_operands = 0 : i64, tpu.core_type = #tpu.core_type<tc>, window_params = [{transform_indices = @transform_0, window_bounds = array<i64: 1, 20, 26, 4>}, {pipeline_mode = #tpu.pipeline_mode<synchronous>, transform_indices = @transform_1, window_bounds = array<i64: 18, 4>}, {pipeline_mode = #tpu.pipeline_mode<synchronous>, transform_indices = @transform_2, window_bounds = array<i64: 1, 4>}, {pipeline_mode = #tpu.pipeline_mode<synchronous>, transform_indices = @transform_3, window_bounds = array<i64: 18, 4>}, {pipeline_mode = #tpu.pipeline_mode<synchronous>, transform_indices = @transform_4, window_bounds = array<i64: 1, 4>}, {transform_indices = @transform_5, window_bounds = array<i64: 1, 16, 16, 4>}, {transform_indices = @transform_6, window_bounds = array<i64: 1, 16, 16, 2>}]} {
    %c0 = arith.constant 0 : index
    %c0_0 = arith.constant 0 : index
    %c0_1 = arith.constant 0 : index
    %c0_2 = arith.constant 0 : index
    %0 = vector.load %arg2[%c0, %c0_0, %c0_1, %c0_2] : memref<1x20x26x4xf32, #tpu.memory_space<vmem>>, vector<1x20x26x4xf32>
    %1 = vector.shape_cast %0 : vector<1x20x26x4xf32> to vector<20x26x4xf32>
    %2 = vector.extract_strided_slice %1 {offsets = [0, 0, 0], sizes = [20, 26, 2], strides = [1, 1, 1]} : vector<20x26x4xf32> to vector<20x26x2xf32>
    %3 = vector.extract_strided_slice %1 {offsets = [0, 0, 2], sizes = [20, 26, 2], strides = [1, 1, 1]} : vector<20x26x4xf32> to vector<20x26x2xf32>
    %4 = vector.extract_strided_slice %3 {offsets = [0, 0, 0], sizes = [18, 24, 2], strides = [1, 1, 1]} : vector<20x26x2xf32> to vector<18x24x2xf32>
    %5 = vector.extract_strided_slice %3 {offsets = [0, 1, 0], sizes = [18, 24, 2], strides = [1, 1, 1]} : vector<20x26x2xf32> to vector<18x24x2xf32>
    %6 = vector.extract_strided_slice %3 {offsets = [0, 2, 0], sizes = [18, 24, 2], strides = [1, 1, 1]} : vector<20x26x2xf32> to vector<18x24x2xf32>
    %7 = vector.extract_strided_slice %3 {offsets = [1, 0, 0], sizes = [18, 24, 2], strides = [1, 1, 1]} : vector<20x26x2xf32> to vector<18x24x2xf32>
    %8 = vector.extract_strided_slice %3 {offsets = [1, 1, 0], sizes = [18, 24, 2], strides = [1, 1, 1]} : vector<20x26x2xf32> to vector<18x24x2xf32>
    %9 = vector.extract_strided_slice %3 {offsets = [1, 2, 0], sizes = [18, 24, 2], strides = [1, 1, 1]} : vector<20x26x2xf32> to vector<18x24x2xf32>
    %10 = vector.extract_strided_slice %3 {offsets = [2, 0, 0], sizes = [18, 24, 2], strides = [1, 1, 1]} : vector<20x26x2xf32> to vector<18x24x2xf32>
    %11 = vector.extract_strided_slice %3 {offsets = [2, 1, 0], sizes = [18, 24, 2], strides = [1, 1, 1]} : vector<20x26x2xf32> to vector<18x24x2xf32>
    %12 = vector.extract_strided_slice %3 {offsets = [2, 2, 0], sizes = [18, 24, 2], strides = [1, 1, 1]} : vector<20x26x2xf32> to vector<18x24x2xf32>
    %13 = tpu.concatenate %4, %5, %6, %7, %8, %9, %10, %11, %12 in 2 : vector<18x24x2xf32>, vector<18x24x2xf32>, vector<18x24x2xf32>, vector<18x24x2xf32>, vector<18x24x2xf32>, vector<18x24x2xf32>, vector<18x24x2xf32>, vector<18x24x2xf32>, vector<18x24x2xf32> -> vector<18x24x18xf32>
    %14 = vector.shape_cast %13 : vector<18x24x18xf32> to vector<432x18xf32>
    %c0_3 = arith.constant 0 : index
    %c0_4 = arith.constant 0 : index
    %15 = vector.load %arg3[%c0_3, %c0_4] : memref<18x4xf32, #tpu.memory_space<vmem>>, vector<18x4xf32>
    %cst = arith.constant dense<0.000000e+00> : vector<432x4xf32>
    %16 = tpu.matmul %14, %15, %cst {dimension_numbers = #tpu.dot_dimension_numbers<[1], [0], [0], [1], [0, 0, 1, 1], [], []>} : vector<432x18xf32>, vector<18x4xf32>, vector<432x4xf32> -> vector<432x4xf32>
    %c0_5 = arith.constant 0 : index
    %c0_6 = arith.constant 0 : index
    %17 = vector.load %arg4[%c0_5, %c0_6] : memref<1x4xf32, #tpu.memory_space<vmem>>, vector<1x4xf32>
    %18 = vector.broadcast %17 : vector<1x4xf32> to vector<432x4xf32>
    %19 = arith.addf %16, %18 : vector<432x4xf32>
    %20 = vector.extract_strided_slice %2 {offsets = [1, 1, 0], sizes = [18, 24, 2], strides = [1, 1, 1]} : vector<20x26x2xf32> to vector<18x24x2xf32>
    %21 = vector.shape_cast %20 : vector<18x24x2xf32> to vector<432x2xf32>
    %22 = vector.extract_strided_slice %19 {offsets = [0, 0], sizes = [432, 2], strides = [1, 1]} : vector<432x4xf32> to vector<432x2xf32>
    %23 = arith.addf %21, %22 : vector<432x2xf32>
    %24 = vector.extract_strided_slice %19 {offsets = [0, 2], sizes = [432, 2], strides = [1, 1]} : vector<432x4xf32> to vector<432x2xf32>
    %25 = arith.subf %23, %24 : vector<432x2xf32>
    %26 = vector.shape_cast %25 : vector<432x2xf32> to vector<18x24x2xf32>
    %27 = tpu.iota {dimensions = array<i32: 0>} : vector<18x24x1xi32>
    %c16_i32 = arith.constant 16 : i32
    %28 = arith.muli %arg1, %c16_i32 : i32
    %c1_i32 = arith.constant 1 : i32
    %29 = arith.subi %28, %c1_i32 : i32
    %30 = vector.broadcast %29 : i32 to vector<18x24x1xi32>
    %31 = arith.addi %27, %30 : vector<18x24x1xi32>
    %32 = tpu.iota {dimensions = array<i32: 1>} : vector<18x24x1xi32>
    %c1_i32_7 = arith.constant 1 : i32
    %33 = vector.broadcast %c1_i32_7 : i32 to vector<18x24x1xi32>
    %34 = arith.subi %32, %33 : vector<18x24x1xi32>
    %c0_i32 = arith.constant 0 : i32
    %35 = vector.broadcast %c0_i32 : i32 to vector<18x24x1xi32>
    %36 = arith.cmpi sge, %31, %35 : vector<18x24x1xi32>
    %c16_i32_8 = arith.constant 16 : i32
    %37 = vector.broadcast %c16_i32_8 : i32 to vector<18x24x1xi32>
    %38 = arith.cmpi slt, %31, %37 : vector<18x24x1xi32>
    %39 = arith.andi %36, %38 : vector<18x24x1xi1>
    %c0_i32_9 = arith.constant 0 : i32
    %40 = vector.broadcast %c0_i32_9 : i32 to vector<18x24x1xi32>
    %41 = arith.cmpi sge, %34, %40 : vector<18x24x1xi32>
    %42 = arith.andi %39, %41 : vector<18x24x1xi1>
    %c16_i32_10 = arith.constant 16 : i32
    %43 = vector.broadcast %c16_i32_10 : i32 to vector<18x24x1xi32>
    %44 = arith.cmpi slt, %34, %43 : vector<18x24x1xi32>
    %45 = arith.andi %42, %44 : vector<18x24x1xi1>
    %cst_11 = arith.constant 0.000000e+00 : f32
    %46 = vector.shape_cast %45 : vector<18x24x1xi1> to vector<18x24x1xi1>
    %47 = vector.broadcast %46 : vector<18x24x1xi1> to vector<18x24x2xi1>
    %48 = vector.broadcast %cst_11 : f32 to vector<18x24x2xf32>
    %49 = arith.select %47, %26, %48 : vector<18x24x2xi1>, vector<18x24x2xf32>
    %50 = vector.extract_strided_slice %49 {offsets = [0, 0, 0], sizes = [16, 16, 2], strides = [1, 1, 1]} : vector<18x24x2xf32> to vector<16x16x2xf32>
    %51 = vector.extract_strided_slice %49 {offsets = [0, 1, 0], sizes = [16, 16, 2], strides = [1, 1, 1]} : vector<18x24x2xf32> to vector<16x16x2xf32>
    %52 = vector.extract_strided_slice %49 {offsets = [0, 2, 0], sizes = [16, 16, 2], strides = [1, 1, 1]} : vector<18x24x2xf32> to vector<16x16x2xf32>
    %53 = vector.extract_strided_slice %49 {offsets = [1, 0, 0], sizes = [16, 16, 2], strides = [1, 1, 1]} : vector<18x24x2xf32> to vector<16x16x2xf32>
    %54 = vector.extract_strided_slice %49 {offsets = [1, 1, 0], sizes = [16, 16, 2], strides = [1, 1, 1]} : vector<18x24x2xf32> to vector<16x16x2xf32>
    %55 = vector.extract_strided_slice %49 {offsets = [1, 2, 0], sizes = [16, 16, 2], strides = [1, 1, 1]} : vector<18x24x2xf32> to vector<16x16x2xf32>
    %56 = vector.extract_strided_slice %49 {offsets = [2, 0, 0], sizes = [16, 16, 2], strides = [1, 1, 1]} : vector<18x24x2xf32> to vector<16x16x2xf32>
    %57 = vector.extract_strided_slice %49 {offsets = [2, 1, 0], sizes = [16, 16, 2], strides = [1, 1, 1]} : vector<18x24x2xf32> to vector<16x16x2xf32>
    %58 = vector.extract_strided_slice %49 {offsets = [2, 2, 0], sizes = [16, 16, 2], strides = [1, 1, 1]} : vector<18x24x2xf32> to vector<16x16x2xf32>
    %59 = tpu.concatenate %50, %51, %52, %53, %54, %55, %56, %57, %58 in 2 : vector<16x16x2xf32>, vector<16x16x2xf32>, vector<16x16x2xf32>, vector<16x16x2xf32>, vector<16x16x2xf32>, vector<16x16x2xf32>, vector<16x16x2xf32>, vector<16x16x2xf32>, vector<16x16x2xf32> -> vector<16x16x18xf32>
    %60 = vector.shape_cast %59 : vector<16x16x18xf32> to vector<256x18xf32>
    %c0_12 = arith.constant 0 : index
    %c0_13 = arith.constant 0 : index
    %61 = vector.load %arg5[%c0_12, %c0_13] : memref<18x4xf32, #tpu.memory_space<vmem>>, vector<18x4xf32>
    %cst_14 = arith.constant dense<0.000000e+00> : vector<256x4xf32>
    %62 = tpu.matmul %60, %61, %cst_14 {dimension_numbers = #tpu.dot_dimension_numbers<[1], [0], [0], [1], [0, 0, 1, 1], [], []>} : vector<256x18xf32>, vector<18x4xf32>, vector<256x4xf32> -> vector<256x4xf32>
    %c0_15 = arith.constant 0 : index
    %c0_16 = arith.constant 0 : index
    %63 = vector.load %arg6[%c0_15, %c0_16] : memref<1x4xf32, #tpu.memory_space<vmem>>, vector<1x4xf32>
    %64 = vector.broadcast %63 : vector<1x4xf32> to vector<256x4xf32>
    %65 = arith.addf %62, %64 : vector<256x4xf32>
    %66 = vector.extract_strided_slice %65 {offsets = [0, 0], sizes = [256, 2], strides = [1, 1]} : vector<256x4xf32> to vector<256x2xf32>
    %cst_17 = arith.constant 5.000000e-01 : f32
    %67 = vector.broadcast %cst_17 : f32 to vector<256x2xf32>
    %68 = arith.mulf %67, %66 : vector<256x2xf32>
    %69 = math.tanh %68 : vector<256x2xf32>
    %cst_18 = arith.constant 1.000000e+00 : f32
    %70 = vector.broadcast %cst_18 : f32 to vector<256x2xf32>
    %71 = arith.mulf %70, %69 : vector<256x2xf32>
    %72 = vector.extract_strided_slice %3 {offsets = [2, 2, 0], sizes = [16, 16, 2], strides = [1, 1, 1]} : vector<20x26x2xf32> to vector<16x16x2xf32>
    %73 = vector.shape_cast %72 : vector<16x16x2xf32> to vector<256x2xf32>
    %74 = math.exp %71 : vector<256x2xf32>
    %75 = arith.mulf %73, %74 : vector<256x2xf32>
    %76 = vector.extract_strided_slice %65 {offsets = [0, 2], sizes = [256, 2], strides = [1, 1]} : vector<256x4xf32> to vector<256x2xf32>
    %77 = arith.addf %75, %76 : vector<256x2xf32>
    %78 = vector.extract_strided_slice %49 {offsets = [1, 1, 0], sizes = [16, 16, 2], strides = [1, 1, 1]} : vector<18x24x2xf32> to vector<16x16x2xf32>
    %79 = vector.shape_cast %78 : vector<16x16x2xf32> to vector<256x2xf32>
    %80 = tpu.concatenate %79, %77 in 1 : vector<256x2xf32>, vector<256x2xf32> -> vector<256x4xf32>
    %81 = vector.shape_cast %80 : vector<256x4xf32> to vector<16x16x4xf32>
    %82 = vector.shape_cast %71 : vector<256x2xf32> to vector<16x16x2xf32>
    %c0_19 = arith.constant 0 : index
    %c0_20 = arith.constant 0 : index
    %c0_21 = arith.constant 0 : index
    %c0_22 = arith.constant 0 : index
    %83 = vector.load %arg7[%c0_19, %c0_20, %c0_21, %c0_22] : memref<1x16x16x4xf32, #tpu.memory_space<vmem>>, vector<1x16x16x4xf32>
    %84 = vector.shape_cast %83 : vector<1x16x16x4xf32> to vector<16x16x4xf32>
    %85 = vector.shape_cast %81 : vector<16x16x4xf32> to vector<1x16x16x4xf32>
    tpu.vector_store %arg7[%c0_19, %c0_20, %c0_21, %c0_22], %85 {strides = array<i32>} : memref<1x16x16x4xf32, #tpu.memory_space<vmem>>, vector<1x16x16x4xf32>,
    %c0_23 = arith.constant 0 : index
    %c0_24 = arith.constant 0 : index
    %c0_25 = arith.constant 0 : index
    %c0_26 = arith.constant 0 : index
    %86 = vector.load %arg8[%c0_23, %c0_24, %c0_25, %c0_26] : memref<1x16x16x2xf32, #tpu.memory_space<vmem>>, vector<1x16x16x2xf32>
    %87 = vector.shape_cast %86 : vector<1x16x16x2xf32> to vector<16x16x2xf32>
    %88 = vector.shape_cast %82 : vector<16x16x2xf32> to vector<1x16x16x2xf32>
    tpu.vector_store %arg8[%c0_23, %c0_24, %c0_25, %c0_26], %88 {strides = array<i32>} : memref<1x16x16x2xf32, #tpu.memory_space<vmem>>, vector<1x16x16x2xf32>,
    return
  }
  func.func @transform_0(%arg0: i32, %arg1: i32) -> (i32, i32, i32, i32) {
    %c1_i32 = arith.constant 1 : i32
    %0 = arith.muli %arg0, %c1_i32 : i32
    %1 = arith.addi %0, %arg1 : i32
    %c0_i32 = arith.constant 0 : i32
    %c0_i32_0 = arith.constant 0 : i32
    %c0_i32_1 = arith.constant 0 : i32
    %c0_i32_2 = arith.constant 0 : i32
    return %1, %c0_i32, %c0_i32_0, %c0_i32_1 : i32, i32, i32, i32
  }
  func.func @transform_1(%arg0: i32, %arg1: i32) -> (i32, i32) {
    %c0_i32 = arith.constant 0 : i32
    %c0_i32_0 = arith.constant 0 : i32
    %c0_i32_1 = arith.constant 0 : i32
    return %c0_i32, %c0_i32_0 : i32, i32
  }
  func.func @transform_2(%arg0: i32, %arg1: i32) -> (i32, i32) {
    %c0_i32 = arith.constant 0 : i32
    %c0_i32_0 = arith.constant 0 : i32
    %c0_i32_1 = arith.constant 0 : i32
    return %c0_i32, %c0_i32_0 : i32, i32
  }
  func.func @transform_3(%arg0: i32, %arg1: i32) -> (i32, i32) {
    %c0_i32 = arith.constant 0 : i32
    %c0_i32_0 = arith.constant 0 : i32
    %c0_i32_1 = arith.constant 0 : i32
    return %c0_i32, %c0_i32_0 : i32, i32
  }
  func.func @transform_4(%arg0: i32, %arg1: i32) -> (i32, i32) {
    %c0_i32 = arith.constant 0 : i32
    %c0_i32_0 = arith.constant 0 : i32
    %c0_i32_1 = arith.constant 0 : i32
    return %c0_i32, %c0_i32_0 : i32, i32
  }
  func.func @transform_5(%arg0: i32, %arg1: i32) -> (i32, i32, i32, i32) {
    %c1_i32 = arith.constant 1 : i32
    %0 = arith.muli %arg0, %c1_i32 : i32
    %1 = arith.addi %0, %arg1 : i32
    %c0_i32 = arith.constant 0 : i32
    %c0_i32_0 = arith.constant 0 : i32
    %c0_i32_1 = arith.constant 0 : i32
    %c0_i32_2 = arith.constant 0 : i32
    return %1, %c0_i32, %c0_i32_0, %c0_i32_1 : i32, i32, i32, i32
  }
  func.func @transform_6(%arg0: i32, %arg1: i32) -> (i32, i32, i32, i32) {
    %c1_i32 = arith.constant 1 : i32
    %0 = arith.muli %arg0, %c1_i32 : i32
    %1 = arith.addi %0, %arg1 : i32
    %c0_i32 = arith.constant 0 : i32
    %c0_i32_0 = arith.constant 0 : i32
    %c0_i32_1 = arith.constant 0 : i32
    %c0_i32_2 = arith.constant 0 : i32
    return %1, %c0_i32, %c0_i32_0, %c0_i32_1 : i32, i32, i32, i32
  }
}

</mosaic_0001>

<llo_original>
// kernel: tpu_custom_call.1
$region0: #{tpu_custom_call.1}
  #allocation0 [shape = 'u32[]', space=smem, size = 0x4, offset = 0x4, fixed_abs, tag = 'smem constant byte address 0x4 - core index']
  #allocation1 [shape = 'u32[144,128]{1,0:T(1,128)}', space=vmem, size = 0x12000, scoped, tag = 'internal scratch']
  %s0 = inlined_call_operand.vmem [shape: f32[2,20,26,4], index: 0, kind: input, shape index: {}]
  %s1 = inlined_call_operand.vmem [shape: f32[18,4], index: 1, kind: input, shape index: {}]
  %s2 = inlined_call_operand.vmem [shape: f32[1,4], index: 2, kind: input, shape index: {}]
  %s3 = inlined_call_operand.vmem [shape: f32[18,4], index: 3, kind: input, shape index: {}]
  %s4 = inlined_call_operand.vmem [shape: f32[1,4], index: 4, kind: input, shape index: {}]
  %s5 = inlined_call_operand.vmem [shape: f32[2,16,16,4], index: 5, kind: output, shape index: {0}]
  %s6 = inlined_call_operand.vmem [shape: f32[2,16,16,2], index: 6, kind: output, shape index: {1}]
  %7 = xla_tuple %s5, %s6
  %s8 = sld [smem:[#allocation0]]
  $region61: #{tpu_custom_call.1} parent=0
    _
  %s10 = ssub.s32 1, %s8
  %s11 = scalar_select 0, %s10, %s8
  loop: start=0, step=1, limit=4
  $region2: #{tpu_custom_call.1} parent=0 // loop_pre_header
    _
  $region3: #{tpu_custom_call.1} parent=0 // loop_header
    %s13 = sphi 0, %s17
    %p14 = scmp.ge.s32.totalorder %s13, 4
    %s20 = sphi 0, %s32
    %s21 = sphi 0, %s28
    %s22 = sphi 0, %s20
    %s23 = sphi 0, %s21
    %s24 = sphi 0, %s22
    %s25 = sphi 0, %s23
    %s37 = sphi 0, %s39
    %s40 = sphi 0, %s37
    %s41 = sphi 0, %s40
    %s57 = sphi 0, %s41
    %s61 = sphi 0, %s61
    %s63 = sphi 0, %s61
    %s64 = sphi 0, %s63
    %s78 = sphi 0, %s64
    %s82 = sphi 0, %s82
    %s84 = sphi 0, %s82
    %s85 = sphi 0, %s84
    %s99 = sphi 0, %s85
    %s103 = sphi 0, %s103
    %s105 = sphi 0, %s103
    %s106 = sphi 0, %s105
    %s120 = sphi 0, %s106
    %s124 = sphi 0, %s124
    %s126 = sphi 0, %s124
    %s127 = sphi 0, %s126
    %s141 = sphi 0, %s127
    %s149 = sphi 0, %s151
    %s152 = sphi 0, %s149
    %s153 = sphi 0, %s152
    %s169 = sphi 0, %s153
    %s177 = sphi 0, %s179
    %s180 = sphi 0, %s177
    %s181 = sphi 0, %s180
    %s197 = sphi 0, %s181
  $region4: #{tpu_custom_call.1} parent=0 // loop_header_branch
    %16 = sbr.rel (%p14) target = $region8
  $region5: #{tpu_custom_call.1} parent=0 // loop_body
    %s18 = ssub.s32 %s13, 1
    %s19 = ssub.s32 %s13, 2
    %s26 = sadd.s32 1, %s21
    %p27 = scmp.ge.s32.totalorder %s26, 1
    %s28 = scalar_select %p27, 0, %s26
    %s29 = sadd.s32 1, %s20
    %s30 = scalar_select %p27, %s29, %s20
    %p31 = scmp.ge.s32.totalorder %s30, 2
    %s32 = scalar_select %p31, 0, %s30
    %s33 = sadd.s32 %s20, %s21
    %s34 = sadd.s32 %s32, %s28
    %s35 = ssub.s32 %s33, %s34
    %p36 = scmp.eq.s32.totalorder %s35, 0
    %s38 = sadd.s32 %s37, 1
    %s39 = scalar_select %p36, %s37, %s38
    %p42 = pneg %p36
    %p43 = scmp.eq.s32.totalorder %s13, 1
    %p44 = por %p42, %p43
    %p45 = scmp.ne.s32.totalorder %s37, %s40
    %p46 = scmp.eq.s32.totalorder %s13, 0
    %p47 = por %p45, %p46
    %p48 = scmp.ne.s32.totalorder %s37, %s40
    %p49 = scmp.eq.s32.totalorder %s18, 1
    %p50 = por %p48, %p49
    %p51 = scmp.ne.s32.totalorder %s40, %s41
    %p52 = scmp.eq.s32.totalorder %s18, 0
    %p53 = por %p51, %p52
    %p54 = scmp.ne.s32.totalorder %s40, %s41
    %p55 = scmp.eq.s32.totalorder %s19, 1
    %p56 = por %p54, %p55
    %p58 = scmp.ne.s32.totalorder %s41, %s57
    %p59 = scmp.eq.s32.totalorder %s19, 0
    %p60 = por %p58, %p59
    %s62 = sadd.s32 %s61, 1
    %p65 = scmp.eq.s32.totalorder %s13, 1
    %p66 = scmp.ne.s32.totalorder %s61, %s63
    %p67 = scmp.eq.s32.totalorder %s13, 0
    %p68 = por %p66, %p67
    %p69 = scmp.ne.s32.totalorder %s61, %s63
    %p70 = scmp.eq.s32.totalorder %s18, 1
    %p71 = por %p69, %p70
    %p72 = scmp.ne.s32.totalorder %s63, %s64
    %p73 = scmp.eq.s32.totalorder %s18, 0
    %p74 = por %p72, %p73
    %p75 = scmp.ne.s32.totalorder %s63, %s64
    %p76 = scmp.eq.s32.totalorder %s19, 1
    %p77 = por %p75, %p76
    %p79 = scmp.ne.s32.totalorder %s64, %s78
    %p80 = scmp.eq.s32.totalorder %s19, 0
    %p81 = por %p79, %p80
    %s83 = sadd.s32 %s82, 1
    %p86 = scmp.eq.s32.totalorder %s13, 1
    %p87 = scmp.ne.s32.totalorder %s82, %s84
    %p88 = scmp.eq.s32.totalorder %s13, 0
    %p89 = por %p87, %p88
    %p90 = scmp.ne.s32.totalorder %s82, %s84
    %p91 = scmp.eq.s32.totalorder %s18, 1
    %p92 = por %p90, %p91
    %p93 = scmp.ne.s32.totalorder %s84, %s85
    %p94 = scmp.eq.s32.totalorder %s18, 0
    %p95 = por %p93, %p94
    %p96 = scmp.ne.s32.totalorder %s84, %s85
    %p97 = scmp.eq.s32.totalorder %s19, 1
    %p98 = por %p96, %p97
    %p100 = scmp.ne.s32.totalorder %s85, %s99
    %p101 = scmp.eq.s32.totalorder %s19, 0
    %p102 = por %p100, %p101
    %s104 = sadd.s32 %s103, 1
    %p107 = scmp.eq.s32.totalorder %s13, 1
    %p108 = scmp.ne.s32.totalorder %s103, %s105
    %p109 = scmp.eq.s32.totalorder %s13, 0
    %p110 = por %p108, %p109
    %p111 = scmp.ne.s32.totalorder %s103, %s105
    %p112 = scmp.eq.s32.totalorder %s18, 1
    %p113 = por %p111, %p112
    %p114 = scmp.ne.s32.totalorder %s105, %s106
    %p115 = scmp.eq.s32.totalorder %s18, 0
    %p116 = por %p114, %p115
    %p117 = scmp.ne.s32.totalorder %s105, %s106
    %p118 = scmp.eq.s32.totalorder %s19, 1
    %p119 = por %p117, %p118
    %p121 = scmp.ne.s32.totalorder %s106, %s120
    %p122 = scmp.eq.s32.totalorder %s19, 0
    %p123 = por %p121, %p122
    %s125 = sadd.s32 %s124, 1
    %p128 = scmp.eq.s32.totalorder %s13, 1
    %p129 = scmp.ne.s32.totalorder %s124, %s126
    %p130 = scmp.eq.s32.totalorder %s13, 0
    %p131 = por %p129, %p130
    %p132 = scmp.ne.s32.totalorder %s124, %s126
    %p133 = scmp.eq.s32.totalorder %s18, 1
    %p134 = por %p132, %p133
    %p135 = scmp.ne.s32.totalorder %s126, %s127
    %p136 = scmp.eq.s32.totalorder %s18, 0
    %p137 = por %p135, %p136
    %p138 = scmp.ne.s32.totalorder %s126, %s127
    %p139 = scmp.eq.s32.totalorder %s19, 1
    %p140 = por %p138, %p139
    %p142 = scmp.ne.s32.totalorder %s127, %s141
    %p143 = scmp.eq.s32.totalorder %s19, 0
    %p144 = por %p142, %p143
    %s145 = sadd.s32 %s20, %s21
    %s146 = sadd.s32 %s32, %s28
    %s147 = ssub.s32 %s145, %s146
    %p148 = scmp.eq.s32.totalorder %s147, 0
    %s150 = sadd.s32 %s149, 1
    %s151 = scalar_select %p148, %s149, %s150
    %p154 = pneg %p148
    %p155 = scmp.eq.s32.totalorder %s13, 1
    %p156 = por %p154, %p155
    %p157 = scmp.ne.s32.totalorder %s149, %s152
    %p158 = scmp.eq.s32.totalorder %s13, 0
    %p159 = por %p157, %p158
    %p160 = scmp.ne.s32.totalorder %s149, %s152
    %p161 = scmp.eq.s32.totalorder %s18, 1
    %p162 = por %p160, %p161
    %p163 = scmp.ne.s32.totalorder %s152, %s153
    %p164 = scmp.eq.s32.totalorder %s18, 0
    %p165 = por %p163, %p164
    %p166 = scmp.ne.s32.totalorder %s152, %s153
    %p167 = scmp.eq.s32.totalorder %s19, 1
    %p168 = por %p166, %p167
    %p170 = scmp.ne.s32.totalorder %s153, %s169
    %p171 = scmp.eq.s32.totalorder %s19, 0
    %p172 = por %p170, %p171
    %s173 = sadd.s32 %s20, %s21
    %s174 = sadd.s32 %s32, %s28
    %s175 = ssub.s32 %s173, %s174
    %p176 = scmp.eq.s32.totalorder %s175, 0
    %s178 = sadd.s32 %s177, 1
    %s179 = scalar_select %p176, %s177, %s178
    %p182 = pneg %p176
    %p183 = scmp.eq.s32.totalorder %s13, 1
    %p184 = por %p182, %p183
    %p185 = scmp.ne.s32.totalorder %s177, %s180
    %p186 = scmp.eq.s32.totalorder %s13, 0
    %p187 = por %p185, %p186
    %p188 = scmp.ne.s32.totalorder %s177, %s180
    %p189 = scmp.eq.s32.totalorder %s18, 1
    %p190 = por %p188, %p189
    %p191 = scmp.ne.s32.totalorder %s180, %s181
    %p192 = scmp.eq.s32.totalorder %s18, 0
    %p193 = por %p191, %p192
    %p194 = scmp.ne.s32.totalorder %s180, %s181
    %p195 = scmp.eq.s32.totalorder %s19, 1
    %p196 = por %p194, %p195
    %p198 = scmp.ne.s32.totalorder %s181, %s197
    %p199 = scmp.eq.s32.totalorder %s19, 0
    %p200 = por %p198, %p199
    %p201 = scmp.le.s32.totalorder 1, %s13
    %p202 = scmp.lt.s32.totalorder %s13, 3
    %p203 = pnand %p201, %p202
    %p204 = pneg %p203
    // Predicated region
    $region9: #{tpu_custom_call.1} parent=5 // pred_check
      _
    $region10: #{tpu_custom_call.1} parent=5 // pred_check_branch
      %206 = sbr.rel (%p203) target = $region12
    $region11: #{tpu_custom_call.1} parent=5 // pred_region
      %s207 = ssub.s32 %s13, 1
      // Predicated region
      $region13: #{tpu_custom_call.1} parent=11 // pred_check
        %p208 = pneg %p74
      $region14: #{tpu_custom_call.1} parent=11 // pred_check_branch
        %210 = sbr.rel (%p208) target = $region16
      $region15: #{tpu_custom_call.1} parent=11 // pred_region
        _
      $region16: #{tpu_custom_call.1} parent=11 // pred_fallthru
        _
      // Predicated region
      $region17: #{tpu_custom_call.1} parent=11 // pred_check
        %p211 = pneg %p95
      $region18: #{tpu_custom_call.1} parent=11 // pred_check_branch
        %213 = sbr.rel (%p211) target = $region20
      $region19: #{tpu_custom_call.1} parent=11 // pred_region
        _
      $region20: #{tpu_custom_call.1} parent=11 // pred_fallthru
        _
      // Predicated region
      $region21: #{tpu_custom_call.1} parent=11 // pred_check
        %p214 = pneg %p116
      $region22: #{tpu_custom_call.1} parent=11 // pred_check_branch
        %216 = sbr.rel (%p214) target = $region24
      $region23: #{tpu_custom_call.1} parent=11 // pred_region
        _
      $region24: #{tpu_custom_call.1} parent=11 // pred_fallthru
        _
      // Predicated region
      $region25: #{tpu_custom_call.1} parent=11 // pred_check
        %p217 = pneg %p137
      $region26: #{tpu_custom_call.1} parent=11 // pred_check_branch
        %219 = sbr.rel (%p217) target = $region28
      $region27: #{tpu_custom_call.1} parent=11 // pred_region
        _
      $region28: #{tpu_custom_call.1} parent=11 // pred_fallthru
        _
    $region12: #{tpu_custom_call.1} parent=5 // pred_fallthru
      _
    %p220 = scmp.lt.s32.totalorder %s13, 2
    // Predicated region
    $region29: #{tpu_custom_call.1} parent=5 // pred_check
      %p221 = pneg %p220
    $region30: #{tpu_custom_call.1} parent=5 // pred_check_branch
      %223 = sbr.rel (%p221) target = $region32
    $region31: #{tpu_custom_call.1} parent=5 // pred_region
      // Predicated region
      $region33: #{tpu_custom_call.1} parent=31 // pred_check
        %p224 = pneg %p47
      $region34: #{tpu_custom_call.1} parent=31 // pred_check_branch
        %226 = sbr.rel (%p224) target = $region36
      $region35: #{tpu_custom_call.1} parent=31 // pred_region
        %s227 = sadd.s32 %s20, %s21
        %p228 = scmp.lt.s32.totalorder %s227, 1
        %s229 = scalar_select %p228, %s227, 1
        %s230 = smul.addr %s229, 80
        %s231 = smul.addr %s230, 8
        %s232 = scalar_lea.vmem %s0, %s231
        %s233 = sadd.s32 %s20, %s21
      $region36: #{tpu_custom_call.1} parent=31 // pred_fallthru
        _
    $region32: #{tpu_custom_call.1} parent=5 // pred_fallthru
      _
    %p234 = scmp.le.s32.totalorder 1, %s13
    %p235 = scmp.lt.s32.totalorder %s13, 3
    %p236 = pnand %p234, %p235
    %p237 = pneg %p236
    // Predicated region
    $region37: #{tpu_custom_call.1} parent=5 // pred_check
      _
    $region38: #{tpu_custom_call.1} parent=5 // pred_check_branch
      %239 = sbr.rel (%p236) target = $region40
    $region39: #{tpu_custom_call.1} parent=5 // pred_region
      %s240 = ssub.s32 %s13, 1
      %s241 = sadd.s32 %s22, %s23
      %p242 = scmp.lt.s32.totalorder %s241, 1
      %s243 = scalar_select %p242, %s241, 1
      %s244 = smul.addr %s243, 80
      %s245 = smul.addr %s244, 8
      %s246 = scalar_lea.vmem %s0, %s245
      %p247 = pneg %p53
      %p248 = pneg %p50
      %p249 = pneg %p74
      %p250 = pneg %p71
      %p251 = pneg %p95
      %p252 = pneg %p92
      %p253 = pneg %p116
      %p254 = pneg %p113
      %p255 = pneg %p137
      %p256 = pneg %p134
      %p257 = pneg %p165
      %p258 = pneg %p162
      %s259 = sadd.s32 %s22, %s23
      %p260 = scmp.lt.s32.totalorder %s259, 1
      %s261 = scalar_select %p260, %s259, 1
      %s262 = smul.addr %s261, 32
      %s263 = smul.addr %s262, 8
      %s264 = scalar_lea.vmem %s5, %s263
      %p265 = pneg %p193
      %p266 = pneg %p190
      %s267 = sadd.s32 %s22, %s23
      %p268 = scmp.lt.s32.totalorder %s267, 1
      %s269 = scalar_select %p268, %s267, 1
      %s270 = smul.addr %s269, 32
      %s271 = smul.addr %s270, 8
      %s272 = scalar_lea.vmem %s6, %s271
      %s273 = sadd.s32 %s22, %s23
      %p274 = scmp.lt.s32.totalorder %s273, 1
      %s275 = scalar_select %p274, %s273, 1
      %s276 = smul.addr %s275, 80
      %s277 = smul.addr %s276, 8
      %s278 = scalar_lea.vmem %s0, %s277
      %s279 = sadd.s32 %s22, %s23
      %s280 = sadd.s32 %s22, %s23
      %p281 = scmp.lt.s32.totalorder %s280, 1
      %s282 = scalar_select %p281, %s280, 1
      %s283 = smul.addr %s282, 32
      %s284 = smul.addr %s283, 8
      %s285 = scalar_lea.vmem %s5, %s284
      %s286 = sadd.s32 %s22, %s23
      %s287 = sadd.s32 %s22, %s23
      %p288 = scmp.lt.s32.totalorder %s287, 1
      %s289 = scalar_select %p288, %s287, 1
      %s290 = smul.addr %s289, 32
      %s291 = smul.addr %s290, 8
      %s292 = scalar_lea.vmem %s6, %s291
      %s293 = sadd.s32 %s22, %s23
      %v294 = vld [vmem:[%s278] sm:$0xff]
      %v295 = vld [vmem:[%s278 + $0x8] sm:$0xff]
      %v296 = vld [vmem:[%s278 + $0x10] sm:$0xff]
      %v297 = vld [vmem:[%s278 + $0x18] sm:$0x3]
      %v298 = vld [vmem:[%s278 + $0x20] sm:$0xff]
      %v299 = vld [vmem:[%s278 + $0x28] sm:$0xff]
      %v300 = vld [vmem:[%s278 + $0x30] sm:$0xff]
      %v301 = vld [vmem:[%s278 + $0x38] sm:$0x3]
      %v302 = vld [vmem:[%s278 + $0x40] sm:$0xff]
      %v303 = vld [vmem:[%s278 + $0x48] sm:$0xff]
      %v304 = vld [vmem:[%s278 + $0x50] sm:$0xff]
      %v305 = vld [vmem:[%s278 + $0x58] sm:$0x3]
      %v306 = vld [vmem:[%s278 + $0x60] sm:$0xff]
      %v307 = vld [vmem:[%s278 + $0x68] sm:$0xff]
      %v308 = vld [vmem:[%s278 + $0x70] sm:$0xff]
      %v309 = vld [vmem:[%s278 + $0x78] sm:$0x3]
      %v310 = vld [vmem:[%s278 + $0x80] sm:$0xff]
      %v311 = vld [vmem:[%s278 + $0x88] sm:$0xff]
      %v312 = vld [vmem:[%s278 + $0x90] sm:$0xff]
      %v313 = vld [vmem:[%s278 + $0x98] sm:$0x3]
      %v314 = vld [vmem:[%s278 + $0xa0] sm:$0xff]
      %v315 = vld [vmem:[%s278 + $0xa8] sm:$0xff]
      %v316 = vld [vmem:[%s278 + $0xb0] sm:$0xff]
      %v317 = vld [vmem:[%s278 + $0xb8] sm:$0x3]
      %v318 = vld [vmem:[%s278 + $0xc0] sm:$0xff]
      %v319 = vld [vmem:[%s278 + $0xc8] sm:$0xff]
      %v320 = vld [vmem:[%s278 + $0xd0] sm:$0xff]
      %v321 = vld [vmem:[%s278 + $0xd8] sm:$0x3]
      %v322 = vld [vmem:[%s278 + $0xe0] sm:$0xff]
      %v323 = vld [vmem:[%s278 + $0xe8] sm:$0xff]
      %v324 = vld [vmem:[%s278 + $0xf0] sm:$0xff]
      %v325 = vld [vmem:[%s278 + $0xf8] sm:$0x3]
      %v326 = vld [vmem:[%s278 + $0x100] sm:$0xff]
      %v327 = vld [vmem:[%s278 + $0x108] sm:$0xff]
      %v328 = vld [vmem:[%s278 + $0x110] sm:$0xff]
      %v329 = vld [vmem:[%s278 + $0x118] sm:$0x3]
      %v330 = vld [vmem:[%s278 + $0x120] sm:$0xff]
      %v331 = vld [vmem:[%s278 + $0x128] sm:$0xff]
      %v332 = vld [vmem:[%s278 + $0x130] sm:$0xff]
      %v333 = vld [vmem:[%s278 + $0x138] sm:$0x3]
      %v334 = vld [vmem:[%s278 + $0x140] sm:$0xff]
      %v335 = vld [vmem:[%s278 + $0x148] sm:$0xff]
      %v336 = vld [vmem:[%s278 + $0x150] sm:$0xff]
      %v337 = vld [vmem:[%s278 + $0x158] sm:$0x3]
      %v338 = vld [vmem:[%s278 + $0x160] sm:$0xff]
      %v339 = vld [vmem:[%s278 + $0x168] sm:$0xff]
      %v340 = vld [vmem:[%s278 + $0x170] sm:$0xff]
      %v341 = vld [vmem:[%s278 + $0x178] sm:$0x3]
      %v342 = vld [vmem:[%s278 + $0x180] sm:$0xff]
      %v343 = vld [vmem:[%s278 + $0x188] sm:$0xff]
      %v344 = vld [vmem:[%s278 + $0x190] sm:$0xff]
      %v345 = vld [vmem:[%s278 + $0x198] sm:$0x3]
      %v346 = vld [vmem:[%s278 + $0x1a0] sm:$0xff]
      %v347 = vld [vmem:[%s278 + $0x1a8] sm:$0xff]
      %v348 = vld [vmem:[%s278 + $0x1b0] sm:$0xff]
      %v349 = vld [vmem:[%s278 + $0x1b8] sm:$0x3]
      %v350 = vld [vmem:[%s278 + $0x1c0] sm:$0xff]
      %v351 = vld [vmem:[%s278 + $0x1c8] sm:$0xff]
      %v352 = vld [vmem:[%s278 + $0x1d0] sm:$0xff]
      %v353 = vld [vmem:[%s278 + $0x1d8] sm:$0x3]
      %v354 = vld [vmem:[%s278 + $0x1e0] sm:$0xff]
      %v355 = vld [vmem:[%s278 + $0x1e8] sm:$0xff]
      %v356 = vld [vmem:[%s278 + $0x1f0] sm:$0xff]
      %v357 = vld [vmem:[%s278 + $0x1f8] sm:$0x3]
      %v358 = vld [vmem:[%s278 + $0x200] sm:$0xff]
      %v359 = vld [vmem:[%s278 + $0x208] sm:$0xff]
      %v360 = vld [vmem:[%s278 + $0x210] sm:$0xff]
      %v361 = vld [vmem:[%s278 + $0x218] sm:$0x3]
      %v362 = vld [vmem:[%s278 + $0x220] sm:$0xff]
      %v363 = vld [vmem:[%s278 + $0x228] sm:$0xff]
      %v364 = vld [vmem:[%s278 + $0x230] sm:$0xff]
      %v365 = vld [vmem:[%s278 + $0x238] sm:$0x3]
      %v366 = vld [vmem:[%s278 + $0x240] sm:$0xff]
      %v367 = vld [vmem:[%s278 + $0x248] sm:$0xff]
      %v368 = vld [vmem:[%s278 + $0x250] sm:$0xff]
      %v369 = vld [vmem:[%s278 + $0x258] sm:$0x3]
      %v370 = vld [vmem:[%s278 + $0x260] sm:$0xff]
      %v371 = vld [vmem:[%s278 + $0x268] sm:$0xff]
      %v372 = vld [vmem:[%s278 + $0x270] sm:$0xff]
      %v373 = vld [vmem:[%s278 + $0x278] sm:$0x3]
      %428 = vrot.lane.b32.xlu0 %v294, 126
      %v429 = vpop.permute.xlu0 %428
      %430 = vrot.lane.b32.xlu0 %v295, 126
      %v431 = vpop.permute.xlu0 %430
      %432 = vrot.lane.b32.xlu0 %v296, 126
      %v433 = vpop.permute.xlu0 %432
      %434 = vrot.lane.b32.xlu0 %v298, 126
      %v435 = vpop.permute.xlu0 %434
      %436 = vrot.lane.b32.xlu0 %v299, 126
      %v437 = vpop.permute.xlu0 %436
      %438 = vrot.lane.b32.xlu0 %v300, 126
      %v439 = vpop.permute.xlu0 %438
      %440 = vrot.lane.b32.xlu0 %v302, 126
      %v441 = vpop.permute.xlu0 %440
      %442 = vrot.lane.b32.xlu0 %v303, 126
      %v443 = vpop.permute.xlu0 %442
      %444 = vrot.lane.b32.xlu0 %v304, 126
      %v445 = vpop.permute.xlu0 %444
      %446 = vrot.lane.b32.xlu0 %v306, 126
      %v447 = vpop.permute.xlu0 %446
      %448 = vrot.lane.b32.xlu0 %v307, 126
      %v449 = vpop.permute.xlu0 %448
      %450 = vrot.lane.b32.xlu0 %v308, 126
      %v451 = vpop.permute.xlu0 %450
      %452 = vrot.lane.b32.xlu0 %v310, 126
      %v453 = vpop.permute.xlu0 %452
      %454 = vrot.lane.b32.xlu0 %v311, 126
      %v455 = vpop.permute.xlu0 %454
      %456 = vrot.lane.b32.xlu0 %v312, 126
      %v457 = vpop.permute.xlu0 %456
      %458 = vrot.lane.b32.xlu0 %v314, 126
      %v459 = vpop.permute.xlu0 %458
      %460 = vrot.lane.b32.xlu0 %v315, 126
      %v461 = vpop.permute.xlu0 %460
      %462 = vrot.lane.b32.xlu0 %v316, 126
      %v463 = vpop.permute.xlu0 %462
      %464 = vrot.lane.b32.xlu0 %v318, 126
      %v465 = vpop.permute.xlu0 %464
      %466 = vrot.lane.b32.xlu0 %v319, 126
      %v467 = vpop.permute.xlu0 %466
      %468 = vrot.lane.b32.xlu0 %v320, 126
      %v469 = vpop.permute.xlu0 %468
      %470 = vrot.lane.b32.xlu0 %v322, 126
      %v471 = vpop.permute.xlu0 %470
      %472 = vrot.lane.b32.xlu0 %v323, 126
      %v473 = vpop.permute.xlu0 %472
      %474 = vrot.lane.b32.xlu0 %v324, 126
      %v475 = vpop.permute.xlu0 %474
      %476 = vrot.lane.b32.xlu0 %v326, 126
      %v477 = vpop.permute.xlu0 %476
      %478 = vrot.lane.b32.xlu0 %v327, 126
      %v479 = vpop.permute.xlu0 %478
      %480 = vrot.lane.b32.xlu0 %v328, 126
      %v481 = vpop.permute.xlu0 %480
      %482 = vrot.lane.b32.xlu0 %v330, 126
      %v483 = vpop.permute.xlu0 %482
      %484 = vrot.lane.b32.xlu0 %v331, 126
      %v485 = vpop.permute.xlu0 %484
      %486 = vrot.lane.b32.xlu0 %v332, 126
      %v487 = vpop.permute.xlu0 %486
      %488 = vrot.lane.b32.xlu0 %v334, 126
      %v489 = vpop.permute.xlu0 %488
      %490 = vrot.lane.b32.xlu0 %v335, 126
      %v491 = vpop.permute.xlu0 %490
      %492 = vrot.lane.b32.xlu0 %v336, 126
      %v493 = vpop.permute.xlu0 %492
      %494 = vrot.lane.b32.xlu0 %v338, 126
      %v495 = vpop.permute.xlu0 %494
      %496 = vrot.lane.b32.xlu0 %v339, 126
      %v497 = vpop.permute.xlu0 %496
      %498 = vrot.lane.b32.xlu0 %v340, 126
      %v499 = vpop.permute.xlu0 %498
      %500 = vrot.lane.b32.xlu0 %v342, 126
      %v501 = vpop.permute.xlu0 %500
      %502 = vrot.lane.b32.xlu0 %v343, 126
      %v503 = vpop.permute.xlu0 %502
      %504 = vrot.lane.b32.xlu0 %v344, 126
      %v505 = vpop.permute.xlu0 %504
      %506 = vrot.lane.b32.xlu0 %v346, 126
      %v507 = vpop.permute.xlu0 %506
      %508 = vrot.lane.b32.xlu0 %v347, 126
      %v509 = vpop.permute.xlu0 %508
      %510 = vrot.lane.b32.xlu0 %v348, 126
      %v511 = vpop.permute.xlu0 %510
      %512 = vrot.lane.b32.xlu0 %v350, 126
      %v513 = vpop.permute.xlu0 %512
      %514 = vrot.lane.b32.xlu0 %v351, 126
      %v515 = vpop.permute.xlu0 %514
      %516 = vrot.lane.b32.xlu0 %v352, 126
      %v517 = vpop.permute.xlu0 %516
      %518 = vrot.lane.b32.xlu0 %v354, 126
      %v519 = vpop.permute.xlu0 %518
      %520 = vrot.lane.b32.xlu0 %v355, 126
      %v521 = vpop.permute.xlu0 %520
      %522 = vrot.lane.b32.xlu0 %v356, 126
      %v523 = vpop.permute.xlu0 %522
      %524 = vrot.lane.b32.xlu0 %v358, 126
      %v525 = vpop.permute.xlu0 %524
      %526 = vrot.lane.b32.xlu0 %v359, 126
      %v527 = vpop.permute.xlu0 %526
      %528 = vrot.lane.b32.xlu0 %v360, 126
      %v529 = vpop.permute.xlu0 %528
      %530 = vrot.lane.b32.xlu0 %v362, 126
      %v531 = vpop.permute.xlu0 %530
      %532 = vrot.lane.b32.xlu0 %v363, 126
      %v533 = vpop.permute.xlu0 %532
      %534 = vrot.lane.b32.xlu0 %v364, 126
      %v535 = vpop.permute.xlu0 %534
      %vm608 = vcmask 1046528
      %v609 = vrot.slane %v294, 1
      %v610 = vrot.slane %v295, 1
      %v611 = vsel %vm608, %v609, %v610
      %v612 = vrot.slane %v296, 1
      %v613 = vsel %vm608, %v610, %v612
      %v614 = vrot.slane %v297, 1
      %v615 = vsel %vm608, %v612, %v614
      %v616 = vrot.slane %v298, 1
      %v617 = vrot.slane %v299, 1
      %v618 = vsel %vm608, %v616, %v617
      %v619 = vrot.slane %v300, 1
      %v620 = vsel %vm608, %v617, %v619
      %v621 = vrot.slane %v301, 1
      %v622 = vsel %vm608, %v619, %v621
      %v623 = vrot.slane %v302, 1
      %v624 = vrot.slane %v303, 1
      %v625 = vsel %vm608, %v623, %v624
      %v626 = vrot.slane %v304, 1
      %v627 = vsel %vm608, %v624, %v626
      %v628 = vrot.slane %v305, 1
      %v629 = vsel %vm608, %v626, %v628
      %v630 = vrot.slane %v306, 1
      %v631 = vrot.slane %v307, 1
      %v632 = vsel %vm608, %v630, %v631
      %v633 = vrot.slane %v308, 1
      %v634 = vsel %vm608, %v631, %v633
      %v635 = vrot.slane %v309, 1
      %v636 = vsel %vm608, %v633, %v635
      %v637 = vrot.slane %v310, 1
      %v638 = vrot.slane %v311, 1
      %v639 = vsel %vm608, %v637, %v638
      %v640 = vrot.slane %v312, 1
      %v641 = vsel %vm608, %v638, %v640
      %v642 = vrot.slane %v313, 1
      %v643 = vsel %vm608, %v640, %v642
      %v644 = vrot.slane %v314, 1
      %v645 = vrot.slane %v315, 1
      %v646 = vsel %vm608, %v644, %v645
      %v647 = vrot.slane %v316, 1
      %v648 = vsel %vm608, %v645, %v647
      %v649 = vrot.slane %v317, 1
      %v650 = vsel %vm608, %v647, %v649
      %v651 = vrot.slane %v318, 1
      %v652 = vrot.slane %v319, 1
      %v653 = vsel %vm608, %v651, %v652
      %v654 = vrot.slane %v320, 1
      %v655 = vsel %vm608, %v652, %v654
      %v656 = vrot.slane %v321, 1
      %v657 = vsel %vm608, %v654, %v656
      %v658 = vrot.slane %v322, 1
      %v659 = vrot.slane %v323, 1
      %v660 = vsel %vm608, %v658, %v659
      %v661 = vrot.slane %v324, 1
      %v662 = vsel %vm608, %v659, %v661
      %v663 = vrot.slane %v325, 1
      %v664 = vsel %vm608, %v661, %v663
      %v665 = vrot.slane %v326, 1
      %v666 = vrot.slane %v327, 1
      %v667 = vsel %vm608, %v665, %v666
      %v668 = vrot.slane %v328, 1
      %v669 = vsel %vm608, %v666, %v668
      %v670 = vrot.slane %v329, 1
      %v671 = vsel %vm608, %v668, %v670
      %v672 = vrot.slane %v330, 1
      %v673 = vrot.slane %v331, 1
      %v674 = vsel %vm608, %v672, %v673
      %v675 = vrot.slane %v332, 1
      %v676 = vsel %vm608, %v673, %v675
      %v677 = vrot.slane %v333, 1
      %v678 = vsel %vm608, %v675, %v677
      %v679 = vrot.slane %v334, 1
      %v680 = vrot.slane %v335, 1
      %v681 = vsel %vm608, %v679, %v680
      %v682 = vrot.slane %v336, 1
      %v683 = vsel %vm608, %v680, %v682
      %v684 = vrot.slane %v337, 1
      %v685 = vsel %vm608, %v682, %v684
      %v686 = vrot.slane %v338, 1
      %v687 = vrot.slane %v339, 1
      %v688 = vsel %vm608, %v686, %v687
      %v689 = vrot.slane %v340, 1
      %v690 = vsel %vm608, %v687, %v689
      %v691 = vrot.slane %v341, 1
      %v692 = vsel %vm608, %v689, %v691
      %v693 = vrot.slane %v342, 1
      %v694 = vrot.slane %v343, 1
      %v695 = vsel %vm608, %v693, %v694
      %v696 = vrot.slane %v344, 1
      %v697 = vsel %vm608, %v694, %v696
      %v698 = vrot.slane %v345, 1
      %v699 = vsel %vm608, %v696, %v698
      %v700 = vrot.slane %v346, 1
      %v701 = vrot.slane %v347, 1
      %v702 = vsel %vm608, %v700, %v701
      %v703 = vrot.slane %v348, 1
      %v704 = vsel %vm608, %v701, %v703
      %v705 = vrot.slane %v349, 1
      %v706 = vsel %vm608, %v703, %v705
      %v707 = vrot.slane %v350, 1
      %v708 = vrot.slane %v351, 1
      %v709 = vsel %vm608, %v707, %v708
      %v710 = vrot.slane %v352, 1
      %v711 = vsel %vm608, %v708, %v710
      %v712 = vrot.slane %v353, 1
      %v713 = vsel %vm608, %v710, %v712
      %v714 = vrot.slane %v354, 1
      %v715 = vrot.slane %v355, 1
      %v716 = vsel %vm608, %v714, %v715
      %v717 = vrot.slane %v356, 1
      %v718 = vsel %vm608, %v715, %v717
      %v719 = vrot.slane %v357, 1
      %v720 = vsel %vm608, %v717, %v719
      %v721 = vrot.slane %v358, 1
      %v722 = vrot.slane %v359, 1
      %v723 = vsel %vm608, %v721, %v722
      %v724 = vrot.slane %v360, 1
      %v725 = vsel %vm608, %v722, %v724
      %v726 = vrot.slane %v361, 1
      %v727 = vsel %vm608, %v724, %v726
      %v728 = vrot.slane %v362, 1
      %v729 = vrot.slane %v363, 1
      %v730 = vsel %vm608, %v728, %v729
      %v731 = vrot.slane %v364, 1
      %v732 = vsel %vm608, %v729, %v731
      %v733 = vrot.slane %v365, 1
      %v734 = vsel %vm608, %v731, %v733
      %vm789 = vcmask 1045504
      %v790 = vrot.slane %v294, 2
      %v791 = vrot.slane %v295, 2
      %v792 = vsel %vm789, %v790, %v791
      %v793 = vrot.slane %v296, 2
      %v794 = vsel %vm789, %v791, %v793
      %v795 = vrot.slane %v297, 2
      %v796 = vsel %vm789, %v793, %v795
      %v797 = vrot.slane %v298, 2
      %v798 = vrot.slane %v299, 2
      %v799 = vsel %vm789, %v797, %v798
      %v800 = vrot.slane %v300, 2
      %v801 = vsel %vm789, %v798, %v800
      %v802 = vrot.slane %v301, 2
      %v803 = vsel %vm789, %v800, %v802
      %v804 = vrot.slane %v302, 2
      %v805 = vrot.slane %v303, 2
      %v806 = vsel %vm789, %v804, %v805
      %v807 = vrot.slane %v304, 2
      %v808 = vsel %vm789, %v805, %v807
      %v809 = vrot.slane %v305, 2
      %v810 = vsel %vm789, %v807, %v809
      %v811 = vrot.slane %v306, 2
      %v812 = vrot.slane %v307, 2
      %v813 = vsel %vm789, %v811, %v812
      %v814 = vrot.slane %v308, 2
      %v815 = vsel %vm789, %v812, %v814
      %v816 = vrot.slane %v309, 2
      %v817 = vsel %vm789, %v814, %v816
      %v818 = vrot.slane %v310, 2
      %v819 = vrot.slane %v311, 2
      %v820 = vsel %vm789, %v818, %v819
      %v821 = vrot.slane %v312, 2
      %v822 = vsel %vm789, %v819, %v821
      %v823 = vrot.slane %v313, 2
      %v824 = vsel %vm789, %v821, %v823
      %v825 = vrot.slane %v314, 2
      %v826 = vrot.slane %v315, 2
      %v827 = vsel %vm789, %v825, %v826
      %v828 = vrot.slane %v316, 2
      %v829 = vsel %vm789, %v826, %v828
      %v830 = vrot.slane %v317, 2
      %v831 = vsel %vm789, %v828, %v830
      %v832 = vrot.slane %v318, 2
      %v833 = vrot.slane %v319, 2
      %v834 = vsel %vm789, %v832, %v833
      %v835 = vrot.slane %v320, 2
      %v836 = vsel %vm789, %v833, %v835
      %v837 = vrot.slane %v321, 2
      %v838 = vsel %vm789, %v835, %v837
      %v839 = vrot.slane %v322, 2
      %v840 = vrot.slane %v323, 2
      %v841 = vsel %vm789, %v839, %v840
      %v842 = vrot.slane %v324, 2
      %v843 = vsel %vm789, %v840, %v842
      %v844 = vrot.slane %v325, 2
      %v845 = vsel %vm789, %v842, %v844
      %v846 = vrot.slane %v326, 2
      %v847 = vrot.slane %v327, 2
      %v848 = vsel %vm789, %v846, %v847
      %v849 = vrot.slane %v328, 2
      %v850 = vsel %vm789, %v847, %v849
      %v851 = vrot.slane %v329, 2
      %v852 = vsel %vm789, %v849, %v851
      %v853 = vrot.slane %v330, 2
      %v854 = vrot.slane %v331, 2
      %v855 = vsel %vm789, %v853, %v854
      %v856 = vrot.slane %v332, 2
      %v857 = vsel %vm789, %v854, %v856
      %v858 = vrot.slane %v333, 2
      %v859 = vsel %vm789, %v856, %v858
      %v860 = vrot.slane %v334, 2
      %v861 = vrot.slane %v335, 2
      %v862 = vsel %vm789, %v860, %v861
      %v863 = vrot.slane %v336, 2
      %v864 = vsel %vm789, %v861, %v863
      %v865 = vrot.slane %v337, 2
      %v866 = vsel %vm789, %v863, %v865
      %v867 = vrot.slane %v338, 2
      %v868 = vrot.slane %v339, 2
      %v869 = vsel %vm789, %v867, %v868
      %v870 = vrot.slane %v340, 2
      %v871 = vsel %vm789, %v868, %v870
      %v872 = vrot.slane %v341, 2
      %v873 = vsel %vm789, %v870, %v872
      %v874 = vrot.slane %v342, 2
      %v875 = vrot.slane %v343, 2
      %v876 = vsel %vm789, %v874, %v875
      %v877 = vrot.slane %v344, 2
      %v878 = vsel %vm789, %v875, %v877
      %v879 = vrot.slane %v345, 2
      %v880 = vsel %vm789, %v877, %v879
      %v881 = vrot.slane %v346, 2
      %v882 = vrot.slane %v347, 2
      %v883 = vsel %vm789, %v881, %v882
      %v884 = vrot.slane %v348, 2
      %v885 = vsel %vm789, %v882, %v884
      %v886 = vrot.slane %v349, 2
      %v887 = vsel %vm789, %v884, %v886
      %v888 = vrot.slane %v350, 2
      %v889 = vrot.slane %v351, 2
      %v890 = vsel %vm789, %v888, %v889
      %v891 = vrot.slane %v352, 2
      %v892 = vsel %vm789, %v889, %v891
      %v893 = vrot.slane %v353, 2
      %v894 = vsel %vm789, %v891, %v893
      %v895 = vrot.slane %v354, 2
      %v896 = vrot.slane %v355, 2
      %v897 = vsel %vm789, %v895, %v896
      %v898 = vrot.slane %v356, 2
      %v899 = vsel %vm789, %v896, %v898
      %v900 = vrot.slane %v357, 2
      %v901 = vsel %vm789, %v898, %v900
      %v902 = vrot.slane %v358, 2
      %v903 = vrot.slane %v359, 2
      %v904 = vsel %vm789, %v902, %v903
      %v905 = vrot.slane %v360, 2
      %v906 = vsel %vm789, %v903, %v905
      %v907 = vrot.slane %v361, 2
      %v908 = vsel %vm789, %v905, %v907
      %v909 = vrot.slane %v362, 2
      %v910 = vrot.slane %v363, 2
      %v911 = vsel %vm789, %v909, %v910
      %v912 = vrot.slane %v364, 2
      %v913 = vsel %vm789, %v910, %v912
      %v914 = vrot.slane %v365, 2
      %v915 = vsel %vm789, %v912, %v914
      %916 = vrot.lane.b32.xlu0 %v792, 2
      %v917 = vpop.permute.xlu0 %916
      %918 = vrot.lane.b32.xlu0 %v794, 2
      %v919 = vpop.permute.xlu0 %918
      %920 = vrot.lane.b32.xlu0 %v796, 2
      %v921 = vpop.permute.xlu0 %920
      %922 = vrot.lane.b32.xlu0 %v799, 2
      %v923 = vpop.permute.xlu0 %922
      %924 = vrot.lane.b32.xlu0 %v801, 2
      %v925 = vpop.permute.xlu0 %924
      %926 = vrot.lane.b32.xlu0 %v803, 2
      %v927 = vpop.permute.xlu0 %926
      %928 = vrot.lane.b32.xlu0 %v806, 2
      %v929 = vpop.permute.xlu0 %928
      %930 = vrot.lane.b32.xlu0 %v808, 2
      %v931 = vpop.permute.xlu0 %930
      %932 = vrot.lane.b32.xlu0 %v810, 2
      %v933 = vpop.permute.xlu0 %932
      %934 = vrot.lane.b32.xlu0 %v813, 2
      %v935 = vpop.permute.xlu0 %934
      %936 = vrot.lane.b32.xlu0 %v815, 2
      %v937 = vpop.permute.xlu0 %936
      %938 = vrot.lane.b32.xlu0 %v817, 2
      %v939 = vpop.permute.xlu0 %938
      %940 = vrot.lane.b32.xlu0 %v820, 2
      %v941 = vpop.permute.xlu0 %940
      %942 = vrot.lane.b32.xlu0 %v822, 2
      %v943 = vpop.permute.xlu0 %942
      %944 = vrot.lane.b32.xlu0 %v824, 2
      %v945 = vpop.permute.xlu0 %944
      %946 = vrot.lane.b32.xlu0 %v827, 2
      %v947 = vpop.permute.xlu0 %946
      %948 = vrot.lane.b32.xlu0 %v829, 2
      %v949 = vpop.permute.xlu0 %948
      %950 = vrot.lane.b32.xlu0 %v831, 2
      %v951 = vpop.permute.xlu0 %950
      %952 = vrot.lane.b32.xlu0 %v834, 2
      %v953 = vpop.permute.xlu0 %952
      %954 = vrot.lane.b32.xlu0 %v836, 2
      %v955 = vpop.permute.xlu0 %954
      %956 = vrot.lane.b32.xlu0 %v838, 2
      %v957 = vpop.permute.xlu0 %956
      %958 = vrot.lane.b32.xlu0 %v841, 2
      %v959 = vpop.permute.xlu0 %958
      %960 = vrot.lane.b32.xlu0 %v843, 2
      %v961 = vpop.permute.xlu0 %960
      %962 = vrot.lane.b32.xlu0 %v845, 2
      %v963 = vpop.permute.xlu0 %962
      %964 = vrot.lane.b32.xlu0 %v848, 2
      %v965 = vpop.permute.xlu0 %964
      %966 = vrot.lane.b32.xlu0 %v850, 2
      %v967 = vpop.permute.xlu0 %966
      %968 = vrot.lane.b32.xlu0 %v852, 2
      %v969 = vpop.permute.xlu0 %968
      %970 = vrot.lane.b32.xlu0 %v855, 2
      %v971 = vpop.permute.xlu0 %970
      %972 = vrot.lane.b32.xlu0 %v857, 2
      %v973 = vpop.permute.xlu0 %972
      %974 = vrot.lane.b32.xlu0 %v859, 2
      %v975 = vpop.permute.xlu0 %974
      %976 = vrot.lane.b32.xlu0 %v862, 2
      %v977 = vpop.permute.xlu0 %976
      %978 = vrot.lane.b32.xlu0 %v864, 2
      %v979 = vpop.permute.xlu0 %978
      %980 = vrot.lane.b32.xlu0 %v866, 2
      %v981 = vpop.permute.xlu0 %980
      %982 = vrot.lane.b32.xlu0 %v869, 2
      %v983 = vpop.permute.xlu0 %982
      %984 = vrot.lane.b32.xlu0 %v871, 2
      %v985 = vpop.permute.xlu0 %984
      %986 = vrot.lane.b32.xlu0 %v873, 2
      %v987 = vpop.permute.xlu0 %986
      %988 = vrot.lane.b32.xlu0 %v876, 2
      %v989 = vpop.permute.xlu0 %988
      %990 = vrot.lane.b32.xlu0 %v878, 2
      %v991 = vpop.permute.xlu0 %990
      %992 = vrot.lane.b32.xlu0 %v880, 2
      %v993 = vpop.permute.xlu0 %992
      %994 = vrot.lane.b32.xlu0 %v883, 2
      %v995 = vpop.permute.xlu0 %994
      %996 = vrot.lane.b32.xlu0 %v885, 2
      %v997 = vpop.permute.xlu0 %996
      %998 = vrot.lane.b32.xlu0 %v887, 2
      %v999 = vpop.permute.xlu0 %998
      %1000 = vrot.lane.b32.xlu0 %v890, 2
      %v1001 = vpop.permute.xlu0 %1000
      %1002 = vrot.lane.b32.xlu0 %v892, 2
      %v1003 = vpop.permute.xlu0 %1002
      %1004 = vrot.lane.b32.xlu0 %v894, 2
      %v1005 = vpop.permute.xlu0 %1004
      %1006 = vrot.lane.b32.xlu0 %v897, 2
      %v1007 = vpop.permute.xlu0 %1006
      %1008 = vrot.lane.b32.xlu0 %v899, 2
      %v1009 = vpop.permute.xlu0 %1008
      %1010 = vrot.lane.b32.xlu0 %v901, 2
      %v1011 = vpop.permute.xlu0 %1010
      %1012 = vrot.lane.b32.xlu0 %v904, 2
      %v1013 = vpop.permute.xlu0 %1012
      %1014 = vrot.lane.b32.xlu0 %v906, 2
      %v1015 = vpop.permute.xlu0 %1014
      %1016 = vrot.lane.b32.xlu0 %v908, 2
      %v1017 = vpop.permute.xlu0 %1016
      %1018 = vrot.lane.b32.xlu0 %v911, 2
      %v1019 = vpop.permute.xlu0 %1018
      %1020 = vrot.lane.b32.xlu0 %v913, 2
      %v1021 = vpop.permute.xlu0 %1020
      %1022 = vrot.lane.b32.xlu0 %v915, 2
      %v1023 = vpop.permute.xlu0 %1022
      %1081 = vrot.lane.b32.xlu0 %v298, 4
      %v1082 = vpop.permute.xlu0 %1081
      %1083 = vrot.lane.b32.xlu0 %v299, 4
      %v1084 = vpop.permute.xlu0 %1083
      %1085 = vrot.lane.b32.xlu0 %v300, 4
      %v1086 = vpop.permute.xlu0 %1085
      %1087 = vrot.lane.b32.xlu0 %v302, 4
      %v1088 = vpop.permute.xlu0 %1087
      %1089 = vrot.lane.b32.xlu0 %v303, 4
      %v1090 = vpop.permute.xlu0 %1089
      %1091 = vrot.lane.b32.xlu0 %v304, 4
      %v1092 = vpop.permute.xlu0 %1091
      %1093 = vrot.lane.b32.xlu0 %v306, 4
      %v1094 = vpop.permute.xlu0 %1093
      %1095 = vrot.lane.b32.xlu0 %v307, 4
      %v1096 = vpop.permute.xlu0 %1095
      %1097 = vrot.lane.b32.xlu0 %v308, 4
      %v1098 = vpop.permute.xlu0 %1097
      %1099 = vrot.lane.b32.xlu0 %v310, 4
      %v1100 = vpop.permute.xlu0 %1099
      %1101 = vrot.lane.b32.xlu0 %v311, 4
      %v1102 = vpop.permute.xlu0 %1101
      %1103 = vrot.lane.b32.xlu0 %v312, 4
      %v1104 = vpop.permute.xlu0 %1103
      %1105 = vrot.lane.b32.xlu0 %v314, 4
      %v1106 = vpop.permute.xlu0 %1105
      %1107 = vrot.lane.b32.xlu0 %v315, 4
      %v1108 = vpop.permute.xlu0 %1107
      %1109 = vrot.lane.b32.xlu0 %v316, 4
      %v1110 = vpop.permute.xlu0 %1109
      %1111 = vrot.lane.b32.xlu0 %v318, 4
      %v1112 = vpop.permute.xlu0 %1111
      %1113 = vrot.lane.b32.xlu0 %v319, 4
      %v1114 = vpop.permute.xlu0 %1113
      %1115 = vrot.lane.b32.xlu0 %v320, 4
      %v1116 = vpop.permute.xlu0 %1115
      %1117 = vrot.lane.b32.xlu0 %v322, 4
      %v1118 = vpop.permute.xlu0 %1117
      %1119 = vrot.lane.b32.xlu0 %v323, 4
      %v1120 = vpop.permute.xlu0 %1119
      %1121 = vrot.lane.b32.xlu0 %v324, 4
      %v1122 = vpop.permute.xlu0 %1121
      %1123 = vrot.lane.b32.xlu0 %v326, 4
      %v1124 = vpop.permute.xlu0 %1123
      %1125 = vrot.lane.b32.xlu0 %v327, 4
      %v1126 = vpop.permute.xlu0 %1125
      %1127 = vrot.lane.b32.xlu0 %v328, 4
      %v1128 = vpop.permute.xlu0 %1127
      %1129 = vrot.lane.b32.xlu0 %v330, 4
      %v1130 = vpop.permute.xlu0 %1129
      %1131 = vrot.lane.b32.xlu0 %v331, 4
      %v1132 = vpop.permute.xlu0 %1131
      %1133 = vrot.lane.b32.xlu0 %v332, 4
      %v1134 = vpop.permute.xlu0 %1133
      %1135 = vrot.lane.b32.xlu0 %v334, 4
      %v1136 = vpop.permute.xlu0 %1135
      %1137 = vrot.lane.b32.xlu0 %v335, 4
      %v1138 = vpop.permute.xlu0 %1137
      %1139 = vrot.lane.b32.xlu0 %v336, 4
      %v1140 = vpop.permute.xlu0 %1139
      %1141 = vrot.lane.b32.xlu0 %v338, 4
      %v1142 = vpop.permute.xlu0 %1141
      %1143 = vrot.lane.b32.xlu0 %v339, 4
      %v1144 = vpop.permute.xlu0 %1143
      %1145 = vrot.lane.b32.xlu0 %v340, 4
      %v1146 = vpop.permute.xlu0 %1145
      %1147 = vrot.lane.b32.xlu0 %v342, 4
      %v1148 = vpop.permute.xlu0 %1147
      %1149 = vrot.lane.b32.xlu0 %v343, 4
      %v1150 = vpop.permute.xlu0 %1149
      %1151 = vrot.lane.b32.xlu0 %v344, 4
      %v1152 = vpop.permute.xlu0 %1151
      %1153 = vrot.lane.b32.xlu0 %v346, 4
      %v1154 = vpop.permute.xlu0 %1153
      %1155 = vrot.lane.b32.xlu0 %v347, 4
      %v1156 = vpop.permute.xlu0 %1155
      %1157 = vrot.lane.b32.xlu0 %v348, 4
      %v1158 = vpop.permute.xlu0 %1157
      %1159 = vrot.lane.b32.xlu0 %v350, 4
      %v1160 = vpop.permute.xlu0 %1159
      %1161 = vrot.lane.b32.xlu0 %v351, 4
      %v1162 = vpop.permute.xlu0 %1161
      %1163 = vrot.lane.b32.xlu0 %v352, 4
      %v1164 = vpop.permute.xlu0 %1163
      %1165 = vrot.lane.b32.xlu0 %v354, 4
      %v1166 = vpop.permute.xlu0 %1165
      %1167 = vrot.lane.b32.xlu0 %v355, 4
      %v1168 = vpop.permute.xlu0 %1167
      %1169 = vrot.lane.b32.xlu0 %v356, 4
      %v1170 = vpop.permute.xlu0 %1169
      %1171 = vrot.lane.b32.xlu0 %v358, 4
      %v1172 = vpop.permute.xlu0 %1171
      %1173 = vrot.lane.b32.xlu0 %v359, 4
      %v1174 = vpop.permute.xlu0 %1173
      %1175 = vrot.lane.b32.xlu0 %v360, 4
      %v1176 = vpop.permute.xlu0 %1175
      %1177 = vrot.lane.b32.xlu0 %v362, 4
      %v1178 = vpop.permute.xlu0 %1177
      %1179 = vrot.lane.b32.xlu0 %v363, 4
      %v1180 = vpop.permute.xlu0 %1179
      %1181 = vrot.lane.b32.xlu0 %v364, 4
      %v1182 = vpop.permute.xlu0 %1181
      %1183 = vrot.lane.b32.xlu0 %v366, 4
      %v1184 = vpop.permute.xlu0 %1183
      %1185 = vrot.lane.b32.xlu0 %v367, 4
      %v1186 = vpop.permute.xlu0 %1185
      %1187 = vrot.lane.b32.xlu0 %v368, 4
      %v1188 = vpop.permute.xlu0 %1187
      %v1244 = vrot.slane %v366, 1
      %v1245 = vrot.slane %v367, 1
      %v1246 = vsel %vm608, %v1244, %v1245
      %v1247 = vrot.slane %v368, 1
      %v1248 = vsel %vm608, %v1245, %v1247
      %v1249 = vrot.slane %v369, 1
      %v1250 = vsel %vm608, %v1247, %v1249
      %1251 = vrot.lane.b32.xlu0 %v618, 6
      %v1252 = vpop.permute.xlu0 %1251
      %1253 = vrot.lane.b32.xlu0 %v620, 6
      %v1254 = vpop.permute.xlu0 %1253
      %1255 = vrot.lane.b32.xlu0 %v622, 6
      %v1256 = vpop.permute.xlu0 %1255
      %1257 = vrot.lane.b32.xlu0 %v625, 6
      %v1258 = vpop.permute.xlu0 %1257
      %1259 = vrot.lane.b32.xlu0 %v627, 6
      %v1260 = vpop.permute.xlu0 %1259
      %1261 = vrot.lane.b32.xlu0 %v629, 6
      %v1262 = vpop.permute.xlu0 %1261
      %1263 = vrot.lane.b32.xlu0 %v632, 6
      %v1264 = vpop.permute.xlu0 %1263
      %1265 = vrot.lane.b32.xlu0 %v634, 6
      %v1266 = vpop.permute.xlu0 %1265
      %1267 = vrot.lane.b32.xlu0 %v636, 6
      %v1268 = vpop.permute.xlu0 %1267
      %1269 = vrot.lane.b32.xlu0 %v639, 6
      %v1270 = vpop.permute.xlu0 %1269
      %1271 = vrot.lane.b32.xlu0 %v641, 6
      %v1272 = vpop.permute.xlu0 %1271
      %1273 = vrot.lane.b32.xlu0 %v643, 6
      %v1274 = vpop.permute.xlu0 %1273
      %1275 = vrot.lane.b32.xlu0 %v646, 6
      %v1276 = vpop.permute.xlu0 %1275
      %1277 = vrot.lane.b32.xlu0 %v648, 6
      %v1278 = vpop.permute.xlu0 %1277
      %1279 = vrot.lane.b32.xlu0 %v650, 6
      %v1280 = vpop.permute.xlu0 %1279
      %1281 = vrot.lane.b32.xlu0 %v653, 6
      %v1282 = vpop.permute.xlu0 %1281
      %1283 = vrot.lane.b32.xlu0 %v655, 6
      %v1284 = vpop.permute.xlu0 %1283
      %1285 = vrot.lane.b32.xlu0 %v657, 6
      %v1286 = vpop.permute.xlu0 %1285
      %1287 = vrot.lane.b32.xlu0 %v660, 6
      %v1288 = vpop.permute.xlu0 %1287
      %1289 = vrot.lane.b32.xlu0 %v662, 6
      %v1290 = vpop.permute.xlu0 %1289
      %1291 = vrot.lane.b32.xlu0 %v664, 6
      %v1292 = vpop.permute.xlu0 %1291
      %1293 = vrot.lane.b32.xlu0 %v667, 6
      %v1294 = vpop.permute.xlu0 %1293
      %1295 = vrot.lane.b32.xlu0 %v669, 6
      %v1296 = vpop.permute.xlu0 %1295
      %1297 = vrot.lane.b32.xlu0 %v671, 6
      %v1298 = vpop.permute.xlu0 %1297
      %1299 = vrot.lane.b32.xlu0 %v674, 6
      %v1300 = vpop.permute.xlu0 %1299
      %1301 = vrot.lane.b32.xlu0 %v676, 6
      %v1302 = vpop.permute.xlu0 %1301
      %1303 = vrot.lane.b32.xlu0 %v678, 6
      %v1304 = vpop.permute.xlu0 %1303
      %1305 = vrot.lane.b32.xlu0 %v681, 6
      %v1306 = vpop.permute.xlu0 %1305
      %1307 = vrot.lane.b32.xlu0 %v683, 6
      %v1308 = vpop.permute.xlu0 %1307
      %1309 = vrot.lane.b32.xlu0 %v685, 6
      %v1310 = vpop.permute.xlu0 %1309
      %1311 = vrot.lane.b32.xlu0 %v688, 6
      %v1312 = vpop.permute.xlu0 %1311
      %1313 = vrot.lane.b32.xlu0 %v690, 6
      %v1314 = vpop.permute.xlu0 %1313
      %1315 = vrot.lane.b32.xlu0 %v692, 6
      %v1316 = vpop.permute.xlu0 %1315
      %1317 = vrot.lane.b32.xlu0 %v695, 6
      %v1318 = vpop.permute.xlu0 %1317
      %1319 = vrot.lane.b32.xlu0 %v697, 6
      %v1320 = vpop.permute.xlu0 %1319
      %1321 = vrot.lane.b32.xlu0 %v699, 6
      %v1322 = vpop.permute.xlu0 %1321
      %1323 = vrot.lane.b32.xlu0 %v702, 6
      %v1324 = vpop.permute.xlu0 %1323
      %1325 = vrot.lane.b32.xlu0 %v704, 6
      %v1326 = vpop.permute.xlu0 %1325
      %1327 = vrot.lane.b32.xlu0 %v706, 6
      %v1328 = vpop.permute.xlu0 %1327
      %1329 = vrot.lane.b32.xlu0 %v709, 6
      %v1330 = vpop.permute.xlu0 %1329
      %1331 = vrot.lane.b32.xlu0 %v711, 6
      %v1332 = vpop.permute.xlu0 %1331
      %1333 = vrot.lane.b32.xlu0 %v713, 6
      %v1334 = vpop.permute.xlu0 %1333
      %1335 = vrot.lane.b32.xlu0 %v716, 6
      %v1336 = vpop.permute.xlu0 %1335
      %1337 = vrot.lane.b32.xlu0 %v718, 6
      %v1338 = vpop.permute.xlu0 %1337
      %1339 = vrot.lane.b32.xlu0 %v720, 6
      %v1340 = vpop.permute.xlu0 %1339
      %1341 = vrot.lane.b32.xlu0 %v723, 6
      %v1342 = vpop.permute.xlu0 %1341
      %1343 = vrot.lane.b32.xlu0 %v725, 6
      %v1344 = vpop.permute.xlu0 %1343
      %1345 = vrot.lane.b32.xlu0 %v727, 6
      %v1346 = vpop.permute.xlu0 %1345
      %1347 = vrot.lane.b32.xlu0 %v730, 6
      %v1348 = vpop.permute.xlu0 %1347
      %1349 = vrot.lane.b32.xlu0 %v732, 6
      %v1350 = vpop.permute.xlu0 %1349
      %1351 = vrot.lane.b32.xlu0 %v734, 6
      %v1352 = vpop.permute.xlu0 %1351
      %1353 = vrot.lane.b32.xlu0 %v1246, 6
      %v1354 = vpop.permute.xlu0 %1353
      %1355 = vrot.lane.b32.xlu0 %v1248, 6
      %v1356 = vpop.permute.xlu0 %1355
      %1357 = vrot.lane.b32.xlu0 %v1250, 6
      %v1358 = vpop.permute.xlu0 %1357
      %v1413 = vrot.slane %v366, 2
      %v1414 = vrot.slane %v367, 2
      %v1415 = vsel %vm789, %v1413, %v1414
      %v1416 = vrot.slane %v368, 2
      %v1417 = vsel %vm789, %v1414, %v1416
      %v1418 = vrot.slane %v369, 2
      %v1419 = vsel %vm789, %v1416, %v1418
      %1420 = vrot.lane.b32.xlu0 %v799, 8
      %v1421 = vpop.permute.xlu0 %1420
      %1422 = vrot.lane.b32.xlu0 %v801, 8
      %v1423 = vpop.permute.xlu0 %1422
      %1424 = vrot.lane.b32.xlu0 %v803, 8
      %v1425 = vpop.permute.xlu0 %1424
      %1426 = vrot.lane.b32.xlu0 %v806, 8
      %v1427 = vpop.permute.xlu0 %1426
      %1428 = vrot.lane.b32.xlu0 %v808, 8
      %v1429 = vpop.permute.xlu0 %1428
      %1430 = vrot.lane.b32.xlu0 %v810, 8
      %v1431 = vpop.permute.xlu0 %1430
      %1432 = vrot.lane.b32.xlu0 %v813, 8
      %v1433 = vpop.permute.xlu0 %1432
      %1434 = vrot.lane.b32.xlu0 %v815, 8
      %v1435 = vpop.permute.xlu0 %1434
      %1436 = vrot.lane.b32.xlu0 %v817, 8
      %v1437 = vpop.permute.xlu0 %1436
      %1438 = vrot.lane.b32.xlu0 %v820, 8
      %v1439 = vpop.permute.xlu0 %1438
      %1440 = vrot.lane.b32.xlu0 %v822, 8
      %v1441 = vpop.permute.xlu0 %1440
      %1442 = vrot.lane.b32.xlu0 %v824, 8
      %v1443 = vpop.permute.xlu0 %1442
      %1444 = vrot.lane.b32.xlu0 %v827, 8
      %v1445 = vpop.permute.xlu0 %1444
      %1446 = vrot.lane.b32.xlu0 %v829, 8
      %v1447 = vpop.permute.xlu0 %1446
      %1448 = vrot.lane.b32.xlu0 %v831, 8
      %v1449 = vpop.permute.xlu0 %1448
      %1450 = vrot.lane.b32.xlu0 %v834, 8
      %v1451 = vpop.permute.xlu0 %1450
      %1452 = vrot.lane.b32.xlu0 %v836, 8
      %v1453 = vpop.permute.xlu0 %1452
      %1454 = vrot.lane.b32.xlu0 %v838, 8
      %v1455 = vpop.permute.xlu0 %1454
      %1456 = vrot.lane.b32.xlu0 %v841, 8
      %v1457 = vpop.permute.xlu0 %1456
      %1458 = vrot.lane.b32.xlu0 %v843, 8
      %v1459 = vpop.permute.xlu0 %1458
      %1460 = vrot.lane.b32.xlu0 %v845, 8
      %v1461 = vpop.permute.xlu0 %1460
      %1462 = vrot.lane.b32.xlu0 %v848, 8
      %v1463 = vpop.permute.xlu0 %1462
      %1464 = vrot.lane.b32.xlu0 %v850, 8
      %v1465 = vpop.permute.xlu0 %1464
      %1466 = vrot.lane.b32.xlu0 %v852, 8
      %v1467 = vpop.permute.xlu0 %1466
      %1468 = vrot.lane.b32.xlu0 %v855, 8
      %v1469 = vpop.permute.xlu0 %1468
      %1470 = vrot.lane.b32.xlu0 %v857, 8
      %v1471 = vpop.permute.xlu0 %1470
      %1472 = vrot.lane.b32.xlu0 %v859, 8
      %v1473 = vpop.permute.xlu0 %1472
      %1474 = vrot.lane.b32.xlu0 %v862, 8
      %v1475 = vpop.permute.xlu0 %1474
      %1476 = vrot.lane.b32.xlu0 %v864, 8
      %v1477 = vpop.permute.xlu0 %1476
      %1478 = vrot.lane.b32.xlu0 %v866, 8
      %v1479 = vpop.permute.xlu0 %1478
      %1480 = vrot.lane.b32.xlu0 %v869, 8
      %v1481 = vpop.permute.xlu0 %1480
      %1482 = vrot.lane.b32.xlu0 %v871, 8
      %v1483 = vpop.permute.xlu0 %1482
      %1484 = vrot.lane.b32.xlu0 %v873, 8
      %v1485 = vpop.permute.xlu0 %1484
      %1486 = vrot.lane.b32.xlu0 %v876, 8
      %v1487 = vpop.permute.xlu0 %1486
      %1488 = vrot.lane.b32.xlu0 %v878, 8
      %v1489 = vpop.permute.xlu0 %1488
      %1490 = vrot.lane.b32.xlu0 %v880, 8
      %v1491 = vpop.permute.xlu0 %1490
      %1492 = vrot.lane.b32.xlu0 %v883, 8
      %v1493 = vpop.permute.xlu0 %1492
      %1494 = vrot.lane.b32.xlu0 %v885, 8
      %v1495 = vpop.permute.xlu0 %1494
      %1496 = vrot.lane.b32.xlu0 %v887, 8
      %v1497 = vpop.permute.xlu0 %1496
      %1498 = vrot.lane.b32.xlu0 %v890, 8
      %v1499 = vpop.permute.xlu0 %1498
      %1500 = vrot.lane.b32.xlu0 %v892, 8
      %v1501 = vpop.permute.xlu0 %1500
      %1502 = vrot.lane.b32.xlu0 %v894, 8
      %v1503 = vpop.permute.xlu0 %1502
      %1504 = vrot.lane.b32.xlu0 %v897, 8
      %v1505 = vpop.permute.xlu0 %1504
      %1506 = vrot.lane.b32.xlu0 %v899, 8
      %v1507 = vpop.permute.xlu0 %1506
      %1508 = vrot.lane.b32.xlu0 %v901, 8
      %v1509 = vpop.permute.xlu0 %1508
      %1510 = vrot.lane.b32.xlu0 %v904, 8
      %v1511 = vpop.permute.xlu0 %1510
      %1512 = vrot.lane.b32.xlu0 %v906, 8
      %v1513 = vpop.permute.xlu0 %1512
      %1514 = vrot.lane.b32.xlu0 %v908, 8
      %v1515 = vpop.permute.xlu0 %1514
      %1516 = vrot.lane.b32.xlu0 %v911, 8
      %v1517 = vpop.permute.xlu0 %1516
      %1518 = vrot.lane.b32.xlu0 %v913, 8
      %v1519 = vpop.permute.xlu0 %1518
      %1520 = vrot.lane.b32.xlu0 %v915, 8
      %v1521 = vpop.permute.xlu0 %1520
      %1522 = vrot.lane.b32.xlu0 %v1415, 8
      %v1523 = vpop.permute.xlu0 %1522
      %1524 = vrot.lane.b32.xlu0 %v1417, 8
      %v1525 = vpop.permute.xlu0 %1524
      %1526 = vrot.lane.b32.xlu0 %v1419, 8
      %v1527 = vpop.permute.xlu0 %1526
      %1585 = vrot.lane.b32.xlu0 %v302, 10
      %v1586 = vpop.permute.xlu0 %1585
      %1587 = vrot.lane.b32.xlu0 %v303, 10
      %v1588 = vpop.permute.xlu0 %1587
      %1589 = vrot.lane.b32.xlu0 %v304, 10
      %v1590 = vpop.permute.xlu0 %1589
      %1591 = vrot.lane.b32.xlu0 %v306, 10
      %v1592 = vpop.permute.xlu0 %1591
      %1593 = vrot.lane.b32.xlu0 %v307, 10
      %v1594 = vpop.permute.xlu0 %1593
      %1595 = vrot.lane.b32.xlu0 %v308, 10
      %v1596 = vpop.permute.xlu0 %1595
      %1597 = vrot.lane.b32.xlu0 %v310, 10
      %v1598 = vpop.permute.xlu0 %1597
      %1599 = vrot.lane.b32.xlu0 %v311, 10
      %v1600 = vpop.permute.xlu0 %1599
      %1601 = vrot.lane.b32.xlu0 %v312, 10
      %v1602 = vpop.permute.xlu0 %1601
      %1603 = vrot.lane.b32.xlu0 %v314, 10
      %v1604 = vpop.permute.xlu0 %1603
      %1605 = vrot.lane.b32.xlu0 %v315, 10
      %v1606 = vpop.permute.xlu0 %1605
      %1607 = vrot.lane.b32.xlu0 %v316, 10
      %v1608 = vpop.permute.xlu0 %1607
      %1609 = vrot.lane.b32.xlu0 %v318, 10
      %v1610 = vpop.permute.xlu0 %1609
      %1611 = vrot.lane.b32.xlu0 %v319, 10
      %v1612 = vpop.permute.xlu0 %1611
      %1613 = vrot.lane.b32.xlu0 %v320, 10
      %v1614 = vpop.permute.xlu0 %1613
      %1615 = vrot.lane.b32.xlu0 %v322, 10
      %v1616 = vpop.permute.xlu0 %1615
      %1617 = vrot.lane.b32.xlu0 %v323, 10
      %v1618 = vpop.permute.xlu0 %1617
      %1619 = vrot.lane.b32.xlu0 %v324, 10
      %v1620 = vpop.permute.xlu0 %1619
      %1621 = vrot.lane.b32.xlu0 %v326, 10
      %v1622 = vpop.permute.xlu0 %1621
      %1623 = vrot.lane.b32.xlu0 %v327, 10
      %v1624 = vpop.permute.xlu0 %1623
      %1625 = vrot.lane.b32.xlu0 %v328, 10
      %v1626 = vpop.permute.xlu0 %1625
      %1627 = vrot.lane.b32.xlu0 %v330, 10
      %v1628 = vpop.permute.xlu0 %1627
      %1629 = vrot.lane.b32.xlu0 %v331, 10
      %v1630 = vpop.permute.xlu0 %1629
      %1631 = vrot.lane.b32.xlu0 %v332, 10
      %v1632 = vpop.permute.xlu0 %1631
      %1633 = vrot.lane.b32.xlu0 %v334, 10
      %v1634 = vpop.permute.xlu0 %1633
      %1635 = vrot.lane.b32.xlu0 %v335, 10
      %v1636 = vpop.permute.xlu0 %1635
      %1637 = vrot.lane.b32.xlu0 %v336, 10
      %v1638 = vpop.permute.xlu0 %1637
      %1639 = vrot.lane.b32.xlu0 %v338, 10
      %v1640 = vpop.permute.xlu0 %1639
      %1641 = vrot.lane.b32.xlu0 %v339, 10
      %v1642 = vpop.permute.xlu0 %1641
      %1643 = vrot.lane.b32.xlu0 %v340, 10
      %v1644 = vpop.permute.xlu0 %1643
      %1645 = vrot.lane.b32.xlu0 %v342, 10
      %v1646 = vpop.permute.xlu0 %1645
      %1647 = vrot.lane.b32.xlu0 %v343, 10
      %v1648 = vpop.permute.xlu0 %1647
      %1649 = vrot.lane.b32.xlu0 %v344, 10
      %v1650 = vpop.permute.xlu0 %1649
      %1651 = vrot.lane.b32.xlu0 %v346, 10
      %v1652 = vpop.permute.xlu0 %1651
      %1653 = vrot.lane.b32.xlu0 %v347, 10
      %v1654 = vpop.permute.xlu0 %1653
      %1655 = vrot.lane.b32.xlu0 %v348, 10
      %v1656 = vpop.permute.xlu0 %1655
      %1657 = vrot.lane.b32.xlu0 %v350, 10
      %v1658 = vpop.permute.xlu0 %1657
      %1659 = vrot.lane.b32.xlu0 %v351, 10
      %v1660 = vpop.permute.xlu0 %1659
      %1661 = vrot.lane.b32.xlu0 %v352, 10
      %v1662 = vpop.permute.xlu0 %1661
      %1663 = vrot.lane.b32.xlu0 %v354, 10
      %v1664 = vpop.permute.xlu0 %1663
      %1665 = vrot.lane.b32.xlu0 %v355, 10
      %v1666 = vpop.permute.xlu0 %1665
      %1667 = vrot.lane.b32.xlu0 %v356, 10
      %v1668 = vpop.permute.xlu0 %1667
      %1669 = vrot.lane.b32.xlu0 %v358, 10
      %v1670 = vpop.permute.xlu0 %1669
      %1671 = vrot.lane.b32.xlu0 %v359, 10
      %v1672 = vpop.permute.xlu0 %1671
      %1673 = vrot.lane.b32.xlu0 %v360, 10
      %v1674 = vpop.permute.xlu0 %1673
      %1675 = vrot.lane.b32.xlu0 %v362, 10
      %v1676 = vpop.permute.xlu0 %1675
      %1677 = vrot.lane.b32.xlu0 %v363, 10
      %v1678 = vpop.permute.xlu0 %1677
      %1679 = vrot.lane.b32.xlu0 %v364, 10
      %v1680 = vpop.permute.xlu0 %1679
      %1681 = vrot.lane.b32.xlu0 %v366, 10
      %v1682 = vpop.permute.xlu0 %1681
      %1683 = vrot.lane.b32.xlu0 %v367, 10
      %v1684 = vpop.permute.xlu0 %1683
      %1685 = vrot.lane.b32.xlu0 %v368, 10
      %v1686 = vpop.permute.xlu0 %1685
      %1687 = vrot.lane.b32.xlu0 %v370, 10
      %v1688 = vpop.permute.xlu0 %1687
      %1689 = vrot.lane.b32.xlu0 %v371, 10
      %v1690 = vpop.permute.xlu0 %1689
      %1691 = vrot.lane.b32.xlu0 %v372, 10
      %v1692 = vpop.permute.xlu0 %1691
      %v1748 = vrot.slane %v370, 1
      %v1749 = vrot.slane %v371, 1
      %v1750 = vsel %vm608, %v1748, %v1749
      %v1751 = vrot.slane %v372, 1
      %v1752 = vsel %vm608, %v1749, %v1751
      %v1753 = vrot.slane %v373, 1
      %v1754 = vsel %vm608, %v1751, %v1753
      %1755 = vrot.lane.b32.xlu0 %v625, 12
      %v1756 = vpop.permute.xlu0 %1755
      %1757 = vrot.lane.b32.xlu0 %v627, 12
      %v1758 = vpop.permute.xlu0 %1757
      %1759 = vrot.lane.b32.xlu0 %v629, 12
      %v1760 = vpop.permute.xlu0 %1759
      %1761 = vrot.lane.b32.xlu0 %v632, 12
      %v1762 = vpop.permute.xlu0 %1761
      %1763 = vrot.lane.b32.xlu0 %v634, 12
      %v1764 = vpop.permute.xlu0 %1763
      %1765 = vrot.lane.b32.xlu0 %v636, 12
      %v1766 = vpop.permute.xlu0 %1765
      %1767 = vrot.lane.b32.xlu0 %v639, 12
      %v1768 = vpop.permute.xlu0 %1767
      %1769 = vrot.lane.b32.xlu0 %v641, 12
      %v1770 = vpop.permute.xlu0 %1769
      %1771 = vrot.lane.b32.xlu0 %v643, 12
      %v1772 = vpop.permute.xlu0 %1771
      %1773 = vrot.lane.b32.xlu0 %v646, 12
      %v1774 = vpop.permute.xlu0 %1773
      %1775 = vrot.lane.b32.xlu0 %v648, 12
      %v1776 = vpop.permute.xlu0 %1775
      %1777 = vrot.lane.b32.xlu0 %v650, 12
      %v1778 = vpop.permute.xlu0 %1777
      %1779 = vrot.lane.b32.xlu0 %v653, 12
      %v1780 = vpop.permute.xlu0 %1779
      %1781 = vrot.lane.b32.xlu0 %v655, 12
      %v1782 = vpop.permute.xlu0 %1781
      %1783 = vrot.lane.b32.xlu0 %v657, 12
      %v1784 = vpop.permute.xlu0 %1783
      %1785 = vrot.lane.b32.xlu0 %v660, 12
      %v1786 = vpop.permute.xlu0 %1785
      %1787 = vrot.lane.b32.xlu0 %v662, 12
      %v1788 = vpop.permute.xlu0 %1787
      %1789 = vrot.lane.b32.xlu0 %v664, 12
      %v1790 = vpop.permute.xlu0 %1789
      %1791 = vrot.lane.b32.xlu0 %v667, 12
      %v1792 = vpop.permute.xlu0 %1791
      %1793 = vrot.lane.b32.xlu0 %v669, 12
      %v1794 = vpop.permute.xlu0 %1793
      %1795 = vrot.lane.b32.xlu0 %v671, 12
      %v1796 = vpop.permute.xlu0 %1795
      %1797 = vrot.lane.b32.xlu0 %v674, 12
      %v1798 = vpop.permute.xlu0 %1797
      %1799 = vrot.lane.b32.xlu0 %v676, 12
      %v1800 = vpop.permute.xlu0 %1799
      %1801 = vrot.lane.b32.xlu0 %v678, 12
      %v1802 = vpop.permute.xlu0 %1801
      %1803 = vrot.lane.b32.xlu0 %v681, 12
      %v1804 = vpop.permute.xlu0 %1803
      %1805 = vrot.lane.b32.xlu0 %v683, 12
      %v1806 = vpop.permute.xlu0 %1805
      %1807 = vrot.lane.b32.xlu0 %v685, 12
      %v1808 = vpop.permute.xlu0 %1807
      %1809 = vrot.lane.b32.xlu0 %v688, 12
      %v1810 = vpop.permute.xlu0 %1809
      %1811 = vrot.lane.b32.xlu0 %v690, 12
      %v1812 = vpop.permute.xlu0 %1811
      %1813 = vrot.lane.b32.xlu0 %v692, 12
      %v1814 = vpop.permute.xlu0 %1813
      %1815 = vrot.lane.b32.xlu0 %v695, 12
      %v1816 = vpop.permute.xlu0 %1815
      %1817 = vrot.lane.b32.xlu0 %v697, 12
      %v1818 = vpop.permute.xlu0 %1817
      %1819 = vrot.lane.b32.xlu0 %v699, 12
      %v1820 = vpop.permute.xlu0 %1819
      %1821 = vrot.lane.b32.xlu0 %v702, 12
      %v1822 = vpop.permute.xlu0 %1821
      %1823 = vrot.lane.b32.xlu0 %v704, 12
      %v1824 = vpop.permute.xlu0 %1823
      %1825 = vrot.lane.b32.xlu0 %v706, 12
      %v1826 = vpop.permute.xlu0 %1825
      %1827 = vrot.lane.b32.xlu0 %v709, 12
      %v1828 = vpop.permute.xlu0 %1827
      %1829 = vrot.lane.b32.xlu0 %v711, 12
      %v1830 = vpop.permute.xlu0 %1829
      %1831 = vrot.lane.b32.xlu0 %v713, 12
      %v1832 = vpop.permute.xlu0 %1831
      %1833 = vrot.lane.b32.xlu0 %v716, 12
      %v1834 = vpop.permute.xlu0 %1833
      %1835 = vrot.lane.b32.xlu0 %v718, 12
      %v1836 = vpop.permute.xlu0 %1835
      %1837 = vrot.lane.b32.xlu0 %v720, 12
      %v1838 = vpop.permute.xlu0 %1837
      %1839 = vrot.lane.b32.xlu0 %v723, 12
      %v1840 = vpop.permute.xlu0 %1839
      %1841 = vrot.lane.b32.xlu0 %v725, 12
      %v1842 = vpop.permute.xlu0 %1841
      %1843 = vrot.lane.b32.xlu0 %v727, 12
      %v1844 = vpop.permute.xlu0 %1843
      %1845 = vrot.lane.b32.xlu0 %v730, 12
      %v1846 = vpop.permute.xlu0 %1845
      %1847 = vrot.lane.b32.xlu0 %v732, 12
      %v1848 = vpop.permute.xlu0 %1847
      %1849 = vrot.lane.b32.xlu0 %v734, 12
      %v1850 = vpop.permute.xlu0 %1849
      %1851 = vrot.lane.b32.xlu0 %v1246, 12
      %v1852 = vpop.permute.xlu0 %1851
      %1853 = vrot.lane.b32.xlu0 %v1248, 12
      %v1854 = vpop.permute.xlu0 %1853
      %1855 = vrot.lane.b32.xlu0 %v1250, 12
      %v1856 = vpop.permute.xlu0 %1855
      %1857 = vrot.lane.b32.xlu0 %v1750, 12
      %v1858 = vpop.permute.xlu0 %1857
      %1859 = vrot.lane.b32.xlu0 %v1752, 12
      %v1860 = vpop.permute.xlu0 %1859
      %1861 = vrot.lane.b32.xlu0 %v1754, 12
      %v1862 = vpop.permute.xlu0 %1861
      %v1917 = vrot.slane %v370, 2
      %v1918 = vrot.slane %v371, 2
      %v1919 = vsel %vm789, %v1917, %v1918
      %v1920 = vrot.slane %v372, 2
      %v1921 = vsel %vm789, %v1918, %v1920
      %v1922 = vrot.slane %v373, 2
      %v1923 = vsel %vm789, %v1920, %v1922
      %1924 = vrot.lane.b32.xlu0 %v806, 14
      %v1925 = vpop.permute.xlu0 %1924
      %1926 = vrot.lane.b32.xlu0 %v808, 14
      %v1927 = vpop.permute.xlu0 %1926
      %1928 = vrot.lane.b32.xlu0 %v810, 14
      %v1929 = vpop.permute.xlu0 %1928
      %1930 = vrot.lane.b32.xlu0 %v813, 14
      %v1931 = vpop.permute.xlu0 %1930
      %1932 = vrot.lane.b32.xlu0 %v815, 14
      %v1933 = vpop.permute.xlu0 %1932
      %1934 = vrot.lane.b32.xlu0 %v817, 14
      %v1935 = vpop.permute.xlu0 %1934
      %1936 = vrot.lane.b32.xlu0 %v820, 14
      %v1937 = vpop.permute.xlu0 %1936
      %1938 = vrot.lane.b32.xlu0 %v822, 14
      %v1939 = vpop.permute.xlu0 %1938
      %1940 = vrot.lane.b32.xlu0 %v824, 14
      %v1941 = vpop.permute.xlu0 %1940
      %1942 = vrot.lane.b32.xlu0 %v827, 14
      %v1943 = vpop.permute.xlu0 %1942
      %1944 = vrot.lane.b32.xlu0 %v829, 14
      %v1945 = vpop.permute.xlu0 %1944
      %1946 = vrot.lane.b32.xlu0 %v831, 14
      %v1947 = vpop.permute.xlu0 %1946
      %1948 = vrot.lane.b32.xlu0 %v834, 14
      %v1949 = vpop.permute.xlu0 %1948
      %1950 = vrot.lane.b32.xlu0 %v836, 14
      %v1951 = vpop.permute.xlu0 %1950
      %1952 = vrot.lane.b32.xlu0 %v838, 14
      %v1953 = vpop.permute.xlu0 %1952
      %1954 = vrot.lane.b32.xlu0 %v841, 14
      %v1955 = vpop.permute.xlu0 %1954
      %1956 = vrot.lane.b32.xlu0 %v843, 14
      %v1957 = vpop.permute.xlu0 %1956
      %1958 = vrot.lane.b32.xlu0 %v845, 14
      %v1959 = vpop.permute.xlu0 %1958
      %1960 = vrot.lane.b32.xlu0 %v848, 14
      %v1961 = vpop.permute.xlu0 %1960
      %1962 = vrot.lane.b32.xlu0 %v850, 14
      %v1963 = vpop.permute.xlu0 %1962
      %1964 = vrot.lane.b32.xlu0 %v852, 14
      %v1965 = vpop.permute.xlu0 %1964
      %1966 = vrot.lane.b32.xlu0 %v855, 14
      %v1967 = vpop.permute.xlu0 %1966
      %1968 = vrot.lane.b32.xlu0 %v857, 14
      %v1969 = vpop.permute.xlu0 %1968
      %1970 = vrot.lane.b32.xlu0 %v859, 14
      %v1971 = vpop.permute.xlu0 %1970
      %1972 = vrot.lane.b32.xlu0 %v862, 14
      %v1973 = vpop.permute.xlu0 %1972
      %1974 = vrot.lane.b32.xlu0 %v864, 14
      %v1975 = vpop.permute.xlu0 %1974
      %1976 = vrot.lane.b32.xlu0 %v866, 14
      %v1977 = vpop.permute.xlu0 %1976
      %1978 = vrot.lane.b32.xlu0 %v869, 14
      %v1979 = vpop.permute.xlu0 %1978
      %1980 = vrot.lane.b32.xlu0 %v871, 14
      %v1981 = vpop.permute.xlu0 %1980
      %1982 = vrot.lane.b32.xlu0 %v873, 14
      %v1983 = vpop.permute.xlu0 %1982
      %1984 = vrot.lane.b32.xlu0 %v876, 14
      %v1985 = vpop.permute.xlu0 %1984
      %1986 = vrot.lane.b32.xlu0 %v878, 14
      %v1987 = vpop.permute.xlu0 %1986
      %1988 = vrot.lane.b32.xlu0 %v880, 14
      %v1989 = vpop.permute.xlu0 %1988
      %1990 = vrot.lane.b32.xlu0 %v883, 14
      %v1991 = vpop.permute.xlu0 %1990
      %1992 = vrot.lane.b32.xlu0 %v885, 14
      %v1993 = vpop.permute.xlu0 %1992
      %1994 = vrot.lane.b32.xlu0 %v887, 14
      %v1995 = vpop.permute.xlu0 %1994
      %1996 = vrot.lane.b32.xlu0 %v890, 14
      %v1997 = vpop.permute.xlu0 %1996
      %1998 = vrot.lane.b32.xlu0 %v892, 14
      %v1999 = vpop.permute.xlu0 %1998
      %2000 = vrot.lane.b32.xlu0 %v894, 14
      %v2001 = vpop.permute.xlu0 %2000
      %2002 = vrot.lane.b32.xlu0 %v897, 14
      %v2003 = vpop.permute.xlu0 %2002
      %2004 = vrot.lane.b32.xlu0 %v899, 14
      %v2005 = vpop.permute.xlu0 %2004
      %2006 = vrot.lane.b32.xlu0 %v901, 14
      %v2007 = vpop.permute.xlu0 %2006
      %2008 = vrot.lane.b32.xlu0 %v904, 14
      %v2009 = vpop.permute.xlu0 %2008
      %2010 = vrot.lane.b32.xlu0 %v906, 14
      %v2011 = vpop.permute.xlu0 %2010
      %2012 = vrot.lane.b32.xlu0 %v908, 14
      %v2013 = vpop.permute.xlu0 %2012
      %2014 = vrot.lane.b32.xlu0 %v911, 14
      %v2015 = vpop.permute.xlu0 %2014
      %2016 = vrot.lane.b32.xlu0 %v913, 14
      %v2017 = vpop.permute.xlu0 %2016
      %2018 = vrot.lane.b32.xlu0 %v915, 14
      %v2019 = vpop.permute.xlu0 %2018
      %2020 = vrot.lane.b32.xlu0 %v1415, 14
      %v2021 = vpop.permute.xlu0 %2020
      %2022 = vrot.lane.b32.xlu0 %v1417, 14
      %v2023 = vpop.permute.xlu0 %2022
      %2024 = vrot.lane.b32.xlu0 %v1419, 14
      %v2025 = vpop.permute.xlu0 %2024
      %2026 = vrot.lane.b32.xlu0 %v1919, 14
      %v2027 = vpop.permute.xlu0 %2026
      %2028 = vrot.lane.b32.xlu0 %v1921, 14
      %v2029 = vpop.permute.xlu0 %2028
      %2030 = vrot.lane.b32.xlu0 %v1923, 14
      %v2031 = vpop.permute.xlu0 %2030
      %vm2086 = vcmask 15360
      %v2087 = vsel %vm2086, %v429, %v611
      %v2088 = vsel %vm2086, %v431, %v613
      %v2089 = vsel %vm2086, %v433, %v615
      %v2090 = vsel %vm2086, %v435, %v618
      %v2091 = vsel %vm2086, %v437, %v620
      %v2092 = vsel %vm2086, %v439, %v622
      %v2093 = vsel %vm2086, %v441, %v625
      %v2094 = vsel %vm2086, %v443, %v627
      %v2095 = vsel %vm2086, %v445, %v629
      %v2096 = vsel %vm2086, %v447, %v632
      %v2097 = vsel %vm2086, %v449, %v634
      %v2098 = vsel %vm2086, %v451, %v636
      %v2099 = vsel %vm2086, %v453, %v639
      %v2100 = vsel %vm2086, %v455, %v641
      %v2101 = vsel %vm2086, %v457, %v643
      %v2102 = vsel %vm2086, %v459, %v646
      %v2103 = vsel %vm2086, %v461, %v648
      %v2104 = vsel %vm2086, %v463, %v650
      %v2105 = vsel %vm2086, %v465, %v653
      %v2106 = vsel %vm2086, %v467, %v655
      %v2107 = vsel %vm2086, %v469, %v657
      %v2108 = vsel %vm2086, %v471, %v660
      %v2109 = vsel %vm2086, %v473, %v662
      %v2110 = vsel %vm2086, %v475, %v664
      %v2111 = vsel %vm2086, %v477, %v667
      %v2112 = vsel %vm2086, %v479, %v669
      %v2113 = vsel %vm2086, %v481, %v671
      %v2114 = vsel %vm2086, %v483, %v674
      %v2115 = vsel %vm2086, %v485, %v676
      %v2116 = vsel %vm2086, %v487, %v678
      %v2117 = vsel %vm2086, %v489, %v681
      %v2118 = vsel %vm2086, %v491, %v683
      %v2119 = vsel %vm2086, %v493, %v685
      %v2120 = vsel %vm2086, %v495, %v688
      %v2121 = vsel %vm2086, %v497, %v690
      %v2122 = vsel %vm2086, %v499, %v692
      %v2123 = vsel %vm2086, %v501, %v695
      %v2124 = vsel %vm2086, %v503, %v697
      %v2125 = vsel %vm2086, %v505, %v699
      %v2126 = vsel %vm2086, %v507, %v702
      %v2127 = vsel %vm2086, %v509, %v704
      %v2128 = vsel %vm2086, %v511, %v706
      %v2129 = vsel %vm2086, %v513, %v709
      %v2130 = vsel %vm2086, %v515, %v711
      %v2131 = vsel %vm2086, %v517, %v713
      %v2132 = vsel %vm2086, %v519, %v716
      %v2133 = vsel %vm2086, %v521, %v718
      %v2134 = vsel %vm2086, %v523, %v720
      %v2135 = vsel %vm2086, %v525, %v723
      %v2136 = vsel %vm2086, %v527, %v725
      %v2137 = vsel %vm2086, %v529, %v727
      %v2138 = vsel %vm2086, %v531, %v730
      %v2139 = vsel %vm2086, %v533, %v732
      %v2140 = vsel %vm2086, %v535, %v734
      %vm2141 = vcmask 31744
      %v2142 = vsel %vm2141, %v2087, %v917
      %v2143 = vsel %vm2141, %v2088, %v919
      %v2144 = vsel %vm2141, %v2089, %v921
      %v2145 = vsel %vm2141, %v2090, %v923
      %v2146 = vsel %vm2141, %v2091, %v925
      %v2147 = vsel %vm2141, %v2092, %v927
      %v2148 = vsel %vm2141, %v2093, %v929
      %v2149 = vsel %vm2141, %v2094, %v931
      %v2150 = vsel %vm2141, %v2095, %v933
      %v2151 = vsel %vm2141, %v2096, %v935
      %v2152 = vsel %vm2141, %v2097, %v937
      %v2153 = vsel %vm2141, %v2098, %v939
      %v2154 = vsel %vm2141, %v2099, %v941
      %v2155 = vsel %vm2141, %v2100, %v943
      %v2156 = vsel %vm2141, %v2101, %v945
      %v2157 = vsel %vm2141, %v2102, %v947
      %v2158 = vsel %vm2141, %v2103, %v949
      %v2159 = vsel %vm2141, %v2104, %v951
      %v2160 = vsel %vm2141, %v2105, %v953
      %v2161 = vsel %vm2141, %v2106, %v955
      %v2162 = vsel %vm2141, %v2107, %v957
      %v2163 = vsel %vm2141, %v2108, %v959
      %v2164 = vsel %vm2141, %v2109, %v961
      %v2165 = vsel %vm2141, %v2110, %v963
      %v2166 = vsel %vm2141, %v2111, %v965
      %v2167 = vsel %vm2141, %v2112, %v967
      %v2168 = vsel %vm2141, %v2113, %v969
      %v2169 = vsel %vm2141, %v2114, %v971
      %v2170 = vsel %vm2141, %v2115, %v973
      %v2171 = vsel %vm2141, %v2116, %v975
      %v2172 = vsel %vm2141, %v2117, %v977
      %v2173 = vsel %vm2141, %v2118, %v979
      %v2174 = vsel %vm2141, %v2119, %v981
      %v2175 = vsel %vm2141, %v2120, %v983
      %v2176 = vsel %vm2141, %v2121, %v985
      %v2177 = vsel %vm2141, %v2122, %v987
      %v2178 = vsel %vm2141, %v2123, %v989
      %v2179 = vsel %vm2141, %v2124, %v991
      %v2180 = vsel %vm2141, %v2125, %v993
      %v2181 = vsel %vm2141, %v2126, %v995
      %v2182 = vsel %vm2141, %v2127, %v997
      %v2183 = vsel %vm2141, %v2128, %v999
      %v2184 = vsel %vm2141, %v2129, %v1001
      %v2185 = vsel %vm2141, %v2130, %v1003
      %v2186 = vsel %vm2141, %v2131, %v1005
      %v2187 = vsel %vm2141, %v2132, %v1007
      %v2188 = vsel %vm2141, %v2133, %v1009
      %v2189 = vsel %vm2141, %v2134, %v1011
      %v2190 = vsel %vm2141, %v2135, %v1013
      %v2191 = vsel %vm2141, %v2136, %v1015
      %v2192 = vsel %vm2141, %v2137, %v1017
      %v2193 = vsel %vm2141, %v2138, %v1019
      %v2194 = vsel %vm2141, %v2139, %v1021
      %v2195 = vsel %vm2141, %v2140, %v1023
      %vm2196 = vcmask 48128
      %v2197 = vsel %vm2196, %v2142, %v1082
      %v2198 = vsel %vm2196, %v2143, %v1084
      %v2199 = vsel %vm2196, %v2144, %v1086
      %v2200 = vsel %vm2196, %v2145, %v1088
      %v2201 = vsel %vm2196, %v2146, %v1090
      %v2202 = vsel %vm2196, %v2147, %v1092
      %v2203 = vsel %vm2196, %v2148, %v1094
      %v2204 = vsel %vm2196, %v2149, %v1096
      %v2205 = vsel %vm2196, %v2150, %v1098
      %v2206 = vsel %vm2196, %v2151, %v1100
      %v2207 = vsel %vm2196, %v2152, %v1102
      %v2208 = vsel %vm2196, %v2153, %v1104
      %v2209 = vsel %vm2196, %v2154, %v1106
      %v2210 = vsel %vm2196, %v2155, %v1108
      %v2211 = vsel %vm2196, %v2156, %v1110
      %v2212 = vsel %vm2196, %v2157, %v1112
      %v2213 = vsel %vm2196, %v2158, %v1114
      %v2214 = vsel %vm2196, %v2159, %v1116
      %v2215 = vsel %vm2196, %v2160, %v1118
      %v2216 = vsel %vm2196, %v2161, %v1120
      %v2217 = vsel %vm2196, %v2162, %v1122
      %v2218 = vsel %vm2196, %v2163, %v1124
      %v2219 = vsel %vm2196, %v2164, %v1126
      %v2220 = vsel %vm2196, %v2165, %v1128
      %v2221 = vsel %vm2196, %v2166, %v1130
      %v2222 = vsel %vm2196, %v2167, %v1132
      %v2223 = vsel %vm2196, %v2168, %v1134
      %v2224 = vsel %vm2196, %v2169, %v1136
      %v2225 = vsel %vm2196, %v2170, %v1138
      %v2226 = vsel %vm2196, %v2171, %v1140
      %v2227 = vsel %vm2196, %v2172, %v1142
      %v2228 = vsel %vm2196, %v2173, %v1144
      %v2229 = vsel %vm2196, %v2174, %v1146
      %v2230 = vsel %vm2196, %v2175, %v1148
      %v2231 = vsel %vm2196, %v2176, %v1150
      %v2232 = vsel %vm2196, %v2177, %v1152
      %v2233 = vsel %vm2196, %v2178, %v1154
      %v2234 = vsel %vm2196, %v2179, %v1156
      %v2235 = vsel %vm2196, %v2180, %v1158
      %v2236 = vsel %vm2196, %v2181, %v1160
      %v2237 = vsel %vm2196, %v2182, %v1162
      %v2238 = vsel %vm2196, %v2183, %v1164
      %v2239 = vsel %vm2196, %v2184, %v1166
      %v2240 = vsel %vm2196, %v2185, %v1168
      %v2241 = vsel %vm2196, %v2186, %v1170
      %v2242 = vsel %vm2196, %v2187, %v1172
      %v2243 = vsel %vm2196, %v2188, %v1174
      %v2244 = vsel %vm2196, %v2189, %v1176
      %v2245 = vsel %vm2196, %v2190, %v1178
      %v2246 = vsel %vm2196, %v2191, %v1180
      %v2247 = vsel %vm2196, %v2192, %v1182
      %v2248 = vsel %vm2196, %v2193, %v1184
      %v2249 = vsel %vm2196, %v2194, %v1186
      %v2250 = vsel %vm2196, %v2195, %v1188
      %vm2251 = vcmask 64512
      %v2252 = vsel %vm2251, %v2197, %v1252
      %v2253 = vsel %vm2251, %v2198, %v1254
      %v2254 = vsel %vm2251, %v2199, %v1256
      %v2255 = vsel %vm2251, %v2200, %v1258
      %v2256 = vsel %vm2251, %v2201, %v1260
      %v2257 = vsel %vm2251, %v2202, %v1262
      %v2258 = vsel %vm2251, %v2203, %v1264
      %v2259 = vsel %vm2251, %v2204, %v1266
      %v2260 = vsel %vm2251, %v2205, %v1268
      %v2261 = vsel %vm2251, %v2206, %v1270
      %v2262 = vsel %vm2251, %v2207, %v1272
      %v2263 = vsel %vm2251, %v2208, %v1274
      %v2264 = vsel %vm2251, %v2209, %v1276
      %v2265 = vsel %vm2251, %v2210, %v1278
      %v2266 = vsel %vm2251, %v2211, %v1280
      %v2267 = vsel %vm2251, %v2212, %v1282
      %v2268 = vsel %vm2251, %v2213, %v1284
      %v2269 = vsel %vm2251, %v2214, %v1286
      %v2270 = vsel %vm2251, %v2215, %v1288
      %v2271 = vsel %vm2251, %v2216, %v1290
      %v2272 = vsel %vm2251, %v2217, %v1292
      %v2273 = vsel %vm2251, %v2218, %v1294
      %v2274 = vsel %vm2251, %v2219, %v1296
      %v2275 = vsel %vm2251, %v2220, %v1298
      %v2276 = vsel %vm2251, %v2221, %v1300
      %v2277 = vsel %vm2251, %v2222, %v1302
      %v2278 = vsel %vm2251, %v2223, %v1304
      %v2279 = vsel %vm2251, %v2224, %v1306
      %v2280 = vsel %vm2251, %v2225, %v1308
      %v2281 = vsel %vm2251, %v2226, %v1310
      %v2282 = vsel %vm2251, %v2227, %v1312
      %v2283 = vsel %vm2251, %v2228, %v1314
      %v2284 = vsel %vm2251, %v2229, %v1316
      %v2285 = vsel %vm2251, %v2230, %v1318
      %v2286 = vsel %vm2251, %v2231, %v1320
      %v2287 = vsel %vm2251, %v2232, %v1322
      %v2288 = vsel %vm2251, %v2233, %v1324
      %v2289 = vsel %vm2251, %v2234, %v1326
      %v2290 = vsel %vm2251, %v2235, %v1328
      %v2291 = vsel %vm2251, %v2236, %v1330
      %v2292 = vsel %vm2251, %v2237, %v1332
      %v2293 = vsel %vm2251, %v2238, %v1334
      %v2294 = vsel %vm2251, %v2239, %v1336
      %v2295 = vsel %vm2251, %v2240, %v1338
      %v2296 = vsel %vm2251, %v2241, %v1340
      %v2297 = vsel %vm2251, %v2242, %v1342
      %v2298 = vsel %vm2251, %v2243, %v1344
      %v2299 = vsel %vm2251, %v2244, %v1346
      %v2300 = vsel %vm2251, %v2245, %v1348
      %v2301 = vsel %vm2251, %v2246, %v1350
      %v2302 = vsel %vm2251, %v2247, %v1352
      %v2303 = vsel %vm2251, %v2248, %v1354
      %v2304 = vsel %vm2251, %v2249, %v1356
      %v2305 = vsel %vm2251, %v2250, %v1358
      %vm2306 = vcmask 80896
      %v2307 = vsel %vm2306, %v2252, %v1421
      %v2308 = vsel %vm2306, %v2253, %v1423
      %v2309 = vsel %vm2306, %v2254, %v1425
      %v2310 = vsel %vm2306, %v2255, %v1427
      %v2311 = vsel %vm2306, %v2256, %v1429
      %v2312 = vsel %vm2306, %v2257, %v1431
      %v2313 = vsel %vm2306, %v2258, %v1433
      %v2314 = vsel %vm2306, %v2259, %v1435
      %v2315 = vsel %vm2306, %v2260, %v1437
      %v2316 = vsel %vm2306, %v2261, %v1439
      %v2317 = vsel %vm2306, %v2262, %v1441
      %v2318 = vsel %vm2306, %v2263, %v1443
      %v2319 = vsel %vm2306, %v2264, %v1445
      %v2320 = vsel %vm2306, %v2265, %v1447
      %v2321 = vsel %vm2306, %v2266, %v1449
      %v2322 = vsel %vm2306, %v2267, %v1451
      %v2323 = vsel %vm2306, %v2268, %v1453
      %v2324 = vsel %vm2306, %v2269, %v1455
      %v2325 = vsel %vm2306, %v2270, %v1457
      %v2326 = vsel %vm2306, %v2271, %v1459
      %v2327 = vsel %vm2306, %v2272, %v1461
      %v2328 = vsel %vm2306, %v2273, %v1463
      %v2329 = vsel %vm2306, %v2274, %v1465
      %v2330 = vsel %vm2306, %v2275, %v1467
      %v2331 = vsel %vm2306, %v2276, %v1469
      %v2332 = vsel %vm2306, %v2277, %v1471
      %v2333 = vsel %vm2306, %v2278, %v1473
      %v2334 = vsel %vm2306, %v2279, %v1475
      %v2335 = vsel %vm2306, %v2280, %v1477
      %v2336 = vsel %vm2306, %v2281, %v1479
      %v2337 = vsel %vm2306, %v2282, %v1481
      %v2338 = vsel %vm2306, %v2283, %v1483
      %v2339 = vsel %vm2306, %v2284, %v1485
      %v2340 = vsel %vm2306, %v2285, %v1487
      %v2341 = vsel %vm2306, %v2286, %v1489
      %v2342 = vsel %vm2306, %v2287, %v1491
      %v2343 = vsel %vm2306, %v2288, %v1493
      %v2344 = vsel %vm2306, %v2289, %v1495
      %v2345 = vsel %vm2306, %v2290, %v1497
      %v2346 = vsel %vm2306, %v2291, %v1499
      %v2347 = vsel %vm2306, %v2292, %v1501
      %v2348 = vsel %vm2306, %v2293, %v1503
      %v2349 = vsel %vm2306, %v2294, %v1505
      %v2350 = vsel %vm2306, %v2295, %v1507
      %v2351 = vsel %vm2306, %v2296, %v1509
      %v2352 = vsel %vm2306, %v2297, %v1511
      %v2353 = vsel %vm2306, %v2298, %v1513
      %v2354 = vsel %vm2306, %v2299, %v1515
      %v2355 = vsel %vm2306, %v2300, %v1517
      %v2356 = vsel %vm2306, %v2301, %v1519
      %v2357 = vsel %vm2306, %v2302, %v1521
      %v2358 = vsel %vm2306, %v2303, %v1523
      %v2359 = vsel %vm2306, %v2304, %v1525
      %v2360 = vsel %vm2306, %v2305, %v1527
      %vm2361 = vcmask 97280
      %v2362 = vsel %vm2361, %v2307, %v1586
      %v2363 = vsel %vm2361, %v2308, %v1588
      %v2364 = vsel %vm2361, %v2309, %v1590
      %v2365 = vsel %vm2361, %v2310, %v1592
      %v2366 = vsel %vm2361, %v2311, %v1594
      %v2367 = vsel %vm2361, %v2312, %v1596
      %v2368 = vsel %vm2361, %v2313, %v1598
      %v2369 = vsel %vm2361, %v2314, %v1600
      %v2370 = vsel %vm2361, %v2315, %v1602
      %v2371 = vsel %vm2361, %v2316, %v1604
      %v2372 = vsel %vm2361, %v2317, %v1606
      %v2373 = vsel %vm2361, %v2318, %v1608
      %v2374 = vsel %vm2361, %v2319, %v1610
      %v2375 = vsel %vm2361, %v2320, %v1612
      %v2376 = vsel %vm2361, %v2321, %v1614
      %v2377 = vsel %vm2361, %v2322, %v1616
      %v2378 = vsel %vm2361, %v2323, %v1618
      %v2379 = vsel %vm2361, %v2324, %v1620
      %v2380 = vsel %vm2361, %v2325, %v1622
      %v2381 = vsel %vm2361, %v2326, %v1624
      %v2382 = vsel %vm2361, %v2327, %v1626
      %v2383 = vsel %vm2361, %v2328, %v1628
      %v2384 = vsel %vm2361, %v2329, %v1630
      %v2385 = vsel %vm2361, %v2330, %v1632
      %v2386 = vsel %vm2361, %v2331, %v1634
      %v2387 = vsel %vm2361, %v2332, %v1636
      %v2388 = vsel %vm2361, %v2333, %v1638
      %v2389 = vsel %vm2361, %v2334, %v1640
      %v2390 = vsel %vm2361, %v2335, %v1642
      %v2391 = vsel %vm2361, %v2336, %v1644
      %v2392 = vsel %vm2361, %v2337, %v1646
      %v2393 = vsel %vm2361, %v2338, %v1648
      %v2394 = vsel %vm2361, %v2339, %v1650
      %v2395 = vsel %vm2361, %v2340, %v1652
      %v2396 = vsel %vm2361, %v2341, %v1654
      %v2397 = vsel %vm2361, %v2342, %v1656
      %v2398 = vsel %vm2361, %v2343, %v1658
      %v2399 = vsel %vm2361, %v2344, %v1660
      %v2400 = vsel %vm2361, %v2345, %v1662
      %v2401 = vsel %vm2361, %v2346, %v1664
      %v2402 = vsel %vm2361, %v2347, %v1666
      %v2403 = vsel %vm2361, %v2348, %v1668
      %v2404 = vsel %vm2361, %v2349, %v1670
      %v2405 = vsel %vm2361, %v2350, %v1672
      %v2406 = vsel %vm2361, %v2351, %v1674
      %v2407 = vsel %vm2361, %v2352, %v1676
      %v2408 = vsel %vm2361, %v2353, %v1678
      %v2409 = vsel %vm2361, %v2354, %v1680
      %v2410 = vsel %vm2361, %v2355, %v1682
      %v2411 = vsel %vm2361, %v2356, %v1684
      %v2412 = vsel %vm2361, %v2357, %v1686
      %v2413 = vsel %vm2361, %v2358, %v1688
      %v2414 = vsel %vm2361, %v2359, %v1690
      %v2415 = vsel %vm2361, %v2360, %v1692
      %vm2416 = vcmask 113664
      %v2417 = vsel %vm2416, %v2362, %v1756
      %v2418 = vsel %vm2416, %v2363, %v1758
      %v2419 = vsel %vm2416, %v2364, %v1760
      %v2420 = vsel %vm2416, %v2365, %v1762
      %v2421 = vsel %vm2416, %v2366, %v1764
      %v2422 = vsel %vm2416, %v2367, %v1766
      %v2423 = vsel %vm2416, %v2368, %v1768
      %v2424 = vsel %vm2416, %v2369, %v1770
      %v2425 = vsel %vm2416, %v2370, %v1772
      %v2426 = vsel %vm2416, %v2371, %v1774
      %v2427 = vsel %vm2416, %v2372, %v1776
      %v2428 = vsel %vm2416, %v2373, %v1778
      %v2429 = vsel %vm2416, %v2374, %v1780
      %v2430 = vsel %vm2416, %v2375, %v1782
      %v2431 = vsel %vm2416, %v2376, %v1784
      %v2432 = vsel %vm2416, %v2377, %v1786
      %v2433 = vsel %vm2416, %v2378, %v1788
      %v2434 = vsel %vm2416, %v2379, %v1790
      %v2435 = vsel %vm2416, %v2380, %v1792
      %v2436 = vsel %vm2416, %v2381, %v1794
      %v2437 = vsel %vm2416, %v2382, %v1796
      %v2438 = vsel %vm2416, %v2383, %v1798
      %v2439 = vsel %vm2416, %v2384, %v1800
      %v2440 = vsel %vm2416, %v2385, %v1802
      %v2441 = vsel %vm2416, %v2386, %v1804
      %v2442 = vsel %vm2416, %v2387, %v1806
      %v2443 = vsel %vm2416, %v2388, %v1808
      %v2444 = vsel %vm2416, %v2389, %v1810
      %v2445 = vsel %vm2416, %v2390, %v1812
      %v2446 = vsel %vm2416, %v2391, %v1814
      %v2447 = vsel %vm2416, %v2392, %v1816
      %v2448 = vsel %vm2416, %v2393, %v1818
      %v2449 = vsel %vm2416, %v2394, %v1820
      %v2450 = vsel %vm2416, %v2395, %v1822
      %v2451 = vsel %vm2416, %v2396, %v1824
      %v2452 = vsel %vm2416, %v2397, %v1826
      %v2453 = vsel %vm2416, %v2398, %v1828
      %v2454 = vsel %vm2416, %v2399, %v1830
      %v2455 = vsel %vm2416, %v2400, %v1832
      %v2456 = vsel %vm2416, %v2401, %v1834
      %v2457 = vsel %vm2416, %v2402, %v1836
      %v2458 = vsel %vm2416, %v2403, %v1838
      %v2459 = vsel %vm2416, %v2404, %v1840
      %v2460 = vsel %vm2416, %v2405, %v1842
      %v2461 = vsel %vm2416, %v2406, %v1844
      %v2462 = vsel %vm2416, %v2407, %v1846
      %v2463 = vsel %vm2416, %v2408, %v1848
      %v2464 = vsel %vm2416, %v2409, %v1850
      %v2465 = vsel %vm2416, %v2410, %v1852
      %v2466 = vsel %vm2416, %v2411, %v1854
      %v2467 = vsel %vm2416, %v2412, %v1856
      %v2468 = vsel %vm2416, %v2413, %v1858
      %v2469 = vsel %vm2416, %v2414, %v1860
      %v2470 = vsel %vm2416, %v2415, %v1862
      %vm2471 = vcmask 130048
      %v2472 = vsel %vm2471, %v2417, %v1925
      %v2473 = vsel %vm2471, %v2418, %v1927
      %v2474 = vsel %vm2471, %v2419, %v1929
      %v2475 = vsel %vm2471, %v2420, %v1931
      %v2476 = vsel %vm2471, %v2421, %v1933
      %v2477 = vsel %vm2471, %v2422, %v1935
      %v2478 = vsel %vm2471, %v2423, %v1937
      %v2479 = vsel %vm2471, %v2424, %v1939
      %v2480 = vsel %vm2471, %v2425, %v1941
      %v2481 = vsel %vm2471, %v2426, %v1943
      %v2482 = vsel %vm2471, %v2427, %v1945
      %v2483 = vsel %vm2471, %v2428, %v1947
      %v2484 = vsel %vm2471, %v2429, %v1949
      %v2485 = vsel %vm2471, %v2430, %v1951
      %v2486 = vsel %vm2471, %v2431, %v1953
      %v2487 = vsel %vm2471, %v2432, %v1955
      %v2488 = vsel %vm2471, %v2433, %v1957
      %v2489 = vsel %vm2471, %v2434, %v1959
      %v2490 = vsel %vm2471, %v2435, %v1961
      %v2491 = vsel %vm2471, %v2436, %v1963
      %v2492 = vsel %vm2471, %v2437, %v1965
      %v2493 = vsel %vm2471, %v2438, %v1967
      %v2494 = vsel %vm2471, %v2439, %v1969
      %v2495 = vsel %vm2471, %v2440, %v1971
      %v2496 = vsel %vm2471, %v2441, %v1973
      %v2497 = vsel %vm2471, %v2442, %v1975
      %v2498 = vsel %vm2471, %v2443, %v1977
      %v2499 = vsel %vm2471, %v2444, %v1979
      %v2500 = vsel %vm2471, %v2445, %v1981
      %v2501 = vsel %vm2471, %v2446, %v1983
      %v2502 = vsel %vm2471, %v2447, %v1985
      %v2503 = vsel %vm2471, %v2448, %v1987
      %v2504 = vsel %vm2471, %v2449, %v1989
      %v2505 = vsel %vm2471, %v2450, %v1991
      %v2506 = vsel %vm2471, %v2451, %v1993
      %v2507 = vsel %vm2471, %v2452, %v1995
      %v2508 = vsel %vm2471, %v2453, %v1997
      %v2509 = vsel %vm2471, %v2454, %v1999
      %v2510 = vsel %vm2471, %v2455, %v2001
      %v2511 = vsel %vm2471, %v2456, %v2003
      %v2512 = vsel %vm2471, %v2457, %v2005
      %v2513 = vsel %vm2471, %v2458, %v2007
      %v2514 = vsel %vm2471, %v2459, %v2009
      %v2515 = vsel %vm2471, %v2460, %v2011
      %v2516 = vsel %vm2471, %v2461, %v2013
      %v2517 = vsel %vm2471, %v2462, %v2015
      %v2518 = vsel %vm2471, %v2463, %v2017
      %v2519 = vsel %vm2471, %v2464, %v2019
      %v2520 = vsel %vm2471, %v2465, %v2021
      %v2521 = vsel %vm2471, %v2466, %v2023
      %v2522 = vsel %vm2471, %v2467, %v2025
      %v2523 = vsel %vm2471, %v2468, %v2027
      %v2524 = vsel %vm2471, %v2469, %v2029
      %v2525 = vsel %vm2471, %v2470, %v2031
      %v2526 = vld [vmem:[%s1] sm:$0xff]
      %v2527 = vld [vmem:[%s1 + $0x8] sm:$0xff]
      %v2528 = vld [vmem:[%s1 + $0x10] sm:$0x3]
      %v2529 = vld [vmem:[%s2] sm:$0x1]
      %v2531 = vlaneseq
      %v2532 = vshrl.u32 %v2531, 7
      %v2533 = vsub.s32 0, %v2532
      %v2534 = vrot.slane %v2529, %v2533
      %vm2536 = vcmask 146432
      %v2538 = vsel %vm2536, %v2472, 0
      %v2541 = vsel %vm2536, %v2473, 0
      %v2544 = vsel %vm2536, %v2474, 0
      %v2547 = vsel %vm2536, %v2475, 0
      %v2550 = vsel %vm2536, %v2476, 0
      %v2553 = vsel %vm2536, %v2477, 0
      %v2556 = vsel %vm2536, %v2478, 0
      %v2559 = vsel %vm2536, %v2479, 0
      %v2562 = vsel %vm2536, %v2480, 0
      %v2565 = vsel %vm2536, %v2481, 0
      %v2568 = vsel %vm2536, %v2482, 0
      %v2571 = vsel %vm2536, %v2483, 0
      %v2574 = vsel %vm2536, %v2484, 0
      %v2577 = vsel %vm2536, %v2485, 0
      %v2580 = vsel %vm2536, %v2486, 0
      %v2583 = vsel %vm2536, %v2487, 0
      %v2586 = vsel %vm2536, %v2488, 0
      %v2589 = vsel %vm2536, %v2489, 0
      %v2592 = vsel %vm2536, %v2490, 0
      %v2595 = vsel %vm2536, %v2491, 0
      %v2598 = vsel %vm2536, %v2492, 0
      %v2601 = vsel %vm2536, %v2493, 0
      %v2604 = vsel %vm2536, %v2494, 0
      %v2607 = vsel %vm2536, %v2495, 0
      %v2610 = vsel %vm2536, %v2496, 0
      %v2613 = vsel %vm2536, %v2497, 0
      %v2616 = vsel %vm2536, %v2498, 0
      %v2619 = vsel %vm2536, %v2499, 0
      %v2622 = vsel %vm2536, %v2500, 0
      %v2625 = vsel %vm2536, %v2501, 0
      %v2628 = vsel %vm2536, %v2502, 0
      %v2631 = vsel %vm2536, %v2503, 0
      %v2634 = vsel %vm2536, %v2504, 0
      %v2637 = vsel %vm2536, %v2505, 0
      %v2640 = vsel %vm2536, %v2506, 0
      %v2643 = vsel %vm2536, %v2507, 0
      %v2646 = vsel %vm2536, %v2508, 0
      %v2649 = vsel %vm2536, %v2509, 0
      %v2652 = vsel %vm2536, %v2510, 0
      %v2655 = vsel %vm2536, %v2511, 0
      %v2658 = vsel %vm2536, %v2512, 0
      %v2661 = vsel %vm2536, %v2513, 0
      %v2664 = vsel %vm2536, %v2514, 0
      %v2667 = vsel %vm2536, %v2515, 0
      %v2670 = vsel %vm2536, %v2516, 0
      %v2673 = vsel %vm2536, %v2517, 0
      %v2676 = vsel %vm2536, %v2518, 0
      %v2679 = vsel %vm2536, %v2519, 0
      %v2682 = vsel %vm2536, %v2520, 0
      %v2685 = vsel %vm2536, %v2521, 0
      %v2688 = vsel %vm2536, %v2522, 0
      %v2691 = vsel %vm2536, %v2523, 0
      %v2694 = vsel %vm2536, %v2524, 0
      %v2697 = vsel %vm2536, %v2525, 0
      %vm2699 = vcmask 1041408
      %v2701 = vsel %vm2699, %v2528, 0
      %2703 = vmatprep.subr.mxu0 0.0
      %2704 = vmatpush1.msra.mxu0 %v2526
      %2705 = vmatprep.subr.mxu0 0.0
      %2706 = vmatpush1.msra.mxu0 %v2527
      %2707 = vmatprep.subr.mxu0 0.0
      %2708 = vmatpush1.msra.mxu0 %v2701
      %2709 = vmatprep.subr.mxu0 0.0
      %2710 = vmatpush1.msra.mxu0 0.0
      %2711 = vmatprep.subr.mxu0 0.0
      %2712 = vmatpush1.msra.mxu0 0.0
      %2713 = vmatprep.subr.mxu0 0.0
      %2714 = vmatpush1.msra.mxu0 0.0
      %2715 = vmatprep.subr.mxu0 0.0
      %2716 = vmatpush1.msra.mxu0 0.0
      %2717 = vmatprep.subr.mxu0 0.0
      %2718 = vmatpush1.msra.mxu0 0.0
      %2719 = vmatprep.subr.mxu0 0.0
      %2720 = vmatpush1.msra.mxu0 0.0
      %2721 = vmatprep.subr.mxu0 0.0
      %2722 = vmatpush1.msra.mxu0 0.0
      %2723 = vmatprep.subr.mxu0 0.0
      %2724 = vmatpush1.msra.mxu0 0.0
      %2725 = vmatprep.subr.mxu0 0.0
      %2726 = vmatpush1.msra.mxu0 0.0
      %2727 = vmatprep.subr.mxu0 0.0
      %2728 = vmatpush1.msra.mxu0 0.0
      %2729 = vmatprep.subr.mxu0 0.0
      %2730 = vmatpush1.msra.mxu0 0.0
      %2731 = vmatprep.subr.mxu0 0.0
      %2732 = vmatpush1.msra.mxu0 0.0
      %2733 = vmatprep.subr.mxu0 0.0
      %2734 = vmatpush1.msra.mxu0 0.0
      %2735 = vmatprep.subr.mxu0 0.0
      %2736 = vmatpush1.msra.mxu0 0.0
      %2737 = vmatprep.subr.mxu0 0.0
      %2738 = vmatpush1.msra.mxu0 0.0
      %2739 = vmatprep.subr.mxu0 0.0
      %2740 = vmatpush1.msra.mxu0 0.0
      %2741 = vmatprep.subr.mxu0 0.0
      %2742 = vmatpush1.msra.mxu0 0.0
      %2743 = vmatprep.subr.mxu0 0.0
      %2744 = vmatpush1.msra.mxu0 0.0
      %2745 = vmatprep.subr.mxu0 0.0
      %2746 = vmatpush1.msra.mxu0 0.0
      %2747 = vmatprep.subr.mxu0 0.0
      %2748 = vmatpush1.msra.mxu0 0.0
      %2749 = vmatprep.subr.mxu0 0.0
      %2750 = vmatpush1.msra.mxu0 0.0
      %2751 = vmatprep.subr.mxu0 0.0
      %2752 = vmatpush1.msra.mxu0 0.0
      %2753 = vmatprep.subr.mxu0 0.0
      %2754 = vmatpush1.msra.mxu0 0.0
      %2755 = vmatprep.subr.mxu0 0.0
      %2756 = vmatpush1.msra.mxu0 0.0
      %2757 = vmatprep.subr.mxu0 0.0
      %2758 = vmatpush1.msra.mxu0 0.0
      %2759 = vmatprep.subr.mxu0 0.0
      %2760 = vmatpush1.msra.mxu0 0.0
      %2761 = vmatprep.subr.mxu0 0.0
      %2762 = vmatpush1.msra.mxu0 0.0
      %2763 = vmatprep.subr.mxu0 0.0
      %2764 = vmatpush1.msra.mxu0 0.0
      %2765 = vmatprep.subr.mxu0 0.0
      %2766 = vmatpush1.msra.mxu0 0.0
      %2767 = vmatprep.mubr.f32.mxu0 0.0
      %2768 = vmatmul.mubr.f32.gmra.mrb[0].mxu0 %v2538
      %v2769 = vpop.f32.mrb[0].mxu0
      %v2770 = vadd.f32 %v2534, %v2769
      %v2771 = vpop.f32.mrb[0].mxu0
      %2772 = vmatprep.mubr.f32.mxu0 0.0
      %2773 = vmatmul.mubr.f32.gmra.mrb[0].mxu0 %v2541
      %v2774 = vpop.f32.mrb[0].mxu0
      %v2775 = vadd.f32 %v2534, %v2774
      %v2776 = vpop.f32.mrb[0].mxu0
      %2777 = vmatprep.mubr.f32.mxu0 0.0
      %2778 = vmatmul.mubr.f32.gmra.mrb[0].mxu0 %v2544
      %v2779 = vpop.f32.mrb[0].mxu0
      %v2780 = vadd.f32 %v2534, %v2779
      %v2781 = vpop.f32.mrb[0].mxu0
      %2782 = vmatprep.mubr.f32.mxu0 0.0
      %2783 = vmatmul.mubr.f32.gmra.mrb[0].mxu0 %v2547
      %v2784 = vpop.f32.mrb[0].mxu0
      %v2785 = vadd.f32 %v2534, %v2784
      %v2786 = vpop.f32.mrb[0].mxu0
      %2787 = vmatprep.mubr.f32.mxu0 0.0
      %2788 = vmatmul.mubr.f32.gmra.mrb[0].mxu0 %v2550
      %v2789 = vpop.f32.mrb[0].mxu0
      %v2790 = vadd.f32 %v2534, %v2789
      %v2791 = vpop.f32.mrb[0].mxu0
      %2792 = vmatprep.mubr.f32.mxu0 0.0
      %2793 = vmatmul.mubr.f32.gmra.mrb[0].mxu0 %v2553
      %v2794 = vpop.f32.mrb[0].mxu0
      %v2795 = vadd.f32 %v2534, %v2794
      %v2796 = vpop.f32.mrb[0].mxu0
      %2797 = vmatprep.mubr.f32.mxu0 0.0
      %2798 = vmatmul.mubr.f32.gmra.mrb[0].mxu0 %v2556
      %v2799 = vpop.f32.mrb[0].mxu0
      %v2800 = vadd.f32 %v2534, %v2799
      %v2801 = vpop.f32.mrb[0].mxu0
      %2802 = vmatprep.mubr.f32.mxu0 0.0
      %2803 = vmatmul.mubr.f32.gmra.mrb[0].mxu0 %v2559
      %v2804 = vpop.f32.mrb[0].mxu0
      %v2805 = vadd.f32 %v2534, %v2804
      %v2806 = vpop.f32.mrb[0].mxu0
      %2807 = vmatprep.mubr.f32.mxu0 0.0
      %2808 = vmatmul.mubr.f32.gmra.mrb[0].mxu0 %v2562
      %v2809 = vpop.f32.mrb[0].mxu0
      %v2810 = vadd.f32 %v2534, %v2809
      %v2811 = vpop.f32.mrb[0].mxu0
      %2812 = vmatprep.mubr.f32.mxu0 0.0
      %2813 = vmatmul.mubr.f32.gmra.mrb[0].mxu0 %v2565
      %v2814 = vpop.f32.mrb[0].mxu0
      %v2815 = vadd.f32 %v2534, %v2814
      %v2816 = vpop.f32.mrb[0].mxu0
      %2817 = vmatprep.mubr.f32.mxu0 0.0
      %2818 = vmatmul.mubr.f32.gmra.mrb[0].mxu0 %v2568
      %v2819 = vpop.f32.mrb[0].mxu0
      %v2820 = vadd.f32 %v2534, %v2819
      %v2821 = vpop.f32.mrb[0].mxu0
      %2822 = vmatprep.mubr.f32.mxu0 0.0
      %2823 = vmatmul.mubr.f32.gmra.mrb[0].mxu0 %v2571
      %v2824 = vpop.f32.mrb[0].mxu0
      %v2825 = vadd.f32 %v2534, %v2824
      %v2826 = vpop.f32.mrb[0].mxu0
      %2827 = vmatprep.mubr.f32.mxu0 0.0
      %2828 = vmatmul.mubr.f32.gmra.mrb[0].mxu0 %v2574
      %v2829 = vpop.f32.mrb[0].mxu0
      %v2830 = vadd.f32 %v2534, %v2829
      %v2831 = vpop.f32.mrb[0].mxu0
      %2832 = vmatprep.mubr.f32.mxu0 0.0
      %2833 = vmatmul.mubr.f32.gmra.mrb[0].mxu0 %v2577
      %v2834 = vpop.f32.mrb[0].mxu0
      %v2835 = vadd.f32 %v2534, %v2834
      %v2836 = vpop.f32.mrb[0].mxu0
      %2837 = vmatprep.mubr.f32.mxu0 0.0
      %2838 = vmatmul.mubr.f32.gmra.mrb[0].mxu0 %v2580
      %v2839 = vpop.f32.mrb[0].mxu0
      %v2840 = vadd.f32 %v2534, %v2839
      %v2841 = vpop.f32.mrb[0].mxu0
      %2842 = vmatprep.mubr.f32.mxu0 0.0
      %2843 = vmatmul.mubr.f32.gmra.mrb[0].mxu0 %v2583
      %v2844 = vpop.f32.mrb[0].mxu0
      %v2845 = vadd.f32 %v2534, %v2844
      %v2846 = vpop.f32.mrb[0].mxu0
      %2847 = vmatprep.mubr.f32.mxu0 0.0
      %2848 = vmatmul.mubr.f32.gmra.mrb[0].mxu0 %v2586
      %v2849 = vpop.f32.mrb[0].mxu0
      %v2850 = vadd.f32 %v2534, %v2849
      %v2851 = vpop.f32.mrb[0].mxu0
      %2852 = vmatprep.mubr.f32.mxu0 0.0
      %2853 = vmatmul.mubr.f32.gmra.mrb[0].mxu0 %v2589
      %v2854 = vpop.f32.mrb[0].mxu0
      %v2855 = vadd.f32 %v2534, %v2854
      %v2856 = vpop.f32.mrb[0].mxu0
      %2857 = vmatprep.mubr.f32.mxu0 0.0
      %2858 = vmatmul.mubr.f32.gmra.mrb[0].mxu0 %v2592
      %v2859 = vpop.f32.mrb[0].mxu0
      %v2860 = vadd.f32 %v2534, %v2859
      %v2861 = vpop.f32.mrb[0].mxu0
      %2862 = vmatprep.mubr.f32.mxu0 0.0
      %2863 = vmatmul.mubr.f32.gmra.mrb[0].mxu0 %v2595
      %v2864 = vpop.f32.mrb[0].mxu0
      %v2865 = vadd.f32 %v2534, %v2864
      %v2866 = vpop.f32.mrb[0].mxu0
      %2867 = vmatprep.mubr.f32.mxu0 0.0
      %2868 = vmatmul.mubr.f32.gmra.mrb[0].mxu0 %v2598
      %v2869 = vpop.f32.mrb[0].mxu0
      %v2870 = vadd.f32 %v2534, %v2869
      %v2871 = vpop.f32.mrb[0].mxu0
      %2872 = vmatprep.mubr.f32.mxu0 0.0
      %2873 = vmatmul.mubr.f32.gmra.mrb[0].mxu0 %v2601
      %v2874 = vpop.f32.mrb[0].mxu0
      %v2875 = vadd.f32 %v2534, %v2874
      %v2876 = vpop.f32.mrb[0].mxu0
      %2877 = vmatprep.mubr.f32.mxu0 0.0
      %2878 = vmatmul.mubr.f32.gmra.mrb[0].mxu0 %v2604
      %v2879 = vpop.f32.mrb[0].mxu0
      %v2880 = vadd.f32 %v2534, %v2879
      %v2881 = vpop.f32.mrb[0].mxu0
      %2882 = vmatprep.mubr.f32.mxu0 0.0
      %2883 = vmatmul.mubr.f32.gmra.mrb[0].mxu0 %v2607
      %v2884 = vpop.f32.mrb[0].mxu0
      %v2885 = vadd.f32 %v2534, %v2884
      %v2886 = vpop.f32.mrb[0].mxu0
      %2887 = vmatprep.mubr.f32.mxu0 0.0
      %2888 = vmatmul.mubr.f32.gmra.mrb[0].mxu0 %v2610
      %v2889 = vpop.f32.mrb[0].mxu0
      %v2890 = vadd.f32 %v2534, %v2889
      %v2891 = vpop.f32.mrb[0].mxu0
      %2892 = vmatprep.mubr.f32.mxu0 0.0
      %2893 = vmatmul.mubr.f32.gmra.mrb[0].mxu0 %v2613
      %v2894 = vpop.f32.mrb[0].mxu0
      %v2895 = vadd.f32 %v2534, %v2894
      %v2896 = vpop.f32.mrb[0].mxu0
      %2897 = vmatprep.mubr.f32.mxu0 0.0
      %2898 = vmatmul.mubr.f32.gmra.mrb[0].mxu0 %v2616
      %v2899 = vpop.f32.mrb[0].mxu0
      %v2900 = vadd.f32 %v2534, %v2899
      %v2901 = vpop.f32.mrb[0].mxu0
      %2902 = vmatprep.mubr.f32.mxu0 0.0
      %2903 = vmatmul.mubr.f32.gmra.mrb[0].mxu0 %v2619
      %v2904 = vpop.f32.mrb[0].mxu0
      %v2905 = vadd.f32 %v2534, %v2904
      %v2906 = vpop.f32.mrb[0].mxu0
      %2907 = vmatprep.mubr.f32.mxu0 0.0
      %2908 = vmatmul.mubr.f32.gmra.mrb[0].mxu0 %v2622
      %v2909 = vpop.f32.mrb[0].mxu0
      %v2910 = vadd.f32 %v2534, %v2909
      %v2911 = vpop.f32.mrb[0].mxu0
      %2912 = vmatprep.mubr.f32.mxu0 0.0
      %2913 = vmatmul.mubr.f32.gmra.mrb[0].mxu0 %v2625
      %v2914 = vpop.f32.mrb[0].mxu0
      %v2915 = vadd.f32 %v2534, %v2914
      %v2916 = vpop.f32.mrb[0].mxu0
      %2917 = vmatprep.mubr.f32.mxu0 0.0
      %2918 = vmatmul.mubr.f32.gmra.mrb[0].mxu0 %v2628
      %v2919 = vpop.f32.mrb[0].mxu0
      %v2920 = vadd.f32 %v2534, %v2919
      %v2921 = vpop.f32.mrb[0].mxu0
      %2922 = vmatprep.mubr.f32.mxu0 0.0
      %2923 = vmatmul.mubr.f32.gmra.mrb[0].mxu0 %v2631
      %v2924 = vpop.f32.mrb[0].mxu0
      %v2925 = vadd.f32 %v2534, %v2924
      %v2926 = vpop.f32.mrb[0].mxu0
      %2927 = vmatprep.mubr.f32.mxu0 0.0
      %2928 = vmatmul.mubr.f32.gmra.mrb[0].mxu0 %v2634
      %v2929 = vpop.f32.mrb[0].mxu0
      %v2930 = vadd.f32 %v2534, %v2929
      %v2931 = vpop.f32.mrb[0].mxu0
      %2932 = vmatprep.mubr.f32.mxu0 0.0
      %2933 = vmatmul.mubr.f32.gmra.mrb[0].mxu0 %v2637
      %v2934 = vpop.f32.mrb[0].mxu0
      %v2935 = vadd.f32 %v2534, %v2934
      %v2936 = vpop.f32.mrb[0].mxu0
      %2937 = vmatprep.mubr.f32.mxu0 0.0
      %2938 = vmatmul.mubr.f32.gmra.mrb[0].mxu0 %v2640
      %v2939 = vpop.f32.mrb[0].mxu0
      %v2940 = vadd.f32 %v2534, %v2939
      %v2941 = vpop.f32.mrb[0].mxu0
      %2942 = vmatprep.mubr.f32.mxu0 0.0
      %2943 = vmatmul.mubr.f32.gmra.mrb[0].mxu0 %v2643
      %v2944 = vpop.f32.mrb[0].mxu0
      %v2945 = vadd.f32 %v2534, %v2944
      %v2946 = vpop.f32.mrb[0].mxu0
      %2947 = vmatprep.mubr.f32.mxu0 0.0
      %2948 = vmatmul.mubr.f32.gmra.mrb[0].mxu0 %v2646
      %v2949 = vpop.f32.mrb[0].mxu0
      %v2950 = vadd.f32 %v2534, %v2949
      %v2951 = vpop.f32.mrb[0].mxu0
      %2952 = vmatprep.mubr.f32.mxu0 0.0
      %2953 = vmatmul.mubr.f32.gmra.mrb[0].mxu0 %v2649
      %v2954 = vpop.f32.mrb[0].mxu0
      %v2955 = vadd.f32 %v2534, %v2954
      %v2956 = vpop.f32.mrb[0].mxu0
      %2957 = vmatprep.mubr.f32.mxu0 0.0
      %2958 = vmatmul.mubr.f32.gmra.mrb[0].mxu0 %v2652
      %v2959 = vpop.f32.mrb[0].mxu0
      %v2960 = vadd.f32 %v2534, %v2959
      %v2961 = vpop.f32.mrb[0].mxu0
      %2962 = vmatprep.mubr.f32.mxu0 0.0
      %2963 = vmatmul.mubr.f32.gmra.mrb[0].mxu0 %v2655
      %v2964 = vpop.f32.mrb[0].mxu0
      %v2965 = vadd.f32 %v2534, %v2964
      %v2966 = vpop.f32.mrb[0].mxu0
      %2967 = vmatprep.mubr.f32.mxu0 0.0
      %2968 = vmatmul.mubr.f32.gmra.mrb[0].mxu0 %v2658
      %v2969 = vpop.f32.mrb[0].mxu0
      %v2970 = vadd.f32 %v2534, %v2969
      %v2971 = vpop.f32.mrb[0].mxu0
      %2972 = vmatprep.mubr.f32.mxu0 0.0
      %2973 = vmatmul.mubr.f32.gmra.mrb[0].mxu0 %v2661
      %v2974 = vpop.f32.mrb[0].mxu0
      %v2975 = vadd.f32 %v2534, %v2974
      %v2976 = vpop.f32.mrb[0].mxu0
      %2977 = vmatprep.mubr.f32.mxu0 0.0
      %2978 = vmatmul.mubr.f32.gmra.mrb[0].mxu0 %v2664
      %v2979 = vpop.f32.mrb[0].mxu0
      %v2980 = vadd.f32 %v2534, %v2979
      %v2981 = vpop.f32.mrb[0].mxu0
      %2982 = vmatprep.mubr.f32.mxu0 0.0
      %2983 = vmatmul.mubr.f32.gmra.mrb[0].mxu0 %v2667
      %v2984 = vpop.f32.mrb[0].mxu0
      %v2985 = vadd.f32 %v2534, %v2984
      %v2986 = vpop.f32.mrb[0].mxu0
      %2987 = vmatprep.mubr.f32.mxu0 0.0
      %2988 = vmatmul.mubr.f32.gmra.mrb[0].mxu0 %v2670
      %v2989 = vpop.f32.mrb[0].mxu0
      %v2990 = vadd.f32 %v2534, %v2989
      %v2991 = vpop.f32.mrb[0].mxu0
      %2992 = vmatprep.mubr.f32.mxu0 0.0
      %2993 = vmatmul.mubr.f32.gmra.mrb[0].mxu0 %v2673
      %v2994 = vpop.f32.mrb[0].mxu0
      %v2995 = vadd.f32 %v2534, %v2994
      %v2996 = vpop.f32.mrb[0].mxu0
      %2997 = vmatprep.mubr.f32.mxu0 0.0
      %2998 = vmatmul.mubr.f32.gmra.mrb[0].mxu0 %v2676
      %v2999 = vpop.f32.mrb[0].mxu0
      %v3000 = vadd.f32 %v2534, %v2999
      %v3001 = vpop.f32.mrb[0].mxu0
      %3002 = vmatprep.mubr.f32.mxu0 0.0
      %3003 = vmatmul.mubr.f32.gmra.mrb[0].mxu0 %v2679
      %v3004 = vpop.f32.mrb[0].mxu0
      %v3005 = vadd.f32 %v2534, %v3004
      %v3006 = vpop.f32.mrb[0].mxu0
      %3007 = vmatprep.mubr.f32.mxu0 0.0
      %3008 = vmatmul.mubr.f32.gmra.mrb[0].mxu0 %v2682
      %v3009 = vpop.f32.mrb[0].mxu0
      %v3010 = vadd.f32 %v2534, %v3009
      %v3011 = vpop.f32.mrb[0].mxu0
      %3012 = vmatprep.mubr.f32.mxu0 0.0
      %3013 = vmatmul.mubr.f32.gmra.mrb[0].mxu0 %v2685
      %v3014 = vpop.f32.mrb[0].mxu0
      %v3015 = vadd.f32 %v2534, %v3014
      %v3016 = vpop.f32.mrb[0].mxu0
      %3017 = vmatprep.mubr.f32.mxu0 0.0
      %3018 = vmatmul.mubr.f32.gmra.mrb[0].mxu0 %v2688
      %v3019 = vpop.f32.mrb[0].mxu0
      %v3020 = vadd.f32 %v2534, %v3019
      %v3021 = vpop.f32.mrb[0].mxu0
      %3022 = vmatprep.mubr.f32.mxu0 0.0
      %3023 = vmatmul.mubr.f32.gmra.mrb[0].mxu0 %v2691
      %v3024 = vpop.f32.mrb[0].mxu0
      %v3025 = vadd.f32 %v2534, %v3024
      %v3026 = vpop.f32.mrb[0].mxu0
      %3027 = vmatprep.mubr.f32.mxu0 0.0
      %3028 = vmatmul.mubr.f32.gmra.mrb[0].mxu0 %v2694
      %v3029 = vpop.f32.mrb[0].mxu0
      %v3030 = vadd.f32 %v2534, %v3029
      %v3031 = vpop.f32.mrb[0].mxu0
      %3032 = vmatprep.mubr.f32.mxu0 0.0
      %3033 = vmatmul.mubr.f32.gmra.mrb[0].mxu0 %v2697
      %v3034 = vpop.f32.mrb[0].mxu0
      %v3035 = vadd.f32 %v2534, %v3034
      %v3036 = vpop.f32.mrb[0].mxu0
      %3037 = vdwg.mxu0
      %v3041 = vadd.f32 %v618, %v2770
      %v3042 = vadd.f32 %v620, %v2775
      %v3043 = vadd.f32 %v622, %v2780
      %v3044 = vadd.f32 %v625, %v2785
      %v3045 = vadd.f32 %v627, %v2790
      %v3046 = vadd.f32 %v629, %v2795
      %v3047 = vadd.f32 %v632, %v2800
      %v3048 = vadd.f32 %v634, %v2805
      %v3049 = vadd.f32 %v636, %v2810
      %v3050 = vadd.f32 %v639, %v2815
      %v3051 = vadd.f32 %v641, %v2820
      %v3052 = vadd.f32 %v643, %v2825
      %v3053 = vadd.f32 %v646, %v2830
      %v3054 = vadd.f32 %v648, %v2835
      %v3055 = vadd.f32 %v650, %v2840
      %v3056 = vadd.f32 %v653, %v2845
      %v3057 = vadd.f32 %v655, %v2850
      %v3058 = vadd.f32 %v657, %v2855
      %v3059 = vadd.f32 %v660, %v2860
      %v3060 = vadd.f32 %v662, %v2865
      %v3061 = vadd.f32 %v664, %v2870
      %v3062 = vadd.f32 %v667, %v2875
      %v3063 = vadd.f32 %v669, %v2880
      %v3064 = vadd.f32 %v671, %v2885
      %v3065 = vadd.f32 %v674, %v2890
      %v3066 = vadd.f32 %v676, %v2895
      %v3067 = vadd.f32 %v678, %v2900
      %v3068 = vadd.f32 %v681, %v2905
      %v3069 = vadd.f32 %v683, %v2910
      %v3070 = vadd.f32 %v685, %v2915
      %v3071 = vadd.f32 %v688, %v2920
      %v3072 = vadd.f32 %v690, %v2925
      %v3073 = vadd.f32 %v692, %v2930
      %v3074 = vadd.f32 %v695, %v2935
      %v3075 = vadd.f32 %v697, %v2940
      %v3076 = vadd.f32 %v699, %v2945
      %v3077 = vadd.f32 %v702, %v2950
      %v3078 = vadd.f32 %v704, %v2955
      %v3079 = vadd.f32 %v706, %v2960
      %v3080 = vadd.f32 %v709, %v2965
      %v3081 = vadd.f32 %v711, %v2970
      %v3082 = vadd.f32 %v713, %v2975
      %v3083 = vadd.f32 %v716, %v2980
      %v3084 = vadd.f32 %v718, %v2985
      %v3085 = vadd.f32 %v720, %v2990
      %v3086 = vadd.f32 %v723, %v2995
      %v3087 = vadd.f32 %v725, %v3000
      %v3088 = vadd.f32 %v727, %v3005
      %v3089 = vadd.f32 %v730, %v3010
      %v3090 = vadd.f32 %v732, %v3015
      %v3091 = vadd.f32 %v734, %v3020
      %v3092 = vadd.f32 %v1246, %v3025
      %v3093 = vadd.f32 %v1248, %v3030
      %v3094 = vadd.f32 %v1250, %v3035
      %3149 = vrot.lane.b32.xlu0 %v2770, 126
      %v3150 = vpop.permute.xlu0 %3149
      %3151 = vrot.lane.b32.xlu0 %v2775, 126
      %v3152 = vpop.permute.xlu0 %3151
      %3153 = vrot.lane.b32.xlu0 %v2780, 126
      %v3154 = vpop.permute.xlu0 %3153
      %3155 = vrot.lane.b32.xlu0 %v2785, 126
      %v3156 = vpop.permute.xlu0 %3155
      %3157 = vrot.lane.b32.xlu0 %v2790, 126
      %v3158 = vpop.permute.xlu0 %3157
      %3159 = vrot.lane.b32.xlu0 %v2795, 126
      %v3160 = vpop.permute.xlu0 %3159
      %3161 = vrot.lane.b32.xlu0 %v2800, 126
      %v3162 = vpop.permute.xlu0 %3161
      %3163 = vrot.lane.b32.xlu0 %v2805, 126
      %v3164 = vpop.permute.xlu0 %3163
      %3165 = vrot.lane.b32.xlu0 %v2810, 126
      %v3166 = vpop.permute.xlu0 %3165
      %3167 = vrot.lane.b32.xlu0 %v2815, 126
      %v3168 = vpop.permute.xlu0 %3167
      %3169 = vrot.lane.b32.xlu0 %v2820, 126
      %v3170 = vpop.permute.xlu0 %3169
      %3171 = vrot.lane.b32.xlu0 %v2825, 126
      %v3172 = vpop.permute.xlu0 %3171
      %3173 = vrot.lane.b32.xlu0 %v2830, 126
      %v3174 = vpop.permute.xlu0 %3173
      %3175 = vrot.lane.b32.xlu0 %v2835, 126
      %v3176 = vpop.permute.xlu0 %3175
      %3177 = vrot.lane.b32.xlu0 %v2840, 126
      %v3178 = vpop.permute.xlu0 %3177
      %3179 = vrot.lane.b32.xlu0 %v2845, 126
      %v3180 = vpop.permute.xlu0 %3179
      %3181 = vrot.lane.b32.xlu0 %v2850, 126
      %v3182 = vpop.permute.xlu0 %3181
      %3183 = vrot.lane.b32.xlu0 %v2855, 126
      %v3184 = vpop.permute.xlu0 %3183
      %3185 = vrot.lane.b32.xlu0 %v2860, 126
      %v3186 = vpop.permute.xlu0 %3185
      %3187 = vrot.lane.b32.xlu0 %v2865, 126
      %v3188 = vpop.permute.xlu0 %3187
      %3189 = vrot.lane.b32.xlu0 %v2870, 126
      %v3190 = vpop.permute.xlu0 %3189
      %3191 = vrot.lane.b32.xlu0 %v2875, 126
      %v3192 = vpop.permute.xlu0 %3191
      %3193 = vrot.lane.b32.xlu0 %v2880, 126
      %v3194 = vpop.permute.xlu0 %3193
      %3195 = vrot.lane.b32.xlu0 %v2885, 126
      %v3196 = vpop.permute.xlu0 %3195
      %3197 = vrot.lane.b32.xlu0 %v2890, 126
      %v3198 = vpop.permute.xlu0 %3197
      %3199 = vrot.lane.b32.xlu0 %v2895, 126
      %v3200 = vpop.permute.xlu0 %3199
      %3201 = vrot.lane.b32.xlu0 %v2900, 126
      %v3202 = vpop.permute.xlu0 %3201
      %3203 = vrot.lane.b32.xlu0 %v2905, 126
      %v3204 = vpop.permute.xlu0 %3203
      %3205 = vrot.lane.b32.xlu0 %v2910, 126
      %v3206 = vpop.permute.xlu0 %3205
      %3207 = vrot.lane.b32.xlu0 %v2915, 126
      %v3208 = vpop.permute.xlu0 %3207
      %3209 = vrot.lane.b32.xlu0 %v2920, 126
      %v3210 = vpop.permute.xlu0 %3209
      %3211 = vrot.lane.b32.xlu0 %v2925, 126
      %v3212 = vpop.permute.xlu0 %3211
      %3213 = vrot.lane.b32.xlu0 %v2930, 126
      %v3214 = vpop.permute.xlu0 %3213
      %3215 = vrot.lane.b32.xlu0 %v2935, 126
      %v3216 = vpop.permute.xlu0 %3215
      %3217 = vrot.lane.b32.xlu0 %v2940, 126
      %v3218 = vpop.permute.xlu0 %3217
      %3219 = vrot.lane.b32.xlu0 %v2945, 126
      %v3220 = vpop.permute.xlu0 %3219
      %3221 = vrot.lane.b32.xlu0 %v2950, 126
      %v3222 = vpop.permute.xlu0 %3221
      %3223 = vrot.lane.b32.xlu0 %v2955, 126
      %v3224 = vpop.permute.xlu0 %3223
      %3225 = vrot.lane.b32.xlu0 %v2960, 126
      %v3226 = vpop.permute.xlu0 %3225
      %3227 = vrot.lane.b32.xlu0 %v2965, 126
      %v3228 = vpop.permute.xlu0 %3227
      %3229 = vrot.lane.b32.xlu0 %v2970, 126
      %v3230 = vpop.permute.xlu0 %3229
      %3231 = vrot.lane.b32.xlu0 %v2975, 126
      %v3232 = vpop.permute.xlu0 %3231
      %3233 = vrot.lane.b32.xlu0 %v2980, 126
      %v3234 = vpop.permute.xlu0 %3233
      %3235 = vrot.lane.b32.xlu0 %v2985, 126
      %v3236 = vpop.permute.xlu0 %3235
      %3237 = vrot.lane.b32.xlu0 %v2990, 126
      %v3238 = vpop.permute.xlu0 %3237
      %3239 = vrot.lane.b32.xlu0 %v2995, 126
      %v3240 = vpop.permute.xlu0 %3239
      %3241 = vrot.lane.b32.xlu0 %v3000, 126
      %v3242 = vpop.permute.xlu0 %3241
      %3243 = vrot.lane.b32.xlu0 %v3005, 126
      %v3244 = vpop.permute.xlu0 %3243
      %3245 = vrot.lane.b32.xlu0 %v3010, 126
      %v3246 = vpop.permute.xlu0 %3245
      %3247 = vrot.lane.b32.xlu0 %v3015, 126
      %v3248 = vpop.permute.xlu0 %3247
      %3249 = vrot.lane.b32.xlu0 %v3020, 126
      %v3250 = vpop.permute.xlu0 %3249
      %3251 = vrot.lane.b32.xlu0 %v3025, 126
      %v3252 = vpop.permute.xlu0 %3251
      %3253 = vrot.lane.b32.xlu0 %v3030, 126
      %v3254 = vpop.permute.xlu0 %3253
      %3255 = vrot.lane.b32.xlu0 %v3035, 126
      %v3256 = vpop.permute.xlu0 %3255
      %v3311 = vsub.f32 %v3041, %v3150
      %v3312 = vsub.f32 %v3042, %v3152
      %v3313 = vsub.f32 %v3043, %v3154
      %v3314 = vsub.f32 %v3044, %v3156
      %v3315 = vsub.f32 %v3045, %v3158
      %v3316 = vsub.f32 %v3046, %v3160
      %v3317 = vsub.f32 %v3047, %v3162
      %v3318 = vsub.f32 %v3048, %v3164
      %v3319 = vsub.f32 %v3049, %v3166
      %v3320 = vsub.f32 %v3050, %v3168
      %v3321 = vsub.f32 %v3051, %v3170
      %v3322 = vsub.f32 %v3052, %v3172
      %v3323 = vsub.f32 %v3053, %v3174
      %v3324 = vsub.f32 %v3054, %v3176
      %v3325 = vsub.f32 %v3055, %v3178
      %v3326 = vsub.f32 %v3056, %v3180
      %v3327 = vsub.f32 %v3057, %v3182
      %v3328 = vsub.f32 %v3058, %v3184
      %v3329 = vsub.f32 %v3059, %v3186
      %v3330 = vsub.f32 %v3060, %v3188
      %v3331 = vsub.f32 %v3061, %v3190
      %v3332 = vsub.f32 %v3062, %v3192
      %v3333 = vsub.f32 %v3063, %v3194
      %v3334 = vsub.f32 %v3064, %v3196
      %v3335 = vsub.f32 %v3065, %v3198
      %v3336 = vsub.f32 %v3066, %v3200
      %v3337 = vsub.f32 %v3067, %v3202
      %v3338 = vsub.f32 %v3068, %v3204
      %v3339 = vsub.f32 %v3069, %v3206
      %v3340 = vsub.f32 %v3070, %v3208
      %v3341 = vsub.f32 %v3071, %v3210
      %v3342 = vsub.f32 %v3072, %v3212
      %v3343 = vsub.f32 %v3073, %v3214
      %v3344 = vsub.f32 %v3074, %v3216
      %v3345 = vsub.f32 %v3075, %v3218
      %v3346 = vsub.f32 %v3076, %v3220
      %v3347 = vsub.f32 %v3077, %v3222
      %v3348 = vsub.f32 %v3078, %v3224
      %v3349 = vsub.f32 %v3079, %v3226
      %v3350 = vsub.f32 %v3080, %v3228
      %v3351 = vsub.f32 %v3081, %v3230
      %v3352 = vsub.f32 %v3082, %v3232
      %v3353 = vsub.f32 %v3083, %v3234
      %v3354 = vsub.f32 %v3084, %v3236
      %v3355 = vsub.f32 %v3085, %v3238
      %v3356 = vsub.f32 %v3086, %v3240
      %v3357 = vsub.f32 %v3087, %v3242
      %v3358 = vsub.f32 %v3088, %v3244
      %v3359 = vsub.f32 %v3089, %v3246
      %v3360 = vsub.f32 %v3090, %v3248
      %v3361 = vsub.f32 %v3091, %v3250
      %v3362 = vsub.f32 %v3092, %v3252
      %v3363 = vsub.f32 %v3093, %v3254
      %v3364 = vsub.f32 %v3094, %v3256
      %s3365 = smul.u32 %s23, 16
      %s3366 = ssub.s32 %s3365, 1
      %v3367 = vstv %s3366
      %v3368 = vadd.s32 %v3367, 1
      %v3369 = vadd.s32 %v3367, 2
      %v3370 = vadd.s32 %v3367, 3
      %v3371 = vadd.s32 %v3367, 4
      %v3372 = vadd.s32 %v3367, 5
      %v3373 = vadd.s32 %v3367, 6
      %v3374 = vadd.s32 %v3367, 7
      %v3375 = vadd.s32 %v3367, 8
      %v3376 = vadd.s32 %v3367, 9
      %v3377 = vadd.s32 %v3367, 10
      %v3378 = vadd.s32 %v3367, 11
      %v3379 = vadd.s32 %v3367, 12
      %v3380 = vadd.s32 %v3367, 13
      %v3381 = vadd.s32 %v3367, 14
      %v3382 = vadd.s32 %v3367, 15
      %v3383 = vadd.s32 %v3367, 16
      %v3384 = vadd.s32 %v3367, 17
      %v3385 = vlaneseq
      %v3386 = vshrl.u32 %v3385, 7
      %v3387 = vadd.s32 %v3386, 8
      %v3388 = vadd.s32 %v3386, 16
      %v3389 = vsub.s32 %v3386, 1
      %v3390 = vsub.s32 %v3387, 1
      %v3391 = vsub.s32 %v3388, 1
      %vm3392 = vcmp.ge.s32.totalorder %v3367, 0
      %vm3393 = vcmp.ge.s32.totalorder %v3368, 0
      %vm3394 = vcmp.ge.s32.totalorder %v3369, 0
      %vm3395 = vcmp.ge.s32.totalorder %v3370, 0
      %vm3396 = vcmp.ge.s32.totalorder %v3371, 0
      %vm3397 = vcmp.ge.s32.totalorder %v3372, 0
      %vm3398 = vcmp.ge.s32.totalorder %v3373, 0
      %vm3399 = vcmp.ge.s32.totalorder %v3374, 0
      %vm3400 = vcmp.ge.s32.totalorder %v3375, 0
      %vm3401 = vcmp.ge.s32.totalorder %v3376, 0
      %vm3402 = vcmp.ge.s32.totalorder %v3377, 0
      %vm3403 = vcmp.ge.s32.totalorder %v3378, 0
      %vm3404 = vcmp.ge.s32.totalorder %v3379, 0
      %vm3405 = vcmp.ge.s32.totalorder %v3380, 0
      %vm3406 = vcmp.ge.s32.totalorder %v3381, 0
      %vm3407 = vcmp.ge.s32.totalorder %v3382, 0
      %vm3408 = vcmp.ge.s32.totalorder %v3383, 0
      %vm3409 = vcmp.ge.s32.totalorder %v3384, 0
      %vm3410 = vcmp.lt.s32.totalorder %v3367, 16
      %vm3411 = vcmp.lt.s32.totalorder %v3368, 16
      %vm3412 = vcmp.lt.s32.totalorder %v3369, 16
      %vm3413 = vcmp.lt.s32.totalorder %v3370, 16
      %vm3414 = vcmp.lt.s32.totalorder %v3371, 16
      %vm3415 = vcmp.lt.s32.totalorder %v3372, 16
      %vm3416 = vcmp.lt.s32.totalorder %v3373, 16
      %vm3417 = vcmp.lt.s32.totalorder %v3374, 16
      %vm3418 = vcmp.lt.s32.totalorder %v3375, 16
      %vm3419 = vcmp.lt.s32.totalorder %v3376, 16
      %vm3420 = vcmp.lt.s32.totalorder %v3377, 16
      %vm3421 = vcmp.lt.s32.totalorder %v3378, 16
      %vm3422 = vcmp.lt.s32.totalorder %v3379, 16
      %vm3423 = vcmp.lt.s32.totalorder %v3380, 16
      %vm3424 = vcmp.lt.s32.totalorder %v3381, 16
      %vm3425 = vcmp.lt.s32.totalorder %v3382, 16
      %vm3426 = vcmp.lt.s32.totalorder %v3383, 16
      %vm3427 = vcmp.lt.s32.totalorder %v3384, 16
      %vm3428 = vmand %vm3392, %vm3410
      %vm3429 = vmand %vm3393, %vm3411
      %vm3430 = vmand %vm3394, %vm3412
      %vm3431 = vmand %vm3395, %vm3413
      %vm3432 = vmand %vm3396, %vm3414
      %vm3433 = vmand %vm3397, %vm3415
      %vm3434 = vmand %vm3398, %vm3416
      %vm3435 = vmand %vm3399, %vm3417
      %vm3436 = vmand %vm3400, %vm3418
      %vm3437 = vmand %vm3401, %vm3419
      %vm3438 = vmand %vm3402, %vm3420
      %vm3439 = vmand %vm3403, %vm3421
      %vm3440 = vmand %vm3404, %vm3422
      %vm3441 = vmand %vm3405, %vm3423
      %vm3442 = vmand %vm3406, %vm3424
      %vm3443 = vmand %vm3407, %vm3425
      %vm3444 = vmand %vm3408, %vm3426
      %vm3445 = vmand %vm3409, %vm3427
      %vm3446 = vcmp.ge.s32.totalorder %v3389, 0
      %vm3447 = vcmp.ge.s32.totalorder %v3390, 0
      %vm3448 = vcmp.ge.s32.totalorder %v3391, 0
      %vm3449 = vmand %vm3428, %vm3446
      %vm3450 = vmand %vm3428, %vm3447
      %vm3451 = vmand %vm3428, %vm3448
      %vm3452 = vmand %vm3429, %vm3446
      %vm3453 = vmand %vm3429, %vm3447
      %vm3454 = vmand %vm3429, %vm3448
      %vm3455 = vmand %vm3430, %vm3446
      %vm3456 = vmand %vm3430, %vm3447
      %vm3457 = vmand %vm3430, %vm3448
      %vm3458 = vmand %vm3431, %vm3446
      %vm3459 = vmand %vm3431, %vm3447
      %vm3460 = vmand %vm3431, %vm3448
      %vm3461 = vmand %vm3432, %vm3446
      %vm3462 = vmand %vm3432, %vm3447
      %vm3463 = vmand %vm3432, %vm3448
      %vm3464 = vmand %vm3433, %vm3446
      %vm3465 = vmand %vm3433, %vm3447
      %vm3466 = vmand %vm3433, %vm3448
      %vm3467 = vmand %vm3434, %vm3446
      %vm3468 = vmand %vm3434, %vm3447
      %vm3469 = vmand %vm3434, %vm3448
      %vm3470 = vmand %vm3435, %vm3446
      %vm3471 = vmand %vm3435, %vm3447
      %vm3472 = vmand %vm3435, %vm3448
      %vm3473 = vmand %vm3436, %vm3446
      %vm3474 = vmand %vm3436, %vm3447
      %vm3475 = vmand %vm3436, %vm3448
      %vm3476 = vmand %vm3437, %vm3446
      %vm3477 = vmand %vm3437, %vm3447
      %vm3478 = vmand %vm3437, %vm3448
      %vm3479 = vmand %vm3438, %vm3446
      %vm3480 = vmand %vm3438, %vm3447
      %vm3481 = vmand %vm3438, %vm3448
      %vm3482 = vmand %vm3439, %vm3446
      %vm3483 = vmand %vm3439, %vm3447
      %vm3484 = vmand %vm3439, %vm3448
      %vm3485 = vmand %vm3440, %vm3446
      %vm3486 = vmand %vm3440, %vm3447
      %vm3487 = vmand %vm3440, %vm3448
      %vm3488 = vmand %vm3441, %vm3446
      %vm3489 = vmand %vm3441, %vm3447
      %vm3490 = vmand %vm3441, %vm3448
      %vm3491 = vmand %vm3442, %vm3446
      %vm3492 = vmand %vm3442, %vm3447
      %vm3493 = vmand %vm3442, %vm3448
      %vm3494 = vmand %vm3443, %vm3446
      %vm3495 = vmand %vm3443, %vm3447
      %vm3496 = vmand %vm3443, %vm3448
      %vm3497 = vmand %vm3444, %vm3446
      %vm3498 = vmand %vm3444, %vm3447
      %vm3499 = vmand %vm3444, %vm3448
      %vm3500 = vmand %vm3445, %vm3446
      %vm3501 = vmand %vm3445, %vm3447
      %vm3502 = vmand %vm3445, %vm3448
      %vm3503 = vcmp.lt.s32.totalorder %v3389, 16
      %vm3504 = vcmp.lt.s32.totalorder %v3390, 16
      %vm3505 = vcmp.lt.s32.totalorder %v3391, 16
      %vm3506 = vmand %vm3449, %vm3503
      %vm3507 = vmand %vm3450, %vm3504
      %vm3508 = vmand %vm3451, %vm3505
      %vm3509 = vmand %vm3452, %vm3503
      %vm3510 = vmand %vm3453, %vm3504
      %vm3511 = vmand %vm3454, %vm3505
      %vm3512 = vmand %vm3455, %vm3503
      %vm3513 = vmand %vm3456, %vm3504
      %vm3514 = vmand %vm3457, %vm3505
      %vm3515 = vmand %vm3458, %vm3503
      %vm3516 = vmand %vm3459, %vm3504
      %vm3517 = vmand %vm3460, %vm3505
      %vm3518 = vmand %vm3461, %vm3503
      %vm3519 = vmand %vm3462, %vm3504
      %vm3520 = vmand %vm3463, %vm3505
      %vm3521 = vmand %vm3464, %vm3503
      %vm3522 = vmand %vm3465, %vm3504
      %vm3523 = vmand %vm3466, %vm3505
      %vm3524 = vmand %vm3467, %vm3503
      %vm3525 = vmand %vm3468, %vm3504
      %vm3526 = vmand %vm3469, %vm3505
      %vm3527 = vmand %vm3470, %vm3503
      %vm3528 = vmand %vm3471, %vm3504
      %vm3529 = vmand %vm3472, %vm3505
      %vm3530 = vmand %vm3473, %vm3503
      %vm3531 = vmand %vm3474, %vm3504
      %vm3532 = vmand %vm3475, %vm3505
      %vm3533 = vmand %vm3476, %vm3503
      %vm3534 = vmand %vm3477, %vm3504
      %vm3535 = vmand %vm3478, %vm3505
      %vm3536 = vmand %vm3479, %vm3503
      %vm3537 = vmand %vm3480, %vm3504
      %vm3538 = vmand %vm3481, %vm3505
      %vm3539 = vmand %vm3482, %vm3503
      %vm3540 = vmand %vm3483, %vm3504
      %vm3541 = vmand %vm3484, %vm3505
      %vm3542 = vmand %vm3485, %vm3503
      %vm3543 = vmand %vm3486, %vm3504
      %vm3544 = vmand %vm3487, %vm3505
      %vm3545 = vmand %vm3488, %vm3503
      %vm3546 = vmand %vm3489, %vm3504
      %vm3547 = vmand %vm3490, %vm3505
      %vm3548 = vmand %vm3491, %vm3503
      %vm3549 = vmand %vm3492, %vm3504
      %vm3550 = vmand %vm3493, %vm3505
      %vm3551 = vmand %vm3494, %vm3503
      %vm3552 = vmand %vm3495, %vm3504
      %vm3553 = vmand %vm3496, %vm3505
      %vm3554 = vmand %vm3497, %vm3503
      %vm3555 = vmand %vm3498, %vm3504
      %vm3556 = vmand %vm3499, %vm3505
      %vm3557 = vmand %vm3500, %vm3503
      %vm3558 = vmand %vm3501, %vm3504
      %vm3559 = vmand %vm3502, %vm3505
      %v3560 = vsel %vm3506, 1, 0
      %v3561 = vsel %vm3507, 1, 0
      %v3562 = vsel %vm3508, 1, 0
      %v3563 = vsel %vm3509, 1, 0
      %v3564 = vsel %vm3510, 1, 0
      %v3565 = vsel %vm3511, 1, 0
      %v3566 = vsel %vm3512, 1, 0
      %v3567 = vsel %vm3513, 1, 0
      %v3568 = vsel %vm3514, 1, 0
      %v3569 = vsel %vm3515, 1, 0
      %v3570 = vsel %vm3516, 1, 0
      %v3571 = vsel %vm3517, 1, 0
      %v3572 = vsel %vm3518, 1, 0
      %v3573 = vsel %vm3519, 1, 0
      %v3574 = vsel %vm3520, 1, 0
      %v3575 = vsel %vm3521, 1, 0
      %v3576 = vsel %vm3522, 1, 0
      %v3577 = vsel %vm3523, 1, 0
      %v3578 = vsel %vm3524, 1, 0
      %v3579 = vsel %vm3525, 1, 0
      %v3580 = vsel %vm3526, 1, 0
      %v3581 = vsel %vm3527, 1, 0
      %v3582 = vsel %vm3528, 1, 0
      %v3583 = vsel %vm3529, 1, 0
      %v3584 = vsel %vm3530, 1, 0
      %v3585 = vsel %vm3531, 1, 0
      %v3586 = vsel %vm3532, 1, 0
      %v3587 = vsel %vm3533, 1, 0
      %v3588 = vsel %vm3534, 1, 0
      %v3589 = vsel %vm3535, 1, 0
      %v3590 = vsel %vm3536, 1, 0
      %v3591 = vsel %vm3537, 1, 0
      %v3592 = vsel %vm3538, 1, 0
      %v3593 = vsel %vm3539, 1, 0
      %v3594 = vsel %vm3540, 1, 0
      %v3595 = vsel %vm3541, 1, 0
      %v3596 = vsel %vm3542, 1, 0
      %v3597 = vsel %vm3543, 1, 0
      %v3598 = vsel %vm3544, 1, 0
      %v3599 = vsel %vm3545, 1, 0
      %v3600 = vsel %vm3546, 1, 0
      %v3601 = vsel %vm3547, 1, 0
      %v3602 = vsel %vm3548, 1, 0
      %v3603 = vsel %vm3549, 1, 0
      %v3604 = vsel %vm3550, 1, 0
      %v3605 = vsel %vm3551, 1, 0
      %v3606 = vsel %vm3552, 1, 0
      %v3607 = vsel %vm3553, 1, 0
      %v3608 = vsel %vm3554, 1, 0
      %v3609 = vsel %vm3555, 1, 0
      %v3610 = vsel %vm3556, 1, 0
      %v3611 = vsel %vm3557, 1, 0
      %v3612 = vsel %vm3558, 1, 0
      %v3613 = vsel %vm3559, 1, 0
      %vm3614 = vcmp.eq.s32.totalorder %v3560, 1
      %vm3615 = vcmp.eq.s32.totalorder %v3561, 1
      %vm3616 = vcmp.eq.s32.totalorder %v3562, 1
      %vm3617 = vcmp.eq.s32.totalorder %v3563, 1
      %vm3618 = vcmp.eq.s32.totalorder %v3564, 1
      %vm3619 = vcmp.eq.s32.totalorder %v3565, 1
      %vm3620 = vcmp.eq.s32.totalorder %v3566, 1
      %vm3621 = vcmp.eq.s32.totalorder %v3567, 1
      %vm3622 = vcmp.eq.s32.totalorder %v3568, 1
      %vm3623 = vcmp.eq.s32.totalorder %v3569, 1
      %vm3624 = vcmp.eq.s32.totalorder %v3570, 1
      %vm3625 = vcmp.eq.s32.totalorder %v3571, 1
      %vm3626 = vcmp.eq.s32.totalorder %v3572, 1
      %vm3627 = vcmp.eq.s32.totalorder %v3573, 1
      %vm3628 = vcmp.eq.s32.totalorder %v3574, 1
      %vm3629 = vcmp.eq.s32.totalorder %v3575, 1
      %vm3630 = vcmp.eq.s32.totalorder %v3576, 1
      %vm3631 = vcmp.eq.s32.totalorder %v3577, 1
      %vm3632 = vcmp.eq.s32.totalorder %v3578, 1
      %vm3633 = vcmp.eq.s32.totalorder %v3579, 1
      %vm3634 = vcmp.eq.s32.totalorder %v3580, 1
      %vm3635 = vcmp.eq.s32.totalorder %v3581, 1
      %vm3636 = vcmp.eq.s32.totalorder %v3582, 1
      %vm3637 = vcmp.eq.s32.totalorder %v3583, 1
      %vm3638 = vcmp.eq.s32.totalorder %v3584, 1
      %vm3639 = vcmp.eq.s32.totalorder %v3585, 1
      %vm3640 = vcmp.eq.s32.totalorder %v3586, 1
      %vm3641 = vcmp.eq.s32.totalorder %v3587, 1
      %vm3642 = vcmp.eq.s32.totalorder %v3588, 1
      %vm3643 = vcmp.eq.s32.totalorder %v3589, 1
      %vm3644 = vcmp.eq.s32.totalorder %v3590, 1
      %vm3645 = vcmp.eq.s32.totalorder %v3591, 1
      %vm3646 = vcmp.eq.s32.totalorder %v3592, 1
      %vm3647 = vcmp.eq.s32.totalorder %v3593, 1
      %vm3648 = vcmp.eq.s32.totalorder %v3594, 1
      %vm3649 = vcmp.eq.s32.totalorder %v3595, 1
      %vm3650 = vcmp.eq.s32.totalorder %v3596, 1
      %vm3651 = vcmp.eq.s32.totalorder %v3597, 1
      %vm3652 = vcmp.eq.s32.totalorder %v3598, 1
      %vm3653 = vcmp.eq.s32.totalorder %v3599, 1
      %vm3654 = vcmp.eq.s32.totalorder %v3600, 1
      %vm3655 = vcmp.eq.s32.totalorder %v3601, 1
      %vm3656 = vcmp.eq.s32.totalorder %v3602, 1
      %vm3657 = vcmp.eq.s32.totalorder %v3603, 1
      %vm3658 = vcmp.eq.s32.totalorder %v3604, 1
      %vm3659 = vcmp.eq.s32.totalorder %v3605, 1
      %vm3660 = vcmp.eq.s32.totalorder %v3606, 1
      %vm3661 = vcmp.eq.s32.totalorder %v3607, 1
      %vm3662 = vcmp.eq.s32.totalorder %v3608, 1
      %vm3663 = vcmp.eq.s32.totalorder %v3609, 1
      %vm3664 = vcmp.eq.s32.totalorder %v3610, 1
      %vm3665 = vcmp.eq.s32.totalorder %v3611, 1
      %vm3666 = vcmp.eq.s32.totalorder %v3612, 1
      %vm3667 = vcmp.eq.s32.totalorder %v3613, 1
      %v3668 = vsel %vm3614, %v3311, 0.0
      %v3669 = vsel %vm3615, %v3312, 0.0
      %v3670 = vsel %vm3616, %v3313, 0.0
      %v3671 = vsel %vm3617, %v3314, 0.0
      %v3672 = vsel %vm3618, %v3315, 0.0
      %v3673 = vsel %vm3619, %v3316, 0.0
      %v3674 = vsel %vm3620, %v3317, 0.0
      %v3675 = vsel %vm3621, %v3318, 0.0
      %v3676 = vsel %vm3622, %v3319, 0.0
      %v3677 = vsel %vm3623, %v3320, 0.0
      %v3678 = vsel %vm3624, %v3321, 0.0
      %v3679 = vsel %vm3625, %v3322, 0.0
      %v3680 = vsel %vm3626, %v3323, 0.0
      %v3681 = vsel %vm3627, %v3324, 0.0
      %v3682 = vsel %vm3628, %v3325, 0.0
      %v3683 = vsel %vm3629, %v3326, 0.0
      %v3684 = vsel %vm3630, %v3327, 0.0
      %v3685 = vsel %vm3631, %v3328, 0.0
      %v3686 = vsel %vm3632, %v3329, 0.0
      %v3687 = vsel %vm3633, %v3330, 0.0
      %v3688 = vsel %vm3634, %v3331, 0.0
      %v3689 = vsel %vm3635, %v3332, 0.0
      %v3690 = vsel %vm3636, %v3333, 0.0
      %v3691 = vsel %vm3637, %v3334, 0.0
      %v3692 = vsel %vm3638, %v3335, 0.0
      %v3693 = vsel %vm3639, %v3336, 0.0
      %v3694 = vsel %vm3640, %v3337, 0.0
      %v3695 = vsel %vm3641, %v3338, 0.0
      %v3696 = vsel %vm3642, %v3339, 0.0
      %v3697 = vsel %vm3643, %v3340, 0.0
      %v3698 = vsel %vm3644, %v3341, 0.0
      %v3699 = vsel %vm3645, %v3342, 0.0
      %v3700 = vsel %vm3646, %v3343, 0.0
      %v3701 = vsel %vm3647, %v3344, 0.0
      %v3702 = vsel %vm3648, %v3345, 0.0
      %v3703 = vsel %vm3649, %v3346, 0.0
      %v3704 = vsel %vm3650, %v3347, 0.0
      %v3705 = vsel %vm3651, %v3348, 0.0
      %v3706 = vsel %vm3652, %v3349, 0.0
      %v3707 = vsel %vm3653, %v3350, 0.0
      %v3708 = vsel %vm3654, %v3351, 0.0
      %v3709 = vsel %vm3655, %v3352, 0.0
      %v3710 = vsel %vm3656, %v3353, 0.0
      %v3711 = vsel %vm3657, %v3354, 0.0
      %v3712 = vsel %vm3658, %v3355, 0.0
      %v3713 = vsel %vm3659, %v3356, 0.0
      %v3714 = vsel %vm3660, %v3357, 0.0
      %v3715 = vsel %vm3661, %v3358, 0.0
      %v3716 = vsel %vm3662, %v3359, 0.0
      %v3717 = vsel %vm3663, %v3360, 0.0
      %v3718 = vsel %vm3664, %v3361, 0.0
      %v3719 = vsel %vm3665, %v3362, 0.0
      %v3720 = vsel %vm3666, %v3363, 0.0
      %v3721 = vsel %vm3667, %v3364, 0.0
      %v3770 = vrot.slane %v3668, 1
      %v3771 = vrot.slane %v3669, 1
      %v3772 = vsel %vm608, %v3770, %v3771
      %v3773 = vrot.slane %v3670, 1
      %v3774 = vsel %vm608, %v3771, %v3773
      %v3775 = vrot.slane %v3671, 1
      %v3776 = vrot.slane %v3672, 1
      %v3777 = vsel %vm608, %v3775, %v3776
      %v3778 = vrot.slane %v3673, 1
      %v3779 = vsel %vm608, %v3776, %v3778
      %v3780 = vrot.slane %v3674, 1
      %v3781 = vrot.slane %v3675, 1
      %v3782 = vsel %vm608, %v3780, %v3781
      %v3783 = vrot.slane %v3676, 1
      %v3784 = vsel %vm608, %v3781, %v3783
      %v3785 = vrot.slane %v3677, 1
      %v3786 = vrot.slane %v3678, 1
      %v3787 = vsel %vm608, %v3785, %v3786
      %v3788 = vrot.slane %v3679, 1
      %v3789 = vsel %vm608, %v3786, %v3788
      %v3790 = vrot.slane %v3680, 1
      %v3791 = vrot.slane %v3681, 1
      %v3792 = vsel %vm608, %v3790, %v3791
      %v3793 = vrot.slane %v3682, 1
      %v3794 = vsel %vm608, %v3791, %v3793
      %v3795 = vrot.slane %v3683, 1
      %v3796 = vrot.slane %v3684, 1
      %v3797 = vsel %vm608, %v3795, %v3796
      %v3798 = vrot.slane %v3685, 1
      %v3799 = vsel %vm608, %v3796, %v3798
      %v3800 = vrot.slane %v3686, 1
      %v3801 = vrot.slane %v3687, 1
      %v3802 = vsel %vm608, %v3800, %v3801
      %v3803 = vrot.slane %v3688, 1
      %v3804 = vsel %vm608, %v3801, %v3803
      %v3805 = vrot.slane %v3689, 1
      %v3806 = vrot.slane %v3690, 1
      %v3807 = vsel %vm608, %v3805, %v3806
      %v3808 = vrot.slane %v3691, 1
      %v3809 = vsel %vm608, %v3806, %v3808
      %v3810 = vrot.slane %v3692, 1
      %v3811 = vrot.slane %v3693, 1
      %v3812 = vsel %vm608, %v3810, %v3811
      %v3813 = vrot.slane %v3694, 1
      %v3814 = vsel %vm608, %v3811, %v3813
      %v3815 = vrot.slane %v3695, 1
      %v3816 = vrot.slane %v3696, 1
      %v3817 = vsel %vm608, %v3815, %v3816
      %v3818 = vrot.slane %v3697, 1
      %v3819 = vsel %vm608, %v3816, %v3818
      %v3820 = vrot.slane %v3698, 1
      %v3821 = vrot.slane %v3699, 1
      %v3822 = vsel %vm608, %v3820, %v3821
      %v3823 = vrot.slane %v3700, 1
      %v3824 = vsel %vm608, %v3821, %v3823
      %v3825 = vrot.slane %v3701, 1
      %v3826 = vrot.slane %v3702, 1
      %v3827 = vsel %vm608, %v3825, %v3826
      %v3828 = vrot.slane %v3703, 1
      %v3829 = vsel %vm608, %v3826, %v3828
      %v3830 = vrot.slane %v3704, 1
      %v3831 = vrot.slane %v3705, 1
      %v3832 = vsel %vm608, %v3830, %v3831
      %v3833 = vrot.slane %v3706, 1
      %v3834 = vsel %vm608, %v3831, %v3833
      %v3835 = vrot.slane %v3707, 1
      %v3836 = vrot.slane %v3708, 1
      %v3837 = vsel %vm608, %v3835, %v3836
      %v3838 = vrot.slane %v3709, 1
      %v3839 = vsel %vm608, %v3836, %v3838
      %v3840 = vrot.slane %v3710, 1
      %v3841 = vrot.slane %v3711, 1
      %v3842 = vsel %vm608, %v3840, %v3841
      %v3843 = vrot.slane %v3712, 1
      %v3844 = vsel %vm608, %v3841, %v3843
      %v3845 = vrot.slane %v3713, 1
      %v3846 = vrot.slane %v3714, 1
      %v3847 = vsel %vm608, %v3845, %v3846
      %v3848 = vrot.slane %v3715, 1
      %v3849 = vsel %vm608, %v3846, %v3848
      %3850 = vrot.lane.b32.xlu0 %v3772, 2
      %v3851 = vpop.permute.xlu0 %3850
      %3852 = vrot.lane.b32.xlu0 %v3774, 2
      %v3853 = vpop.permute.xlu0 %3852
      %3854 = vrot.lane.b32.xlu0 %v3777, 2
      %v3855 = vpop.permute.xlu0 %3854
      %3856 = vrot.lane.b32.xlu0 %v3779, 2
      %v3857 = vpop.permute.xlu0 %3856
      %3858 = vrot.lane.b32.xlu0 %v3782, 2
      %v3859 = vpop.permute.xlu0 %3858
      %3860 = vrot.lane.b32.xlu0 %v3784, 2
      %v3861 = vpop.permute.xlu0 %3860
      %3862 = vrot.lane.b32.xlu0 %v3787, 2
      %v3863 = vpop.permute.xlu0 %3862
      %3864 = vrot.lane.b32.xlu0 %v3789, 2
      %v3865 = vpop.permute.xlu0 %3864
      %3866 = vrot.lane.b32.xlu0 %v3792, 2
      %v3867 = vpop.permute.xlu0 %3866
      %3868 = vrot.lane.b32.xlu0 %v3794, 2
      %v3869 = vpop.permute.xlu0 %3868
      %3870 = vrot.lane.b32.xlu0 %v3797, 2
      %v3871 = vpop.permute.xlu0 %3870
      %3872 = vrot.lane.b32.xlu0 %v3799, 2
      %v3873 = vpop.permute.xlu0 %3872
      %3874 = vrot.lane.b32.xlu0 %v3802, 2
      %v3875 = vpop.permute.xlu0 %3874
      %3876 = vrot.lane.b32.xlu0 %v3804, 2
      %v3877 = vpop.permute.xlu0 %3876
      %3878 = vrot.lane.b32.xlu0 %v3807, 2
      %v3879 = vpop.permute.xlu0 %3878
      %3880 = vrot.lane.b32.xlu0 %v3809, 2
      %v3881 = vpop.permute.xlu0 %3880
      %3882 = vrot.lane.b32.xlu0 %v3812, 2
      %v3883 = vpop.permute.xlu0 %3882
      %3884 = vrot.lane.b32.xlu0 %v3814, 2
      %v3885 = vpop.permute.xlu0 %3884
      %3886 = vrot.lane.b32.xlu0 %v3817, 2
      %v3887 = vpop.permute.xlu0 %3886
      %3888 = vrot.lane.b32.xlu0 %v3819, 2
      %v3889 = vpop.permute.xlu0 %3888
      %3890 = vrot.lane.b32.xlu0 %v3822, 2
      %v3891 = vpop.permute.xlu0 %3890
      %3892 = vrot.lane.b32.xlu0 %v3824, 2
      %v3893 = vpop.permute.xlu0 %3892
      %3894 = vrot.lane.b32.xlu0 %v3827, 2
      %v3895 = vpop.permute.xlu0 %3894
      %3896 = vrot.lane.b32.xlu0 %v3829, 2
      %v3897 = vpop.permute.xlu0 %3896
      %3898 = vrot.lane.b32.xlu0 %v3832, 2
      %v3899 = vpop.permute.xlu0 %3898
      %3900 = vrot.lane.b32.xlu0 %v3834, 2
      %v3901 = vpop.permute.xlu0 %3900
      %3902 = vrot.lane.b32.xlu0 %v3837, 2
      %v3903 = vpop.permute.xlu0 %3902
      %3904 = vrot.lane.b32.xlu0 %v3839, 2
      %v3905 = vpop.permute.xlu0 %3904
      %3906 = vrot.lane.b32.xlu0 %v3842, 2
      %v3907 = vpop.permute.xlu0 %3906
      %3908 = vrot.lane.b32.xlu0 %v3844, 2
      %v3909 = vpop.permute.xlu0 %3908
      %3910 = vrot.lane.b32.xlu0 %v3847, 2
      %v3911 = vpop.permute.xlu0 %3910
      %3912 = vrot.lane.b32.xlu0 %v3849, 2
      %v3913 = vpop.permute.xlu0 %3912
      %v3946 = vrot.slane %v3668, 2
      %v3947 = vrot.slane %v3669, 2
      %v3948 = vsel %vm789, %v3946, %v3947
      %v3949 = vrot.slane %v3670, 2
      %v3950 = vsel %vm789, %v3947, %v3949
      %v3951 = vrot.slane %v3671, 2
      %v3952 = vrot.slane %v3672, 2
      %v3953 = vsel %vm789, %v3951, %v3952
      %v3954 = vrot.slane %v3673, 2
      %v3955 = vsel %vm789, %v3952, %v3954
      %v3956 = vrot.slane %v3674, 2
      %v3957 = vrot.slane %v3675, 2
      %v3958 = vsel %vm789, %v3956, %v3957
      %v3959 = vrot.slane %v3676, 2
      %v3960 = vsel %vm789, %v3957, %v3959
      %v3961 = vrot.slane %v3677, 2
      %v3962 = vrot.slane %v3678, 2
      %v3963 = vsel %vm789, %v3961, %v3962
      %v3964 = vrot.slane %v3679, 2
      %v3965 = vsel %vm789, %v3962, %v3964
      %v3966 = vrot.slane %v3680, 2
      %v3967 = vrot.slane %v3681, 2
      %v3968 = vsel %vm789, %v3966, %v3967
      %v3969 = vrot.slane %v3682, 2
      %v3970 = vsel %vm789, %v3967, %v3969
      %v3971 = vrot.slane %v3683, 2
      %v3972 = vrot.slane %v3684, 2
      %v3973 = vsel %vm789, %v3971, %v3972
      %v3974 = vrot.slane %v3685, 2
      %v3975 = vsel %vm789, %v3972, %v3974
      %v3976 = vrot.slane %v3686, 2
      %v3977 = vrot.slane %v3687, 2
      %v3978 = vsel %vm789, %v3976, %v3977
      %v3979 = vrot.slane %v3688, 2
      %v3980 = vsel %vm789, %v3977, %v3979
      %v3981 = vrot.slane %v3689, 2
      %v3982 = vrot.slane %v3690, 2
      %v3983 = vsel %vm789, %v3981, %v3982
      %v3984 = vrot.slane %v3691, 2
      %v3985 = vsel %vm789, %v3982, %v3984
      %v3986 = vrot.slane %v3692, 2
      %v3987 = vrot.slane %v3693, 2
      %v3988 = vsel %vm789, %v3986, %v3987
      %v3989 = vrot.slane %v3694, 2
      %v3990 = vsel %vm789, %v3987, %v3989
      %v3991 = vrot.slane %v3695, 2
      %v3992 = vrot.slane %v3696, 2
      %v3993 = vsel %vm789, %v3991, %v3992
      %v3994 = vrot.slane %v3697, 2
      %v3995 = vsel %vm789, %v3992, %v3994
      %v3996 = vrot.slane %v3698, 2
      %v3997 = vrot.slane %v3699, 2
      %v3998 = vsel %vm789, %v3996, %v3997
      %v3999 = vrot.slane %v3700, 2
      %v4000 = vsel %vm789, %v3997, %v3999
      %v4001 = vrot.slane %v3701, 2
      %v4002 = vrot.slane %v3702, 2
      %v4003 = vsel %vm789, %v4001, %v4002
      %v4004 = vrot.slane %v3703, 2
      %v4005 = vsel %vm789, %v4002, %v4004
      %v4006 = vrot.slane %v3704, 2
      %v4007 = vrot.slane %v3705, 2
      %v4008 = vsel %vm789, %v4006, %v4007
      %v4009 = vrot.slane %v3706, 2
      %v4010 = vsel %vm789, %v4007, %v4009
      %v4011 = vrot.slane %v3707, 2
      %v4012 = vrot.slane %v3708, 2
      %v4013 = vsel %vm789, %v4011, %v4012
      %v4014 = vrot.slane %v3709, 2
      %v4015 = vsel %vm789, %v4012, %v4014
      %v4016 = vrot.slane %v3710, 2
      %v4017 = vrot.slane %v3711, 2
      %v4018 = vsel %vm789, %v4016, %v4017
      %v4019 = vrot.slane %v3712, 2
      %v4020 = vsel %vm789, %v4017, %v4019
      %v4021 = vrot.slane %v3713, 2
      %v4022 = vrot.slane %v3714, 2
      %v4023 = vsel %vm789, %v4021, %v4022
      %v4024 = vrot.slane %v3715, 2
      %v4025 = vsel %vm789, %v4022, %v4024
      %4026 = vrot.lane.b32.xlu0 %v3948, 4
      %v4027 = vpop.permute.xlu0 %4026
      %4028 = vrot.lane.b32.xlu0 %v3950, 4
      %v4029 = vpop.permute.xlu0 %4028
      %4030 = vrot.lane.b32.xlu0 %v3953, 4
      %v4031 = vpop.permute.xlu0 %4030
      %4032 = vrot.lane.b32.xlu0 %v3955, 4
      %v4033 = vpop.permute.xlu0 %4032
      %4034 = vrot.lane.b32.xlu0 %v3958, 4
      %v4035 = vpop.permute.xlu0 %4034
      %4036 = vrot.lane.b32.xlu0 %v3960, 4
      %v4037 = vpop.permute.xlu0 %4036
      %4038 = vrot.lane.b32.xlu0 %v3963, 4
      %v4039 = vpop.permute.xlu0 %4038
      %4040 = vrot.lane.b32.xlu0 %v3965, 4
      %v4041 = vpop.permute.xlu0 %4040
      %4042 = vrot.lane.b32.xlu0 %v3968, 4
      %v4043 = vpop.permute.xlu0 %4042
      %4044 = vrot.lane.b32.xlu0 %v3970, 4
      %v4045 = vpop.permute.xlu0 %4044
      %4046 = vrot.lane.b32.xlu0 %v3973, 4
      %v4047 = vpop.permute.xlu0 %4046
      %4048 = vrot.lane.b32.xlu0 %v3975, 4
      %v4049 = vpop.permute.xlu0 %4048
      %4050 = vrot.lane.b32.xlu0 %v3978, 4
      %v4051 = vpop.permute.xlu0 %4050
      %4052 = vrot.lane.b32.xlu0 %v3980, 4
      %v4053 = vpop.permute.xlu0 %4052
      %4054 = vrot.lane.b32.xlu0 %v3983, 4
      %v4055 = vpop.permute.xlu0 %4054
      %4056 = vrot.lane.b32.xlu0 %v3985, 4
      %v4057 = vpop.permute.xlu0 %4056
      %4058 = vrot.lane.b32.xlu0 %v3988, 4
      %v4059 = vpop.permute.xlu0 %4058
      %4060 = vrot.lane.b32.xlu0 %v3990, 4
      %v4061 = vpop.permute.xlu0 %4060
      %4062 = vrot.lane.b32.xlu0 %v3993, 4
      %v4063 = vpop.permute.xlu0 %4062
      %4064 = vrot.lane.b32.xlu0 %v3995, 4
      %v4065 = vpop.permute.xlu0 %4064
      %4066 = vrot.lane.b32.xlu0 %v3998, 4
      %v4067 = vpop.permute.xlu0 %4066
      %4068 = vrot.lane.b32.xlu0 %v4000, 4
      %v4069 = vpop.permute.xlu0 %4068
      %4070 = vrot.lane.b32.xlu0 %v4003, 4
      %v4071 = vpop.permute.xlu0 %4070
      %4072 = vrot.lane.b32.xlu0 %v4005, 4
      %v4073 = vpop.permute.xlu0 %4072
      %4074 = vrot.lane.b32.xlu0 %v4008, 4
      %v4075 = vpop.permute.xlu0 %4074
      %4076 = vrot.lane.b32.xlu0 %v4010, 4
      %v4077 = vpop.permute.xlu0 %4076
      %4078 = vrot.lane.b32.xlu0 %v4013, 4
      %v4079 = vpop.permute.xlu0 %4078
      %4080 = vrot.lane.b32.xlu0 %v4015, 4
      %v4081 = vpop.permute.xlu0 %4080
      %4082 = vrot.lane.b32.xlu0 %v4018, 4
      %v4083 = vpop.permute.xlu0 %4082
      %4084 = vrot.lane.b32.xlu0 %v4020, 4
      %v4085 = vpop.permute.xlu0 %4084
      %4086 = vrot.lane.b32.xlu0 %v4023, 4
      %v4087 = vpop.permute.xlu0 %4086
      %4088 = vrot.lane.b32.xlu0 %v4025, 4
      %v4089 = vpop.permute.xlu0 %4088
      %4124 = vrot.lane.b32.xlu0 %v3671, 6
      %v4125 = vpop.permute.xlu0 %4124
      %4126 = vrot.lane.b32.xlu0 %v3672, 6
      %v4127 = vpop.permute.xlu0 %4126
      %4128 = vrot.lane.b32.xlu0 %v3674, 6
      %v4129 = vpop.permute.xlu0 %4128
      %4130 = vrot.lane.b32.xlu0 %v3675, 6
      %v4131 = vpop.permute.xlu0 %4130
      %4132 = vrot.lane.b32.xlu0 %v3677, 6
      %v4133 = vpop.permute.xlu0 %4132
      %4134 = vrot.lane.b32.xlu0 %v3678, 6
      %v4135 = vpop.permute.xlu0 %4134
      %4136 = vrot.lane.b32.xlu0 %v3680, 6
      %v4137 = vpop.permute.xlu0 %4136
      %4138 = vrot.lane.b32.xlu0 %v3681, 6
      %v4139 = vpop.permute.xlu0 %4138
      %4140 = vrot.lane.b32.xlu0 %v3683, 6
      %v4141 = vpop.permute.xlu0 %4140
      %4142 = vrot.lane.b32.xlu0 %v3684, 6
      %v4143 = vpop.permute.xlu0 %4142
      %4144 = vrot.lane.b32.xlu0 %v3686, 6
      %v4145 = vpop.permute.xlu0 %4144
      %4146 = vrot.lane.b32.xlu0 %v3687, 6
      %v4147 = vpop.permute.xlu0 %4146
      %4148 = vrot.lane.b32.xlu0 %v3689, 6
      %v4149 = vpop.permute.xlu0 %4148
      %4150 = vrot.lane.b32.xlu0 %v3690, 6
      %v4151 = vpop.permute.xlu0 %4150
      %4152 = vrot.lane.b32.xlu0 %v3692, 6
      %v4153 = vpop.permute.xlu0 %4152
      %4154 = vrot.lane.b32.xlu0 %v3693, 6
      %v4155 = vpop.permute.xlu0 %4154
      %4156 = vrot.lane.b32.xlu0 %v3695, 6
      %v4157 = vpop.permute.xlu0 %4156
      %4158 = vrot.lane.b32.xlu0 %v3696, 6
      %v4159 = vpop.permute.xlu0 %4158
      %4160 = vrot.lane.b32.xlu0 %v3698, 6
      %v4161 = vpop.permute.xlu0 %4160
      %4162 = vrot.lane.b32.xlu0 %v3699, 6
      %v4163 = vpop.permute.xlu0 %4162
      %4164 = vrot.lane.b32.xlu0 %v3701, 6
      %v4165 = vpop.permute.xlu0 %4164
      %4166 = vrot.lane.b32.xlu0 %v3702, 6
      %v4167 = vpop.permute.xlu0 %4166
      %4168 = vrot.lane.b32.xlu0 %v3704, 6
      %v4169 = vpop.permute.xlu0 %4168
      %4170 = vrot.lane.b32.xlu0 %v3705, 6
      %v4171 = vpop.permute.xlu0 %4170
      %4172 = vrot.lane.b32.xlu0 %v3707, 6
      %v4173 = vpop.permute.xlu0 %4172
      %4174 = vrot.lane.b32.xlu0 %v3708, 6
      %v4175 = vpop.permute.xlu0 %4174
      %4176 = vrot.lane.b32.xlu0 %v3710, 6
      %v4177 = vpop.permute.xlu0 %4176
      %4178 = vrot.lane.b32.xlu0 %v3711, 6
      %v4179 = vpop.permute.xlu0 %4178
      %4180 = vrot.lane.b32.xlu0 %v3713, 6
      %v4181 = vpop.permute.xlu0 %4180
      %4182 = vrot.lane.b32.xlu0 %v3714, 6
      %v4183 = vpop.permute.xlu0 %4182
      %4184 = vrot.lane.b32.xlu0 %v3716, 6
      %v4185 = vpop.permute.xlu0 %4184
      %4186 = vrot.lane.b32.xlu0 %v3717, 6
      %v4187 = vpop.permute.xlu0 %4186
      %v4221 = vrot.slane %v3716, 1
      %v4222 = vrot.slane %v3717, 1
      %v4223 = vsel %vm608, %v4221, %v4222
      %v4224 = vrot.slane %v3718, 1
      %v4225 = vsel %vm608, %v4222, %v4224
      %4226 = vrot.lane.b32.xlu0 %v3777, 8
      %v4227 = vpop.permute.xlu0 %4226
      %4228 = vrot.lane.b32.xlu0 %v3779, 8
      %v4229 = vpop.permute.xlu0 %4228
      %4230 = vrot.lane.b32.xlu0 %v3782, 8
      %v4231 = vpop.permute.xlu0 %4230
      %4232 = vrot.lane.b32.xlu0 %v3784, 8
      %v4233 = vpop.permute.xlu0 %4232
      %4234 = vrot.lane.b32.xlu0 %v3787, 8
      %v4235 = vpop.permute.xlu0 %4234
      %4236 = vrot.lane.b32.xlu0 %v3789, 8
      %v4237 = vpop.permute.xlu0 %4236
      %4238 = vrot.lane.b32.xlu0 %v3792, 8
      %v4239 = vpop.permute.xlu0 %4238
      %4240 = vrot.lane.b32.xlu0 %v3794, 8
      %v4241 = vpop.permute.xlu0 %4240
      %4242 = vrot.lane.b32.xlu0 %v3797, 8
      %v4243 = vpop.permute.xlu0 %4242
      %4244 = vrot.lane.b32.xlu0 %v3799, 8
      %v4245 = vpop.permute.xlu0 %4244
      %4246 = vrot.lane.b32.xlu0 %v3802, 8
      %v4247 = vpop.permute.xlu0 %4246
      %4248 = vrot.lane.b32.xlu0 %v3804, 8
      %v4249 = vpop.permute.xlu0 %4248
      %4250 = vrot.lane.b32.xlu0 %v3807, 8
      %v4251 = vpop.permute.xlu0 %4250
      %4252 = vrot.lane.b32.xlu0 %v3809, 8
      %v4253 = vpop.permute.xlu0 %4252
      %4254 = vrot.lane.b32.xlu0 %v3812, 8
      %v4255 = vpop.permute.xlu0 %4254
      %4256 = vrot.lane.b32.xlu0 %v3814, 8
      %v4257 = vpop.permute.xlu0 %4256
      %4258 = vrot.lane.b32.xlu0 %v3817, 8
      %v4259 = vpop.permute.xlu0 %4258
      %4260 = vrot.lane.b32.xlu0 %v3819, 8
      %v4261 = vpop.permute.xlu0 %4260
      %4262 = vrot.lane.b32.xlu0 %v3822, 8
      %v4263 = vpop.permute.xlu0 %4262
      %4264 = vrot.lane.b32.xlu0 %v3824, 8
      %v4265 = vpop.permute.xlu0 %4264
      %4266 = vrot.lane.b32.xlu0 %v3827, 8
      %v4267 = vpop.permute.xlu0 %4266
      %4268 = vrot.lane.b32.xlu0 %v3829, 8
      %v4269 = vpop.permute.xlu0 %4268
      %4270 = vrot.lane.b32.xlu0 %v3832, 8
      %v4271 = vpop.permute.xlu0 %4270
      %4272 = vrot.lane.b32.xlu0 %v3834, 8
      %v4273 = vpop.permute.xlu0 %4272
      %4274 = vrot.lane.b32.xlu0 %v3837, 8
      %v4275 = vpop.permute.xlu0 %4274
      %4276 = vrot.lane.b32.xlu0 %v3839, 8
      %v4277 = vpop.permute.xlu0 %4276
      %4278 = vrot.lane.b32.xlu0 %v3842, 8
      %v4279 = vpop.permute.xlu0 %4278
      %4280 = vrot.lane.b32.xlu0 %v3844, 8
      %v4281 = vpop.permute.xlu0 %4280
      %4282 = vrot.lane.b32.xlu0 %v3847, 8
      %v4283 = vpop.permute.xlu0 %4282
      %4284 = vrot.lane.b32.xlu0 %v3849, 8
      %v4285 = vpop.permute.xlu0 %4284
      %4286 = vrot.lane.b32.xlu0 %v4223, 8
      %v4287 = vpop.permute.xlu0 %4286
      %4288 = vrot.lane.b32.xlu0 %v4225, 8
      %v4289 = vpop.permute.xlu0 %4288
      %v4322 = vrot.slane %v3716, 2
      %v4323 = vrot.slane %v3717, 2
      %v4324 = vsel %vm789, %v4322, %v4323
      %v4325 = vrot.slane %v3718, 2
      %v4326 = vsel %vm789, %v4323, %v4325
      %4327 = vrot.lane.b32.xlu0 %v3953, 10
      %v4328 = vpop.permute.xlu0 %4327
      %4329 = vrot.lane.b32.xlu0 %v3955, 10
      %v4330 = vpop.permute.xlu0 %4329
      %4331 = vrot.lane.b32.xlu0 %v3958, 10
      %v4332 = vpop.permute.xlu0 %4331
      %4333 = vrot.lane.b32.xlu0 %v3960, 10
      %v4334 = vpop.permute.xlu0 %4333
      %4335 = vrot.lane.b32.xlu0 %v3963, 10
      %v4336 = vpop.permute.xlu0 %4335
      %4337 = vrot.lane.b32.xlu0 %v3965, 10
      %v4338 = vpop.permute.xlu0 %4337
      %4339 = vrot.lane.b32.xlu0 %v3968, 10
      %v4340 = vpop.permute.xlu0 %4339
      %4341 = vrot.lane.b32.xlu0 %v3970, 10
      %v4342 = vpop.permute.xlu0 %4341
      %4343 = vrot.lane.b32.xlu0 %v3973, 10
      %v4344 = vpop.permute.xlu0 %4343
      %4345 = vrot.lane.b32.xlu0 %v3975, 10
      %v4346 = vpop.permute.xlu0 %4345
      %4347 = vrot.lane.b32.xlu0 %v3978, 10
      %v4348 = vpop.permute.xlu0 %4347
      %4349 = vrot.lane.b32.xlu0 %v3980, 10
      %v4350 = vpop.permute.xlu0 %4349
      %4351 = vrot.lane.b32.xlu0 %v3983, 10
      %v4352 = vpop.permute.xlu0 %4351
      %4353 = vrot.lane.b32.xlu0 %v3985, 10
      %v4354 = vpop.permute.xlu0 %4353
      %4355 = vrot.lane.b32.xlu0 %v3988, 10
      %v4356 = vpop.permute.xlu0 %4355
      %4357 = vrot.lane.b32.xlu0 %v3990, 10
      %v4358 = vpop.permute.xlu0 %4357
      %4359 = vrot.lane.b32.xlu0 %v3993, 10
      %v4360 = vpop.permute.xlu0 %4359
      %4361 = vrot.lane.b32.xlu0 %v3995, 10
      %v4362 = vpop.permute.xlu0 %4361
      %4363 = vrot.lane.b32.xlu0 %v3998, 10
      %v4364 = vpop.permute.xlu0 %4363
      %4365 = vrot.lane.b32.xlu0 %v4000, 10
      %v4366 = vpop.permute.xlu0 %4365
      %4367 = vrot.lane.b32.xlu0 %v4003, 10
      %v4368 = vpop.permute.xlu0 %4367
      %4369 = vrot.lane.b32.xlu0 %v4005, 10
      %v4370 = vpop.permute.xlu0 %4369
      %4371 = vrot.lane.b32.xlu0 %v4008, 10
      %v4372 = vpop.permute.xlu0 %4371
      %4373 = vrot.lane.b32.xlu0 %v4010, 10
      %v4374 = vpop.permute.xlu0 %4373
      %4375 = vrot.lane.b32.xlu0 %v4013, 10
      %v4376 = vpop.permute.xlu0 %4375
      %4377 = vrot.lane.b32.xlu0 %v4015, 10
      %v4378 = vpop.permute.xlu0 %4377
      %4379 = vrot.lane.b32.xlu0 %v4018, 10
      %v4380 = vpop.permute.xlu0 %4379
      %4381 = vrot.lane.b32.xlu0 %v4020, 10
      %v4382 = vpop.permute.xlu0 %4381
      %4383 = vrot.lane.b32.xlu0 %v4023, 10
      %v4384 = vpop.permute.xlu0 %4383
      %4385 = vrot.lane.b32.xlu0 %v4025, 10
      %v4386 = vpop.permute.xlu0 %4385
      %4387 = vrot.lane.b32.xlu0 %v4324, 10
      %v4388 = vpop.permute.xlu0 %4387
      %4389 = vrot.lane.b32.xlu0 %v4326, 10
      %v4390 = vpop.permute.xlu0 %4389
      %4425 = vrot.lane.b32.xlu0 %v3674, 12
      %v4426 = vpop.permute.xlu0 %4425
      %4427 = vrot.lane.b32.xlu0 %v3675, 12
      %v4428 = vpop.permute.xlu0 %4427
      %4429 = vrot.lane.b32.xlu0 %v3677, 12
      %v4430 = vpop.permute.xlu0 %4429
      %4431 = vrot.lane.b32.xlu0 %v3678, 12
      %v4432 = vpop.permute.xlu0 %4431
      %4433 = vrot.lane.b32.xlu0 %v3680, 12
      %v4434 = vpop.permute.xlu0 %4433
      %4435 = vrot.lane.b32.xlu0 %v3681, 12
      %v4436 = vpop.permute.xlu0 %4435
      %4437 = vrot.lane.b32.xlu0 %v3683, 12
      %v4438 = vpop.permute.xlu0 %4437
      %4439 = vrot.lane.b32.xlu0 %v3684, 12
      %v4440 = vpop.permute.xlu0 %4439
      %4441 = vrot.lane.b32.xlu0 %v3686, 12
      %v4442 = vpop.permute.xlu0 %4441
      %4443 = vrot.lane.b32.xlu0 %v3687, 12
      %v4444 = vpop.permute.xlu0 %4443
      %4445 = vrot.lane.b32.xlu0 %v3689, 12
      %v4446 = vpop.permute.xlu0 %4445
      %4447 = vrot.lane.b32.xlu0 %v3690, 12
      %v4448 = vpop.permute.xlu0 %4447
      %4449 = vrot.lane.b32.xlu0 %v3692, 12
      %v4450 = vpop.permute.xlu0 %4449
      %4451 = vrot.lane.b32.xlu0 %v3693, 12
      %v4452 = vpop.permute.xlu0 %4451
      %4453 = vrot.lane.b32.xlu0 %v3695, 12
      %v4454 = vpop.permute.xlu0 %4453
      %4455 = vrot.lane.b32.xlu0 %v3696, 12
      %v4456 = vpop.permute.xlu0 %4455
      %4457 = vrot.lane.b32.xlu0 %v3698, 12
      %v4458 = vpop.permute.xlu0 %4457
      %4459 = vrot.lane.b32.xlu0 %v3699, 12
      %v4460 = vpop.permute.xlu0 %4459
      %4461 = vrot.lane.b32.xlu0 %v3701, 12
      %v4462 = vpop.permute.xlu0 %4461
      %4463 = vrot.lane.b32.xlu0 %v3702, 12
      %v4464 = vpop.permute.xlu0 %4463
      %4465 = vrot.lane.b32.xlu0 %v3704, 12
      %v4466 = vpop.permute.xlu0 %4465
      %4467 = vrot.lane.b32.xlu0 %v3705, 12
      %v4468 = vpop.permute.xlu0 %4467
      %4469 = vrot.lane.b32.xlu0 %v3707, 12
      %v4470 = vpop.permute.xlu0 %4469
      %4471 = vrot.lane.b32.xlu0 %v3708, 12
      %v4472 = vpop.permute.xlu0 %4471
      %4473 = vrot.lane.b32.xlu0 %v3710, 12
      %v4474 = vpop.permute.xlu0 %4473
      %4475 = vrot.lane.b32.xlu0 %v3711, 12
      %v4476 = vpop.permute.xlu0 %4475
      %4477 = vrot.lane.b32.xlu0 %v3713, 12
      %v4478 = vpop.permute.xlu0 %4477
      %4479 = vrot.lane.b32.xlu0 %v3714, 12
      %v4480 = vpop.permute.xlu0 %4479
      %4481 = vrot.lane.b32.xlu0 %v3716, 12
      %v4482 = vpop.permute.xlu0 %4481
      %4483 = vrot.lane.b32.xlu0 %v3717, 12
      %v4484 = vpop.permute.xlu0 %4483
      %4485 = vrot.lane.b32.xlu0 %v3719, 12
      %v4486 = vpop.permute.xlu0 %4485
      %4487 = vrot.lane.b32.xlu0 %v3720, 12
      %v4488 = vpop.permute.xlu0 %4487
      %v4522 = vrot.slane %v3719, 1
      %v4523 = vrot.slane %v3720, 1
      %v4524 = vsel %vm608, %v4522, %v4523
      %v4525 = vrot.slane %v3721, 1
      %v4526 = vsel %vm608, %v4523, %v4525
      %4527 = vrot.lane.b32.xlu0 %v3782, 14
      %v4528 = vpop.permute.xlu0 %4527
      %4529 = vrot.lane.b32.xlu0 %v3784, 14
      %v4530 = vpop.permute.xlu0 %4529
      %4531 = vrot.lane.b32.xlu0 %v3787, 14
      %v4532 = vpop.permute.xlu0 %4531
      %4533 = vrot.lane.b32.xlu0 %v3789, 14
      %v4534 = vpop.permute.xlu0 %4533
      %4535 = vrot.lane.b32.xlu0 %v3792, 14
      %v4536 = vpop.permute.xlu0 %4535
      %4537 = vrot.lane.b32.xlu0 %v3794, 14
      %v4538 = vpop.permute.xlu0 %4537
      %4539 = vrot.lane.b32.xlu0 %v3797, 14
      %v4540 = vpop.permute.xlu0 %4539
      %4541 = vrot.lane.b32.xlu0 %v3799, 14
      %v4542 = vpop.permute.xlu0 %4541
      %4543 = vrot.lane.b32.xlu0 %v3802, 14
      %v4544 = vpop.permute.xlu0 %4543
      %4545 = vrot.lane.b32.xlu0 %v3804, 14
      %v4546 = vpop.permute.xlu0 %4545
      %4547 = vrot.lane.b32.xlu0 %v3807, 14
      %v4548 = vpop.permute.xlu0 %4547
      %4549 = vrot.lane.b32.xlu0 %v3809, 14
      %v4550 = vpop.permute.xlu0 %4549
      %4551 = vrot.lane.b32.xlu0 %v3812, 14
      %v4552 = vpop.permute.xlu0 %4551
      %4553 = vrot.lane.b32.xlu0 %v3814, 14
      %v4554 = vpop.permute.xlu0 %4553
      %4555 = vrot.lane.b32.xlu0 %v3817, 14
      %v4556 = vpop.permute.xlu0 %4555
      %4557 = vrot.lane.b32.xlu0 %v3819, 14
      %v4558 = vpop.permute.xlu0 %4557
      %4559 = vrot.lane.b32.xlu0 %v3822, 14
      %v4560 = vpop.permute.xlu0 %4559
      %4561 = vrot.lane.b32.xlu0 %v3824, 14
      %v4562 = vpop.permute.xlu0 %4561
      %4563 = vrot.lane.b32.xlu0 %v3827, 14
      %v4564 = vpop.permute.xlu0 %4563
      %4565 = vrot.lane.b32.xlu0 %v3829, 14
      %v4566 = vpop.permute.xlu0 %4565
      %4567 = vrot.lane.b32.xlu0 %v3832, 14
      %v4568 = vpop.permute.xlu0 %4567
      %4569 = vrot.lane.b32.xlu0 %v3834, 14
      %v4570 = vpop.permute.xlu0 %4569
      %4571 = vrot.lane.b32.xlu0 %v3837, 14
      %v4572 = vpop.permute.xlu0 %4571
      %4573 = vrot.lane.b32.xlu0 %v3839, 14
      %v4574 = vpop.permute.xlu0 %4573
      %4575 = vrot.lane.b32.xlu0 %v3842, 14
      %v4576 = vpop.permute.xlu0 %4575
      %4577 = vrot.lane.b32.xlu0 %v3844, 14
      %v4578 = vpop.permute.xlu0 %4577
      %4579 = vrot.lane.b32.xlu0 %v3847, 14
      %v4580 = vpop.permute.xlu0 %4579
      %4581 = vrot.lane.b32.xlu0 %v3849, 14
      %v4582 = vpop.permute.xlu0 %4581
      %4583 = vrot.lane.b32.xlu0 %v4223, 14
      %v4584 = vpop.permute.xlu0 %4583
      %4585 = vrot.lane.b32.xlu0 %v4225, 14
      %v4586 = vpop.permute.xlu0 %4585
      %4587 = vrot.lane.b32.xlu0 %v4524, 14
      %v4588 = vpop.permute.xlu0 %4587
      %4589 = vrot.lane.b32.xlu0 %v4526, 14
      %v4590 = vpop.permute.xlu0 %4589
      %v4623 = vrot.slane %v3719, 2
      %v4624 = vrot.slane %v3720, 2
      %v4625 = vsel %vm789, %v4623, %v4624
      %v4626 = vrot.slane %v3721, 2
      %v4627 = vsel %vm789, %v4624, %v4626
      %4628 = vrot.lane.b32.xlu0 %v3958, 16
      %v4629 = vpop.permute.xlu0 %4628
      %4630 = vrot.lane.b32.xlu0 %v3960, 16
      %v4631 = vpop.permute.xlu0 %4630
      %4632 = vrot.lane.b32.xlu0 %v3963, 16
      %v4633 = vpop.permute.xlu0 %4632
      %4634 = vrot.lane.b32.xlu0 %v3965, 16
      %v4635 = vpop.permute.xlu0 %4634
      %4636 = vrot.lane.b32.xlu0 %v3968, 16
      %v4637 = vpop.permute.xlu0 %4636
      %4638 = vrot.lane.b32.xlu0 %v3970, 16
      %v4639 = vpop.permute.xlu0 %4638
      %4640 = vrot.lane.b32.xlu0 %v3973, 16
      %v4641 = vpop.permute.xlu0 %4640
      %4642 = vrot.lane.b32.xlu0 %v3975, 16
      %v4643 = vpop.permute.xlu0 %4642
      %4644 = vrot.lane.b32.xlu0 %v3978, 16
      %v4645 = vpop.permute.xlu0 %4644
      %4646 = vrot.lane.b32.xlu0 %v3980, 16
      %v4647 = vpop.permute.xlu0 %4646
      %4648 = vrot.lane.b32.xlu0 %v3983, 16
      %v4649 = vpop.permute.xlu0 %4648
      %4650 = vrot.lane.b32.xlu0 %v3985, 16
      %v4651 = vpop.permute.xlu0 %4650
      %4652 = vrot.lane.b32.xlu0 %v3988, 16
      %v4653 = vpop.permute.xlu0 %4652
      %4654 = vrot.lane.b32.xlu0 %v3990, 16
      %v4655 = vpop.permute.xlu0 %4654
      %4656 = vrot.lane.b32.xlu0 %v3993, 16
      %v4657 = vpop.permute.xlu0 %4656
      %4658 = vrot.lane.b32.xlu0 %v3995, 16
      %v4659 = vpop.permute.xlu0 %4658
      %4660 = vrot.lane.b32.xlu0 %v3998, 16
      %v4661 = vpop.permute.xlu0 %4660
      %4662 = vrot.lane.b32.xlu0 %v4000, 16
      %v4663 = vpop.permute.xlu0 %4662
      %4664 = vrot.lane.b32.xlu0 %v4003, 16
      %v4665 = vpop.permute.xlu0 %4664
      %4666 = vrot.lane.b32.xlu0 %v4005, 16
      %v4667 = vpop.permute.xlu0 %4666
      %4668 = vrot.lane.b32.xlu0 %v4008, 16
      %v4669 = vpop.permute.xlu0 %4668
      %4670 = vrot.lane.b32.xlu0 %v4010, 16
      %v4671 = vpop.permute.xlu0 %4670
      %4672 = vrot.lane.b32.xlu0 %v4013, 16
      %v4673 = vpop.permute.xlu0 %4672
      %4674 = vrot.lane.b32.xlu0 %v4015, 16
      %v4675 = vpop.permute.xlu0 %4674
      %4676 = vrot.lane.b32.xlu0 %v4018, 16
      %v4677 = vpop.permute.xlu0 %4676
      %4678 = vrot.lane.b32.xlu0 %v4020, 16
      %v4679 = vpop.permute.xlu0 %4678
      %4680 = vrot.lane.b32.xlu0 %v4023, 16
      %v4681 = vpop.permute.xlu0 %4680
      %4682 = vrot.lane.b32.xlu0 %v4025, 16
      %v4683 = vpop.permute.xlu0 %4682
      %4684 = vrot.lane.b32.xlu0 %v4324, 16
      %v4685 = vpop.permute.xlu0 %4684
      %4686 = vrot.lane.b32.xlu0 %v4326, 16
      %v4687 = vpop.permute.xlu0 %4686
      %4688 = vrot.lane.b32.xlu0 %v4625, 16
      %v4689 = vpop.permute.xlu0 %4688
      %4690 = vrot.lane.b32.xlu0 %v4627, 16
      %v4691 = vpop.permute.xlu0 %4690
      %v4724 = vsel %vm2086, %v3668, %v3851
      %v4725 = vsel %vm2086, %v3669, %v3853
      %v4726 = vsel %vm2086, %v3671, %v3855
      %v4727 = vsel %vm2086, %v3672, %v3857
      %v4728 = vsel %vm2086, %v3674, %v3859
      %v4729 = vsel %vm2086, %v3675, %v3861
      %v4730 = vsel %vm2086, %v3677, %v3863
      %v4731 = vsel %vm2086, %v3678, %v3865
      %v4732 = vsel %vm2086, %v3680, %v3867
      %v4733 = vsel %vm2086, %v3681, %v3869
      %v4734 = vsel %vm2086, %v3683, %v3871
      %v4735 = vsel %vm2086, %v3684, %v3873
      %v4736 = vsel %vm2086, %v3686, %v3875
      %v4737 = vsel %vm2086, %v3687, %v3877
      %v4738 = vsel %vm2086, %v3689, %v3879
      %v4739 = vsel %vm2086, %v3690, %v3881
      %v4740 = vsel %vm2086, %v3692, %v3883
      %v4741 = vsel %vm2086, %v3693, %v3885
      %v4742 = vsel %vm2086, %v3695, %v3887
      %v4743 = vsel %vm2086, %v3696, %v3889
      %v4744 = vsel %vm2086, %v3698, %v3891
      %v4745 = vsel %vm2086, %v3699, %v3893
      %v4746 = vsel %vm2086, %v3701, %v3895
      %v4747 = vsel %vm2086, %v3702, %v3897
      %v4748 = vsel %vm2086, %v3704, %v3899
      %v4749 = vsel %vm2086, %v3705, %v3901
      %v4750 = vsel %vm2086, %v3707, %v3903
      %v4751 = vsel %vm2086, %v3708, %v3905
      %v4752 = vsel %vm2086, %v3710, %v3907
      %v4753 = vsel %vm2086, %v3711, %v3909
      %v4754 = vsel %vm2086, %v3713, %v3911
      %v4755 = vsel %vm2086, %v3714, %v3913
      %v4756 = vsel %vm2141, %v4724, %v4027
      %v4757 = vsel %vm2141, %v4725, %v4029
      %v4758 = vsel %vm2141, %v4726, %v4031
      %v4759 = vsel %vm2141, %v4727, %v4033
      %v4760 = vsel %vm2141, %v4728, %v4035
      %v4761 = vsel %vm2141, %v4729, %v4037
      %v4762 = vsel %vm2141, %v4730, %v4039
      %v4763 = vsel %vm2141, %v4731, %v4041
      %v4764 = vsel %vm2141, %v4732, %v4043
      %v4765 = vsel %vm2141, %v4733, %v4045
      %v4766 = vsel %vm2141, %v4734, %v4047
      %v4767 = vsel %vm2141, %v4735, %v4049
      %v4768 = vsel %vm2141, %v4736, %v4051
      %v4769 = vsel %vm2141, %v4737, %v4053
      %v4770 = vsel %vm2141, %v4738, %v4055
      %v4771 = vsel %vm2141, %v4739, %v4057
      %v4772 = vsel %vm2141, %v4740, %v4059
      %v4773 = vsel %vm2141, %v4741, %v4061
      %v4774 = vsel %vm2141, %v4742, %v4063
      %v4775 = vsel %vm2141, %v4743, %v4065
      %v4776 = vsel %vm2141, %v4744, %v4067
      %v4777 = vsel %vm2141, %v4745, %v4069
      %v4778 = vsel %vm2141, %v4746, %v4071
      %v4779 = vsel %vm2141, %v4747, %v4073
      %v4780 = vsel %vm2141, %v4748, %v4075
      %v4781 = vsel %vm2141, %v4749, %v4077
      %v4782 = vsel %vm2141, %v4750, %v4079
      %v4783 = vsel %vm2141, %v4751, %v4081
      %v4784 = vsel %vm2141, %v4752, %v4083
      %v4785 = vsel %vm2141, %v4753, %v4085
      %v4786 = vsel %vm2141, %v4754, %v4087
      %v4787 = vsel %vm2141, %v4755, %v4089
      %v4788 = vsel %vm2196, %v4756, %v4125
      %v4789 = vsel %vm2196, %v4757, %v4127
      %v4790 = vsel %vm2196, %v4758, %v4129
      %v4791 = vsel %vm2196, %v4759, %v4131
      %v4792 = vsel %vm2196, %v4760, %v4133
      %v4793 = vsel %vm2196, %v4761, %v4135
      %v4794 = vsel %vm2196, %v4762, %v4137
      %v4795 = vsel %vm2196, %v4763, %v4139
      %v4796 = vsel %vm2196, %v4764, %v4141
      %v4797 = vsel %vm2196, %v4765, %v4143
      %v4798 = vsel %vm2196, %v4766, %v4145
      %v4799 = vsel %vm2196, %v4767, %v4147
      %v4800 = vsel %vm2196, %v4768, %v4149
      %v4801 = vsel %vm2196, %v4769, %v4151
      %v4802 = vsel %vm2196, %v4770, %v4153
      %v4803 = vsel %vm2196, %v4771, %v4155
      %v4804 = vsel %vm2196, %v4772, %v4157
      %v4805 = vsel %vm2196, %v4773, %v4159
      %v4806 = vsel %vm2196, %v4774, %v4161
      %v4807 = vsel %vm2196, %v4775, %v4163
      %v4808 = vsel %vm2196, %v4776, %v4165
      %v4809 = vsel %vm2196, %v4777, %v4167
      %v4810 = vsel %vm2196, %v4778, %v4169
      %v4811 = vsel %vm2196, %v4779, %v4171
      %v4812 = vsel %vm2196, %v4780, %v4173
      %v4813 = vsel %vm2196, %v4781, %v4175
      %v4814 = vsel %vm2196, %v4782, %v4177
      %v4815 = vsel %vm2196, %v4783, %v4179
      %v4816 = vsel %vm2196, %v4784, %v4181
      %v4817 = vsel %vm2196, %v4785, %v4183
      %v4818 = vsel %vm2196, %v4786, %v4185
      %v4819 = vsel %vm2196, %v4787, %v4187
      %v4820 = vsel %vm2251, %v4788, %v4227
      %v4821 = vsel %vm2251, %v4789, %v4229
      %v4822 = vsel %vm2251, %v4790, %v4231
      %v4823 = vsel %vm2251, %v4791, %v4233
      %v4824 = vsel %vm2251, %v4792, %v4235
      %v4825 = vsel %vm2251, %v4793, %v4237
      %v4826 = vsel %vm2251, %v4794, %v4239
      %v4827 = vsel %vm2251, %v4795, %v4241
      %v4828 = vsel %vm2251, %v4796, %v4243
      %v4829 = vsel %vm2251, %v4797, %v4245
      %v4830 = vsel %vm2251, %v4798, %v4247
      %v4831 = vsel %vm2251, %v4799, %v4249
      %v4832 = vsel %vm2251, %v4800, %v4251
      %v4833 = vsel %vm2251, %v4801, %v4253
      %v4834 = vsel %vm2251, %v4802, %v4255
      %v4835 = vsel %vm2251, %v4803, %v4257
      %v4836 = vsel %vm2251, %v4804, %v4259
      %v4837 = vsel %vm2251, %v4805, %v4261
      %v4838 = vsel %vm2251, %v4806, %v4263
      %v4839 = vsel %vm2251, %v4807, %v4265
      %v4840 = vsel %vm2251, %v4808, %v4267
      %v4841 = vsel %vm2251, %v4809, %v4269
      %v4842 = vsel %vm2251, %v4810, %v4271
      %v4843 = vsel %vm2251, %v4811, %v4273
      %v4844 = vsel %vm2251, %v4812, %v4275
      %v4845 = vsel %vm2251, %v4813, %v4277
      %v4846 = vsel %vm2251, %v4814, %v4279
      %v4847 = vsel %vm2251, %v4815, %v4281
      %v4848 = vsel %vm2251, %v4816, %v4283
      %v4849 = vsel %vm2251, %v4817, %v4285
      %v4850 = vsel %vm2251, %v4818, %v4287
      %v4851 = vsel %vm2251, %v4819, %v4289
      %v4852 = vsel %vm2306, %v4820, %v4328
      %v4853 = vsel %vm2306, %v4821, %v4330
      %v4854 = vsel %vm2306, %v4822, %v4332
      %v4855 = vsel %vm2306, %v4823, %v4334
      %v4856 = vsel %vm2306, %v4824, %v4336
      %v4857 = vsel %vm2306, %v4825, %v4338
      %v4858 = vsel %vm2306, %v4826, %v4340
      %v4859 = vsel %vm2306, %v4827, %v4342
      %v4860 = vsel %vm2306, %v4828, %v4344
      %v4861 = vsel %vm2306, %v4829, %v4346
      %v4862 = vsel %vm2306, %v4830, %v4348
      %v4863 = vsel %vm2306, %v4831, %v4350
      %v4864 = vsel %vm2306, %v4832, %v4352
      %v4865 = vsel %vm2306, %v4833, %v4354
      %v4866 = vsel %vm2306, %v4834, %v4356
      %v4867 = vsel %vm2306, %v4835, %v4358
      %v4868 = vsel %vm2306, %v4836, %v4360
      %v4869 = vsel %vm2306, %v4837, %v4362
      %v4870 = vsel %vm2306, %v4838, %v4364
      %v4871 = vsel %vm2306, %v4839, %v4366
      %v4872 = vsel %vm2306, %v4840, %v4368
      %v4873 = vsel %vm2306, %v4841, %v4370
      %v4874 = vsel %vm2306, %v4842, %v4372
      %v4875 = vsel %vm2306, %v4843, %v4374
      %v4876 = vsel %vm2306, %v4844, %v4376
      %v4877 = vsel %vm2306, %v4845, %v4378
      %v4878 = vsel %vm2306, %v4846, %v4380
      %v4879 = vsel %vm2306, %v4847, %v4382
      %v4880 = vsel %vm2306, %v4848, %v4384
      %v4881 = vsel %vm2306, %v4849, %v4386
      %v4882 = vsel %vm2306, %v4850, %v4388
      %v4883 = vsel %vm2306, %v4851, %v4390
      %v4884 = vsel %vm2361, %v4852, %v4426
      %v4885 = vsel %vm2361, %v4853, %v4428
      %v4886 = vsel %vm2361, %v4854, %v4430
      %v4887 = vsel %vm2361, %v4855, %v4432
      %v4888 = vsel %vm2361, %v4856, %v4434
      %v4889 = vsel %vm2361, %v4857, %v4436
      %v4890 = vsel %vm2361, %v4858, %v4438
      %v4891 = vsel %vm2361, %v4859, %v4440
      %v4892 = vsel %vm2361, %v4860, %v4442
      %v4893 = vsel %vm2361, %v4861, %v4444
      %v4894 = vsel %vm2361, %v4862, %v4446
      %v4895 = vsel %vm2361, %v4863, %v4448
      %v4896 = vsel %vm2361, %v4864, %v4450
      %v4897 = vsel %vm2361, %v4865, %v4452
      %v4898 = vsel %vm2361, %v4866, %v4454
      %v4899 = vsel %vm2361, %v4867, %v4456
      %v4900 = vsel %vm2361, %v4868, %v4458
      %v4901 = vsel %vm2361, %v4869, %v4460
      %v4902 = vsel %vm2361, %v4870, %v4462
      %v4903 = vsel %vm2361, %v4871, %v4464
      %v4904 = vsel %vm2361, %v4872, %v4466
      %v4905 = vsel %vm2361, %v4873, %v4468
      %v4906 = vsel %vm2361, %v4874, %v4470
      %v4907 = vsel %vm2361, %v4875, %v4472
      %v4908 = vsel %vm2361, %v4876, %v4474
      %v4909 = vsel %vm2361, %v4877, %v4476
      %v4910 = vsel %vm2361, %v4878, %v4478
      %v4911 = vsel %vm2361, %v4879, %v4480
      %v4912 = vsel %vm2361, %v4880, %v4482
      %v4913 = vsel %vm2361, %v4881, %v4484
      %v4914 = vsel %vm2361, %v4882, %v4486
      %v4915 = vsel %vm2361, %v4883, %v4488
      %v4916 = vsel %vm2416, %v4884, %v4528
      %v4917 = vsel %vm2416, %v4885, %v4530
      %v4918 = vsel %vm2416, %v4886, %v4532
      %v4919 = vsel %vm2416, %v4887, %v4534
      %v4920 = vsel %vm2416, %v4888, %v4536
      %v4921 = vsel %vm2416, %v4889, %v4538
      %v4922 = vsel %vm2416, %v4890, %v4540
      %v4923 = vsel %vm2416, %v4891, %v4542
      %v4924 = vsel %vm2416, %v4892, %v4544
      %v4925 = vsel %vm2416, %v4893, %v4546
      %v4926 = vsel %vm2416, %v4894, %v4548
      %v4927 = vsel %vm2416, %v4895, %v4550
      %v4928 = vsel %vm2416, %v4896, %v4552
      %v4929 = vsel %vm2416, %v4897, %v4554
      %v4930 = vsel %vm2416, %v4898, %v4556
      %v4931 = vsel %vm2416, %v4899, %v4558
      %v4932 = vsel %vm2416, %v4900, %v4560
      %v4933 = vsel %vm2416, %v4901, %v4562
      %v4934 = vsel %vm2416, %v4902, %v4564
      %v4935 = vsel %vm2416, %v4903, %v4566
      %v4936 = vsel %vm2416, %v4904, %v4568
      %v4937 = vsel %vm2416, %v4905, %v4570
      %v4938 = vsel %vm2416, %v4906, %v4572
      %v4939 = vsel %vm2416, %v4907, %v4574
      %v4940 = vsel %vm2416, %v4908, %v4576
      %v4941 = vsel %vm2416, %v4909, %v4578
      %v4942 = vsel %vm2416, %v4910, %v4580
      %v4943 = vsel %vm2416, %v4911, %v4582
      %v4944 = vsel %vm2416, %v4912, %v4584
      %v4945 = vsel %vm2416, %v4913, %v4586
      %v4946 = vsel %vm2416, %v4914, %v4588
      %v4947 = vsel %vm2416, %v4915, %v4590
      %v4948 = vsel %vm2471, %v4916, %v4629
      %v4949 = vsel %vm2471, %v4917, %v4631
      %v4950 = vsel %vm2471, %v4918, %v4633
      %v4951 = vsel %vm2471, %v4919, %v4635
      %v4952 = vsel %vm2471, %v4920, %v4637
      %v4953 = vsel %vm2471, %v4921, %v4639
      %v4954 = vsel %vm2471, %v4922, %v4641
      %v4955 = vsel %vm2471, %v4923, %v4643
      %v4956 = vsel %vm2471, %v4924, %v4645
      %v4957 = vsel %vm2471, %v4925, %v4647
      %v4958 = vsel %vm2471, %v4926, %v4649
      %v4959 = vsel %vm2471, %v4927, %v4651
      %v4960 = vsel %vm2471, %v4928, %v4653
      %v4961 = vsel %vm2471, %v4929, %v4655
      %v4962 = vsel %vm2471, %v4930, %v4657
      %v4963 = vsel %vm2471, %v4931, %v4659
      %v4964 = vsel %vm2471, %v4932, %v4661
      %v4965 = vsel %vm2471, %v4933, %v4663
      %v4966 = vsel %vm2471, %v4934, %v4665
      %v4967 = vsel %vm2471, %v4935, %v4667
      %v4968 = vsel %vm2471, %v4936, %v4669
      %v4969 = vsel %vm2471, %v4937, %v4671
      %v4970 = vsel %vm2471, %v4938, %v4673
      %v4971 = vsel %vm2471, %v4939, %v4675
      %v4972 = vsel %vm2471, %v4940, %v4677
      %v4973 = vsel %vm2471, %v4941, %v4679
      %v4974 = vsel %vm2471, %v4942, %v4681
      %v4975 = vsel %vm2471, %v4943, %v4683
      %v4976 = vsel %vm2471, %v4944, %v4685
      %v4977 = vsel %vm2471, %v4945, %v4687
      %v4978 = vsel %vm2471, %v4946, %v4689
      %v4979 = vsel %vm2471, %v4947, %v4691
      %v4980 = vld [vmem:[%s3] sm:$0xff]
      %v4981 = vld [vmem:[%s3 + $0x8] sm:$0xff]
      %v4982 = vld [vmem:[%s3 + $0x10] sm:$0x3]
      %v4983 = vld [vmem:[%s4] sm:$0x1]
      %v4985 = vlaneseq
      %v4986 = vshrl.u32 %v4985, 7
      %v4987 = vsub.s32 0, %v4986
      %v4988 = vrot.slane %v4983, %v4987
      %v4991 = vsel %vm2536, %v4948, 0
      %v4994 = vsel %vm2536, %v4949, 0
      %v4997 = vsel %vm2536, %v4950, 0
      %v5000 = vsel %vm2536, %v4951, 0
      %v5003 = vsel %vm2536, %v4952, 0
      %v5006 = vsel %vm2536, %v4953, 0
      %v5009 = vsel %vm2536, %v4954, 0
      %v5012 = vsel %vm2536, %v4955, 0
      %v5015 = vsel %vm2536, %v4956, 0
      %v5018 = vsel %vm2536, %v4957, 0
      %v5021 = vsel %vm2536, %v4958, 0
      %v5024 = vsel %vm2536, %v4959, 0
      %v5027 = vsel %vm2536, %v4960, 0
      %v5030 = vsel %vm2536, %v4961, 0
      %v5033 = vsel %vm2536, %v4962, 0
      %v5036 = vsel %vm2536, %v4963, 0
      %v5039 = vsel %vm2536, %v4964, 0
      %v5042 = vsel %vm2536, %v4965, 0
      %v5045 = vsel %vm2536, %v4966, 0
      %v5048 = vsel %vm2536, %v4967, 0
      %v5051 = vsel %vm2536, %v4968, 0
      %v5054 = vsel %vm2536, %v4969, 0
      %v5057 = vsel %vm2536, %v4970, 0
      %v5060 = vsel %vm2536, %v4971, 0
      %v5063 = vsel %vm2536, %v4972, 0
      %v5066 = vsel %vm2536, %v4973, 0
      %v5069 = vsel %vm2536, %v4974, 0
      %v5072 = vsel %vm2536, %v4975, 0
      %v5075 = vsel %vm2536, %v4976, 0
      %v5078 = vsel %vm2536, %v4977, 0
      %v5081 = vsel %vm2536, %v4978, 0
      %v5084 = vsel %vm2536, %v4979, 0
      %v5087 = vsel %vm2699, %v4982, 0
      %5089 = vmatprep.subr.mxu0 0.0
      %5090 = vmatpush1.msra.mxu0 %v4980
      %5091 = vmatprep.subr.mxu0 0.0
      %5092 = vmatpush1.msra.mxu0 %v4981
      %5093 = vmatprep.subr.mxu0 0.0
      %5094 = vmatpush1.msra.mxu0 %v5087
      %5095 = vmatprep.subr.mxu0 0.0
      %5096 = vmatpush1.msra.mxu0 0.0
      %5097 = vmatprep.subr.mxu0 0.0
      %5098 = vmatpush1.msra.mxu0 0.0
      %5099 = vmatprep.subr.mxu0 0.0
      %5100 = vmatpush1.msra.mxu0 0.0
      %5101 = vmatprep.subr.mxu0 0.0
      %5102 = vmatpush1.msra.mxu0 0.0
      %5103 = vmatprep.subr.mxu0 0.0
      %5104 = vmatpush1.msra.mxu0 0.0
      %5105 = vmatprep.subr.mxu0 0.0
      %5106 = vmatpush1.msra.mxu0 0.0
      %5107 = vmatprep.subr.mxu0 0.0
      %5108 = vmatpush1.msra.mxu0 0.0
      %5109 = vmatprep.subr.mxu0 0.0
      %5110 = vmatpush1.msra.mxu0 0.0
      %5111 = vmatprep.subr.mxu0 0.0
      %5112 = vmatpush1.msra.mxu0 0.0
      %5113 = vmatprep.subr.mxu0 0.0
      %5114 = vmatpush1.msra.mxu0 0.0
      %5115 = vmatprep.subr.mxu0 0.0
      %5116 = vmatpush1.msra.mxu0 0.0
      %5117 = vmatprep.subr.mxu0 0.0
      %5118 = vmatpush1.msra.mxu0 0.0
      %5119 = vmatprep.subr.mxu0 0.0
      %5120 = vmatpush1.msra.mxu0 0.0
      %5121 = vmatprep.subr.mxu0 0.0
      %5122 = vmatpush1.msra.mxu0 0.0
      %5123 = vmatprep.subr.mxu0 0.0
      %5124 = vmatpush1.msra.mxu0 0.0
      %5125 = vmatprep.subr.mxu0 0.0
      %5126 = vmatpush1.msra.mxu0 0.0
      %5127 = vmatprep.subr.mxu0 0.0
      %5128 = vmatpush1.msra.mxu0 0.0
      %5129 = vmatprep.subr.mxu0 0.0
      %5130 = vmatpush1.msra.mxu0 0.0
      %5131 = vmatprep.subr.mxu0 0.0
      %5132 = vmatpush1.msra.mxu0 0.0
      %5133 = vmatprep.subr.mxu0 0.0
      %5134 = vmatpush1.msra.mxu0 0.0
      %5135 = vmatprep.subr.mxu0 0.0
      %5136 = vmatpush1.msra.mxu0 0.0
      %5137 = vmatprep.subr.mxu0 0.0
      %5138 = vmatpush1.msra.mxu0 0.0
      %5139 = vmatprep.subr.mxu0 0.0
      %5140 = vmatpush1.msra.mxu0 0.0
      %5141 = vmatprep.subr.mxu0 0.0
      %5142 = vmatpush1.msra.mxu0 0.0
      %5143 = vmatprep.subr.mxu0 0.0
      %5144 = vmatpush1.msra.mxu0 0.0
      %5145 = vmatprep.subr.mxu0 0.0
      %5146 = vmatpush1.msra.mxu0 0.0
      %5147 = vmatprep.subr.mxu0 0.0
      %5148 = vmatpush1.msra.mxu0 0.0
      %5149 = vmatprep.subr.mxu0 0.0
      %5150 = vmatpush1.msra.mxu0 0.0
      %5151 = vmatprep.subr.mxu0 0.0
      %5152 = vmatpush1.msra.mxu0 0.0
      %5153 = vmatprep.mubr.f32.mxu0 0.0
      %5154 = vmatmul.mubr.f32.gmra.mrb[0].mxu0 %v4991
      %v5155 = vpop.f32.mrb[0].mxu0
      %v5156 = vadd.f32 %v4988, %v5155
      %v5157 = vpop.f32.mrb[0].mxu0
      %5158 = vmatprep.mubr.f32.mxu0 0.0
      %5159 = vmatmul.mubr.f32.gmra.mrb[0].mxu0 %v4994
      %v5160 = vpop.f32.mrb[0].mxu0
      %v5161 = vadd.f32 %v4988, %v5160
      %v5162 = vpop.f32.mrb[0].mxu0
      %5163 = vmatprep.mubr.f32.mxu0 0.0
      %5164 = vmatmul.mubr.f32.gmra.mrb[0].mxu0 %v4997
      %v5165 = vpop.f32.mrb[0].mxu0
      %v5166 = vadd.f32 %v4988, %v5165
      %v5167 = vpop.f32.mrb[0].mxu0
      %5168 = vmatprep.mubr.f32.mxu0 0.0
      %5169 = vmatmul.mubr.f32.gmra.mrb[0].mxu0 %v5000
      %v5170 = vpop.f32.mrb[0].mxu0
      %v5171 = vadd.f32 %v4988, %v5170
      %v5172 = vpop.f32.mrb[0].mxu0
      %5173 = vmatprep.mubr.f32.mxu0 0.0
      %5174 = vmatmul.mubr.f32.gmra.mrb[0].mxu0 %v5003
      %v5175 = vpop.f32.mrb[0].mxu0
      %v5176 = vadd.f32 %v4988, %v5175
      %v5177 = vpop.f32.mrb[0].mxu0
      %5178 = vmatprep.mubr.f32.mxu0 0.0
      %5179 = vmatmul.mubr.f32.gmra.mrb[0].mxu0 %v5006
      %v5180 = vpop.f32.mrb[0].mxu0
      %v5181 = vadd.f32 %v4988, %v5180
      %v5182 = vpop.f32.mrb[0].mxu0
      %5183 = vmatprep.mubr.f32.mxu0 0.0
      %5184 = vmatmul.mubr.f32.gmra.mrb[0].mxu0 %v5009
      %v5185 = vpop.f32.mrb[0].mxu0
      %v5186 = vadd.f32 %v4988, %v5185
      %v5187 = vpop.f32.mrb[0].mxu0
      %5188 = vmatprep.mubr.f32.mxu0 0.0
      %5189 = vmatmul.mubr.f32.gmra.mrb[0].mxu0 %v5012
      %v5190 = vpop.f32.mrb[0].mxu0
      %v5191 = vadd.f32 %v4988, %v5190
      %v5192 = vpop.f32.mrb[0].mxu0
      %5193 = vmatprep.mubr.f32.mxu0 0.0
      %5194 = vmatmul.mubr.f32.gmra.mrb[0].mxu0 %v5015
      %v5195 = vpop.f32.mrb[0].mxu0
      %v5196 = vadd.f32 %v4988, %v5195
      %v5197 = vpop.f32.mrb[0].mxu0
      %5198 = vmatprep.mubr.f32.mxu0 0.0
      %5199 = vmatmul.mubr.f32.gmra.mrb[0].mxu0 %v5018
      %v5200 = vpop.f32.mrb[0].mxu0
      %v5201 = vadd.f32 %v4988, %v5200
      %v5202 = vpop.f32.mrb[0].mxu0
      %5203 = vmatprep.mubr.f32.mxu0 0.0
      %5204 = vmatmul.mubr.f32.gmra.mrb[0].mxu0 %v5021
      %v5205 = vpop.f32.mrb[0].mxu0
      %v5206 = vadd.f32 %v4988, %v5205
      %v5207 = vpop.f32.mrb[0].mxu0
      %5208 = vmatprep.mubr.f32.mxu0 0.0
      %5209 = vmatmul.mubr.f32.gmra.mrb[0].mxu0 %v5024
      %v5210 = vpop.f32.mrb[0].mxu0
      %v5211 = vadd.f32 %v4988, %v5210
      %v5212 = vpop.f32.mrb[0].mxu0
      %5213 = vmatprep.mubr.f32.mxu0 0.0
      %5214 = vmatmul.mubr.f32.gmra.mrb[0].mxu0 %v5027
      %v5215 = vpop.f32.mrb[0].mxu0
      %v5216 = vadd.f32 %v4988, %v5215
      %v5217 = vpop.f32.mrb[0].mxu0
      %5218 = vmatprep.mubr.f32.mxu0 0.0
      %5219 = vmatmul.mubr.f32.gmra.mrb[0].mxu0 %v5030
      %v5220 = vpop.f32.mrb[0].mxu0
      %v5221 = vadd.f32 %v4988, %v5220
      %v5222 = vpop.f32.mrb[0].mxu0
      %5223 = vmatprep.mubr.f32.mxu0 0.0
      %5224 = vmatmul.mubr.f32.gmra.mrb[0].mxu0 %v5033
      %v5225 = vpop.f32.mrb[0].mxu0
      %v5226 = vadd.f32 %v4988, %v5225
      %v5227 = vpop.f32.mrb[0].mxu0
      %5228 = vmatprep.mubr.f32.mxu0 0.0
      %5229 = vmatmul.mubr.f32.gmra.mrb[0].mxu0 %v5036
      %v5230 = vpop.f32.mrb[0].mxu0
      %v5231 = vadd.f32 %v4988, %v5230
      %v5232 = vpop.f32.mrb[0].mxu0
      %5233 = vmatprep.mubr.f32.mxu0 0.0
      %5234 = vmatmul.mubr.f32.gmra.mrb[0].mxu0 %v5039
      %v5235 = vpop.f32.mrb[0].mxu0
      %v5236 = vadd.f32 %v4988, %v5235
      %v5237 = vpop.f32.mrb[0].mxu0
      %5238 = vmatprep.mubr.f32.mxu0 0.0
      %5239 = vmatmul.mubr.f32.gmra.mrb[0].mxu0 %v5042
      %v5240 = vpop.f32.mrb[0].mxu0
      %v5241 = vadd.f32 %v4988, %v5240
      %v5242 = vpop.f32.mrb[0].mxu0
      %5243 = vmatprep.mubr.f32.mxu0 0.0
      %5244 = vmatmul.mubr.f32.gmra.mrb[0].mxu0 %v5045
      %v5245 = vpop.f32.mrb[0].mxu0
      %v5246 = vadd.f32 %v4988, %v5245
      %v5247 = vpop.f32.mrb[0].mxu0
      %5248 = vmatprep.mubr.f32.mxu0 0.0
      %5249 = vmatmul.mubr.f32.gmra.mrb[0].mxu0 %v5048
      %v5250 = vpop.f32.mrb[0].mxu0
      %v5251 = vadd.f32 %v4988, %v5250
      %v5252 = vpop.f32.mrb[0].mxu0
      %5253 = vmatprep.mubr.f32.mxu0 0.0
      %5254 = vmatmul.mubr.f32.gmra.mrb[0].mxu0 %v5051
      %v5255 = vpop.f32.mrb[0].mxu0
      %v5256 = vadd.f32 %v4988, %v5255
      %v5257 = vpop.f32.mrb[0].mxu0
      %5258 = vmatprep.mubr.f32.mxu0 0.0
      %5259 = vmatmul.mubr.f32.gmra.mrb[0].mxu0 %v5054
      %v5260 = vpop.f32.mrb[0].mxu0
      %v5261 = vadd.f32 %v4988, %v5260
      %v5262 = vpop.f32.mrb[0].mxu0
      %5263 = vmatprep.mubr.f32.mxu0 0.0
      %5264 = vmatmul.mubr.f32.gmra.mrb[0].mxu0 %v5057
      %v5265 = vpop.f32.mrb[0].mxu0
      %v5266 = vadd.f32 %v4988, %v5265
      %v5267 = vpop.f32.mrb[0].mxu0
      %5268 = vmatprep.mubr.f32.mxu0 0.0
      %5269 = vmatmul.mubr.f32.gmra.mrb[0].mxu0 %v5060
      %v5270 = vpop.f32.mrb[0].mxu0
      %v5271 = vadd.f32 %v4988, %v5270
      %v5272 = vpop.f32.mrb[0].mxu0
      %5273 = vmatprep.mubr.f32.mxu0 0.0
      %5274 = vmatmul.mubr.f32.gmra.mrb[0].mxu0 %v5063
      %v5275 = vpop.f32.mrb[0].mxu0
      %v5276 = vadd.f32 %v4988, %v5275
      %v5277 = vpop.f32.mrb[0].mxu0
      %5278 = vmatprep.mubr.f32.mxu0 0.0
      %5279 = vmatmul.mubr.f32.gmra.mrb[0].mxu0 %v5066
      %v5280 = vpop.f32.mrb[0].mxu0
      %v5281 = vadd.f32 %v4988, %v5280
      %v5282 = vpop.f32.mrb[0].mxu0
      %5283 = vmatprep.mubr.f32.mxu0 0.0
      %5284 = vmatmul.mubr.f32.gmra.mrb[0].mxu0 %v5069
      %v5285 = vpop.f32.mrb[0].mxu0
      %v5286 = vadd.f32 %v4988, %v5285
      %v5287 = vpop.f32.mrb[0].mxu0
      %5288 = vmatprep.mubr.f32.mxu0 0.0
      %5289 = vmatmul.mubr.f32.gmra.mrb[0].mxu0 %v5072
      %v5290 = vpop.f32.mrb[0].mxu0
      %v5291 = vadd.f32 %v4988, %v5290
      %v5292 = vpop.f32.mrb[0].mxu0
      %5293 = vmatprep.mubr.f32.mxu0 0.0
      %5294 = vmatmul.mubr.f32.gmra.mrb[0].mxu0 %v5075
      %v5295 = vpop.f32.mrb[0].mxu0
      %v5296 = vadd.f32 %v4988, %v5295
      %v5297 = vpop.f32.mrb[0].mxu0
      %5298 = vmatprep.mubr.f32.mxu0 0.0
      %5299 = vmatmul.mubr.f32.gmra.mrb[0].mxu0 %v5078
      %v5300 = vpop.f32.mrb[0].mxu0
      %v5301 = vadd.f32 %v4988, %v5300
      %v5302 = vpop.f32.mrb[0].mxu0
      %5303 = vmatprep.mubr.f32.mxu0 0.0
      %5304 = vmatmul.mubr.f32.gmra.mrb[0].mxu0 %v5081
      %v5305 = vpop.f32.mrb[0].mxu0
      %v5306 = vadd.f32 %v4988, %v5305
      %v5307 = vpop.f32.mrb[0].mxu0
      %5308 = vmatprep.mubr.f32.mxu0 0.0
      %5309 = vmatmul.mubr.f32.gmra.mrb[0].mxu0 %v5084
      %v5310 = vpop.f32.mrb[0].mxu0
      %v5311 = vadd.f32 %v4988, %v5310
      %v5312 = vpop.f32.mrb[0].mxu0
      %5313 = vdwg.mxu0
      %v5314 = vmul.f32 %v5156, 0.5
      %v5315 = vmul.f32 %v5161, 0.5
      %v5316 = vmul.f32 %v5166, 0.5
      %v5317 = vmul.f32 %v5171, 0.5
      %v5318 = vmul.f32 %v5176, 0.5
      %v5319 = vmul.f32 %v5181, 0.5
      %v5320 = vmul.f32 %v5186, 0.5
      %v5321 = vmul.f32 %v5191, 0.5
      %v5322 = vmul.f32 %v5196, 0.5
      %v5323 = vmul.f32 %v5201, 0.5
      %v5324 = vmul.f32 %v5206, 0.5
      %v5325 = vmul.f32 %v5211, 0.5
      %v5326 = vmul.f32 %v5216, 0.5
      %v5327 = vmul.f32 %v5221, 0.5
      %v5328 = vmul.f32 %v5226, 0.5
      %v5329 = vmul.f32 %v5231, 0.5
      %v5330 = vmul.f32 %v5236, 0.5
      %v5331 = vmul.f32 %v5241, 0.5
      %v5332 = vmul.f32 %v5246, 0.5
      %v5333 = vmul.f32 %v5251, 0.5
      %v5334 = vmul.f32 %v5256, 0.5
      %v5335 = vmul.f32 %v5261, 0.5
      %v5336 = vmul.f32 %v5266, 0.5
      %v5337 = vmul.f32 %v5271, 0.5
      %v5338 = vmul.f32 %v5276, 0.5
      %v5339 = vmul.f32 %v5281, 0.5
      %v5340 = vmul.f32 %v5286, 0.5
      %v5341 = vmul.f32 %v5291, 0.5
      %v5342 = vmul.f32 %v5296, 0.5
      %v5343 = vmul.f32 %v5301, 0.5
      %v5344 = vmul.f32 %v5306, 0.5
      %v5345 = vmul.f32 %v5311, 0.5
      %v5346 = vtanh.pop %v5314
      %v5347 = vtanh.pop %v5315
      %v5348 = vtanh.pop %v5316
      %v5349 = vtanh.pop %v5317
      %v5350 = vtanh.pop %v5318
      %v5351 = vtanh.pop %v5319
      %v5352 = vtanh.pop %v5320
      %v5353 = vtanh.pop %v5321
      %v5354 = vtanh.pop %v5322
      %v5355 = vtanh.pop %v5323
      %v5356 = vtanh.pop %v5324
      %v5357 = vtanh.pop %v5325
      %v5358 = vtanh.pop %v5326
      %v5359 = vtanh.pop %v5327
      %v5360 = vtanh.pop %v5328
      %v5361 = vtanh.pop %v5329
      %v5362 = vtanh.pop %v5330
      %v5363 = vtanh.pop %v5331
      %v5364 = vtanh.pop %v5332
      %v5365 = vtanh.pop %v5333
      %v5366 = vtanh.pop %v5334
      %v5367 = vtanh.pop %v5335
      %v5368 = vtanh.pop %v5336
      %v5369 = vtanh.pop %v5337
      %v5370 = vtanh.pop %v5338
      %v5371 = vtanh.pop %v5339
      %v5372 = vtanh.pop %v5340
      %v5373 = vtanh.pop %v5341
      %v5374 = vtanh.pop %v5342
      %v5375 = vtanh.pop %v5343
      %v5376 = vtanh.pop %v5344
      %v5377 = vtanh.pop %v5345
      %v5410 = vmul.f32 %v5346, 1.442695
      %v5411 = vpow.pop %v5410
      %v5412 = vmul.f32 %v5347, 1.442695
      %v5413 = vpow.pop %v5412
      %v5414 = vmul.f32 %v5348, 1.442695
      %v5415 = vpow.pop %v5414
      %v5416 = vmul.f32 %v5349, 1.442695
      %v5417 = vpow.pop %v5416
      %v5418 = vmul.f32 %v5350, 1.442695
      %v5419 = vpow.pop %v5418
      %v5420 = vmul.f32 %v5351, 1.442695
      %v5421 = vpow.pop %v5420
      %v5422 = vmul.f32 %v5352, 1.442695
      %v5423 = vpow.pop %v5422
      %v5424 = vmul.f32 %v5353, 1.442695
      %v5425 = vpow.pop %v5424
      %v5426 = vmul.f32 %v5354, 1.442695
      %v5427 = vpow.pop %v5426
      %v5428 = vmul.f32 %v5355, 1.442695
      %v5429 = vpow.pop %v5428
      %v5430 = vmul.f32 %v5356, 1.442695
      %v5431 = vpow.pop %v5430
      %v5432 = vmul.f32 %v5357, 1.442695
      %v5433 = vpow.pop %v5432
      %v5434 = vmul.f32 %v5358, 1.442695
      %v5435 = vpow.pop %v5434
      %v5436 = vmul.f32 %v5359, 1.442695
      %v5437 = vpow.pop %v5436
      %v5438 = vmul.f32 %v5360, 1.442695
      %v5439 = vpow.pop %v5438
      %v5440 = vmul.f32 %v5361, 1.442695
      %v5441 = vpow.pop %v5440
      %v5442 = vmul.f32 %v5362, 1.442695
      %v5443 = vpow.pop %v5442
      %v5444 = vmul.f32 %v5363, 1.442695
      %v5445 = vpow.pop %v5444
      %v5446 = vmul.f32 %v5364, 1.442695
      %v5447 = vpow.pop %v5446
      %v5448 = vmul.f32 %v5365, 1.442695
      %v5449 = vpow.pop %v5448
      %v5450 = vmul.f32 %v5366, 1.442695
      %v5451 = vpow.pop %v5450
      %v5452 = vmul.f32 %v5367, 1.442695
      %v5453 = vpow.pop %v5452
      %v5454 = vmul.f32 %v5368, 1.442695
      %v5455 = vpow.pop %v5454
      %v5456 = vmul.f32 %v5369, 1.442695
      %v5457 = vpow.pop %v5456
      %v5458 = vmul.f32 %v5370, 1.442695
      %v5459 = vpow.pop %v5458
      %v5460 = vmul.f32 %v5371, 1.442695
      %v5461 = vpow.pop %v5460
      %v5462 = vmul.f32 %v5372, 1.442695
      %v5463 = vpow.pop %v5462
      %v5464 = vmul.f32 %v5373, 1.442695
      %v5465 = vpow.pop %v5464
      %v5466 = vmul.f32 %v5374, 1.442695
      %v5467 = vpow.pop %v5466
      %v5468 = vmul.f32 %v5375, 1.442695
      %v5469 = vpow.pop %v5468
      %v5470 = vmul.f32 %v5376, 1.442695
      %v5471 = vpow.pop %v5470
      %v5472 = vmul.f32 %v5377, 1.442695
      %v5473 = vpow.pop %v5472
      %5506 = vrot.lane.b32.xlu0 %v5411, 2
      %v5507 = vpop.permute.xlu0 %5506
      %5508 = vrot.lane.b32.xlu0 %v5413, 2
      %v5509 = vpop.permute.xlu0 %5508
      %5510 = vrot.lane.b32.xlu0 %v5415, 2
      %v5511 = vpop.permute.xlu0 %5510
      %5512 = vrot.lane.b32.xlu0 %v5417, 2
      %v5513 = vpop.permute.xlu0 %5512
      %5514 = vrot.lane.b32.xlu0 %v5419, 2
      %v5515 = vpop.permute.xlu0 %5514
      %5516 = vrot.lane.b32.xlu0 %v5421, 2
      %v5517 = vpop.permute.xlu0 %5516
      %5518 = vrot.lane.b32.xlu0 %v5423, 2
      %v5519 = vpop.permute.xlu0 %5518
      %5520 = vrot.lane.b32.xlu0 %v5425, 2
      %v5521 = vpop.permute.xlu0 %5520
      %5522 = vrot.lane.b32.xlu0 %v5427, 2
      %v5523 = vpop.permute.xlu0 %5522
      %5524 = vrot.lane.b32.xlu0 %v5429, 2
      %v5525 = vpop.permute.xlu0 %5524
      %5526 = vrot.lane.b32.xlu0 %v5431, 2
      %v5527 = vpop.permute.xlu0 %5526
      %5528 = vrot.lane.b32.xlu0 %v5433, 2
      %v5529 = vpop.permute.xlu0 %5528
      %5530 = vrot.lane.b32.xlu0 %v5435, 2
      %v5531 = vpop.permute.xlu0 %5530
      %5532 = vrot.lane.b32.xlu0 %v5437, 2
      %v5533 = vpop.permute.xlu0 %5532
      %5534 = vrot.lane.b32.xlu0 %v5439, 2
      %v5535 = vpop.permute.xlu0 %5534
      %5536 = vrot.lane.b32.xlu0 %v5441, 2
      %v5537 = vpop.permute.xlu0 %5536
      %5538 = vrot.lane.b32.xlu0 %v5443, 2
      %v5539 = vpop.permute.xlu0 %5538
      %5540 = vrot.lane.b32.xlu0 %v5445, 2
      %v5541 = vpop.permute.xlu0 %5540
      %5542 = vrot.lane.b32.xlu0 %v5447, 2
      %v5543 = vpop.permute.xlu0 %5542
      %5544 = vrot.lane.b32.xlu0 %v5449, 2
      %v5545 = vpop.permute.xlu0 %5544
      %5546 = vrot.lane.b32.xlu0 %v5451, 2
      %v5547 = vpop.permute.xlu0 %5546
      %5548 = vrot.lane.b32.xlu0 %v5453, 2
      %v5549 = vpop.permute.xlu0 %5548
      %5550 = vrot.lane.b32.xlu0 %v5455, 2
      %v5551 = vpop.permute.xlu0 %5550
      %5552 = vrot.lane.b32.xlu0 %v5457, 2
      %v5553 = vpop.permute.xlu0 %5552
      %5554 = vrot.lane.b32.xlu0 %v5459, 2
      %v5555 = vpop.permute.xlu0 %5554
      %5556 = vrot.lane.b32.xlu0 %v5461, 2
      %v5557 = vpop.permute.xlu0 %5556
      %5558 = vrot.lane.b32.xlu0 %v5463, 2
      %v5559 = vpop.permute.xlu0 %5558
      %5560 = vrot.lane.b32.xlu0 %v5465, 2
      %v5561 = vpop.permute.xlu0 %5560
      %5562 = vrot.lane.b32.xlu0 %v5467, 2
      %v5563 = vpop.permute.xlu0 %5562
      %5564 = vrot.lane.b32.xlu0 %v5469, 2
      %v5565 = vpop.permute.xlu0 %5564
      %5566 = vrot.lane.b32.xlu0 %v5471, 2
      %v5567 = vpop.permute.xlu0 %5566
      %5568 = vrot.lane.b32.xlu0 %v5473, 2
      %v5569 = vpop.permute.xlu0 %5568
      %v5602 = vmul.f32 %v806, %v5507
      %v5603 = vmul.f32 %v808, %v5509
      %v5604 = vmul.f32 %v813, %v5511
      %v5605 = vmul.f32 %v815, %v5513
      %v5606 = vmul.f32 %v820, %v5515
      %v5607 = vmul.f32 %v822, %v5517
      %v5608 = vmul.f32 %v827, %v5519
      %v5609 = vmul.f32 %v829, %v5521
      %v5610 = vmul.f32 %v834, %v5523
      %v5611 = vmul.f32 %v836, %v5525
      %v5612 = vmul.f32 %v841, %v5527
      %v5613 = vmul.f32 %v843, %v5529
      %v5614 = vmul.f32 %v848, %v5531
      %v5615 = vmul.f32 %v850, %v5533
      %v5616 = vmul.f32 %v855, %v5535
      %v5617 = vmul.f32 %v857, %v5537
      %v5618 = vmul.f32 %v862, %v5539
      %v5619 = vmul.f32 %v864, %v5541
      %v5620 = vmul.f32 %v869, %v5543
      %v5621 = vmul.f32 %v871, %v5545
      %v5622 = vmul.f32 %v876, %v5547
      %v5623 = vmul.f32 %v878, %v5549
      %v5624 = vmul.f32 %v883, %v5551
      %v5625 = vmul.f32 %v885, %v5553
      %v5626 = vmul.f32 %v890, %v5555
      %v5627 = vmul.f32 %v892, %v5557
      %v5628 = vmul.f32 %v897, %v5559
      %v5629 = vmul.f32 %v899, %v5561
      %v5630 = vmul.f32 %v904, %v5563
      %v5631 = vmul.f32 %v906, %v5565
      %v5632 = vmul.f32 %v911, %v5567
      %v5633 = vmul.f32 %v913, %v5569
      %v5634 = vadd.f32 %v5602, %v5156
      %v5635 = vadd.f32 %v5603, %v5161
      %v5636 = vadd.f32 %v5604, %v5166
      %v5637 = vadd.f32 %v5605, %v5171
      %v5638 = vadd.f32 %v5606, %v5176
      %v5639 = vadd.f32 %v5607, %v5181
      %v5640 = vadd.f32 %v5608, %v5186
      %v5641 = vadd.f32 %v5609, %v5191
      %v5642 = vadd.f32 %v5610, %v5196
      %v5643 = vadd.f32 %v5611, %v5201
      %v5644 = vadd.f32 %v5612, %v5206
      %v5645 = vadd.f32 %v5613, %v5211
      %v5646 = vadd.f32 %v5614, %v5216
      %v5647 = vadd.f32 %v5615, %v5221
      %v5648 = vadd.f32 %v5616, %v5226
      %v5649 = vadd.f32 %v5617, %v5231
      %v5650 = vadd.f32 %v5618, %v5236
      %v5651 = vadd.f32 %v5619, %v5241
      %v5652 = vadd.f32 %v5620, %v5246
      %v5653 = vadd.f32 %v5621, %v5251
      %v5654 = vadd.f32 %v5622, %v5256
      %v5655 = vadd.f32 %v5623, %v5261
      %v5656 = vadd.f32 %v5624, %v5266
      %v5657 = vadd.f32 %v5625, %v5271
      %v5658 = vadd.f32 %v5626, %v5276
      %v5659 = vadd.f32 %v5627, %v5281
      %v5660 = vadd.f32 %v5628, %v5286
      %v5661 = vadd.f32 %v5629, %v5291
      %v5662 = vadd.f32 %v5630, %v5296
      %v5663 = vadd.f32 %v5631, %v5301
      %v5664 = vadd.f32 %v5632, %v5306
      %v5665 = vadd.f32 %v5633, %v5311
      %v5698 = vsel %vm2086, %v3777, %v5634
      %v5699 = vsel %vm2086, %v3779, %v5635
      %v5700 = vsel %vm2086, %v3782, %v5636
      %v5701 = vsel %vm2086, %v3784, %v5637
      %v5702 = vsel %vm2086, %v3787, %v5638
      %v5703 = vsel %vm2086, %v3789, %v5639
      %v5704 = vsel %vm2086, %v3792, %v5640
      %v5705 = vsel %vm2086, %v3794, %v5641
      %v5706 = vsel %vm2086, %v3797, %v5642
      %v5707 = vsel %vm2086, %v3799, %v5643
      %v5708 = vsel %vm2086, %v3802, %v5644
      %v5709 = vsel %vm2086, %v3804, %v5645
      %v5710 = vsel %vm2086, %v3807, %v5646
      %v5711 = vsel %vm2086, %v3809, %v5647
      %v5712 = vsel %vm2086, %v3812, %v5648
      %v5713 = vsel %vm2086, %v3814, %v5649
      %v5714 = vsel %vm2086, %v3817, %v5650
      %v5715 = vsel %vm2086, %v3819, %v5651
      %v5716 = vsel %vm2086, %v3822, %v5652
      %v5717 = vsel %vm2086, %v3824, %v5653
      %v5718 = vsel %vm2086, %v3827, %v5654
      %v5719 = vsel %vm2086, %v3829, %v5655
      %v5720 = vsel %vm2086, %v3832, %v5656
      %v5721 = vsel %vm2086, %v3834, %v5657
      %v5722 = vsel %vm2086, %v3837, %v5658
      %v5723 = vsel %vm2086, %v3839, %v5659
      %v5724 = vsel %vm2086, %v3842, %v5660
      %v5725 = vsel %vm2086, %v3844, %v5661
      %v5726 = vsel %vm2086, %v3847, %v5662
      %v5727 = vsel %vm2086, %v3849, %v5663
      %v5728 = vsel %vm2086, %v4223, %v5664
      %v5729 = vsel %vm2086, %v4225, %v5665
      %5730 = vst.msk [vmem:[%s285] sm:$0xff] %vm2141, %v5698
      %5731 = vst.msk [vmem:[%s285 + $0x8] sm:$0xff] %vm2141, %v5699
      %5732 = vst.msk [vmem:[%s285 + $0x10] sm:$0xff] %vm2141, %v5700
      %5733 = vst.msk [vmem:[%s285 + $0x18] sm:$0xff] %vm2141, %v5701
      %5734 = vst.msk [vmem:[%s285 + $0x20] sm:$0xff] %vm2141, %v5702
      %5735 = vst.msk [vmem:[%s285 + $0x28] sm:$0xff] %vm2141, %v5703
      %5736 = vst.msk [vmem:[%s285 + $0x30] sm:$0xff] %vm2141, %v5704
      %5737 = vst.msk [vmem:[%s285 + $0x38] sm:$0xff] %vm2141, %v5705
      %5738 = vst.msk [vmem:[%s285 + $0x40] sm:$0xff] %vm2141, %v5706
      %5739 = vst.msk [vmem:[%s285 + $0x48] sm:$0xff] %vm2141, %v5707
      %5740 = vst.msk [vmem:[%s285 + $0x50] sm:$0xff] %vm2141, %v5708
      %5741 = vst.msk [vmem:[%s285 + $0x58] sm:$0xff] %vm2141, %v5709
      %5742 = vst.msk [vmem:[%s285 + $0x60] sm:$0xff] %vm2141, %v5710
      %5743 = vst.msk [vmem:[%s285 + $0x68] sm:$0xff] %vm2141, %v5711
      %5744 = vst.msk [vmem:[%s285 + $0x70] sm:$0xff] %vm2141, %v5712
      %5745 = vst.msk [vmem:[%s285 + $0x78] sm:$0xff] %vm2141, %v5713
      %5746 = vst.msk [vmem:[%s285 + $0x80] sm:$0xff] %vm2141, %v5714
      %5747 = vst.msk [vmem:[%s285 + $0x88] sm:$0xff] %vm2141, %v5715
      %5748 = vst.msk [vmem:[%s285 + $0x90] sm:$0xff] %vm2141, %v5716
      %5749 = vst.msk [vmem:[%s285 + $0x98] sm:$0xff] %vm2141, %v5717
      %5750 = vst.msk [vmem:[%s285 + $0xa0] sm:$0xff] %vm2141, %v5718
      %5751 = vst.msk [vmem:[%s285 + $0xa8] sm:$0xff] %vm2141, %v5719
      %5752 = vst.msk [vmem:[%s285 + $0xb0] sm:$0xff] %vm2141, %v5720
      %5753 = vst.msk [vmem:[%s285 + $0xb8] sm:$0xff] %vm2141, %v5721
      %5754 = vst.msk [vmem:[%s285 + $0xc0] sm:$0xff] %vm2141, %v5722
      %5755 = vst.msk [vmem:[%s285 + $0xc8] sm:$0xff] %vm2141, %v5723
      %5756 = vst.msk [vmem:[%s285 + $0xd0] sm:$0xff] %vm2141, %v5724
      %5757 = vst.msk [vmem:[%s285 + $0xd8] sm:$0xff] %vm2141, %v5725
      %5758 = vst.msk [vmem:[%s285 + $0xe0] sm:$0xff] %vm2141, %v5726
      %5759 = vst.msk [vmem:[%s285 + $0xe8] sm:$0xff] %vm2141, %v5727
      %5760 = vst.msk [vmem:[%s285 + $0xf0] sm:$0xff] %vm2141, %v5728
      %5761 = vst.msk [vmem:[%s285 + $0xf8] sm:$0xff] %vm2141, %v5729
      %5762 = vst.msk [vmem:[%s292] sm:$0xff] %vm2086, %v5346
      %5763 = vst.msk [vmem:[%s292 + $0x8] sm:$0xff] %vm2086, %v5347
      %5764 = vst.msk [vmem:[%s292 + $0x10] sm:$0xff] %vm2086, %v5348
      %5765 = vst.msk [vmem:[%s292 + $0x18] sm:$0xff] %vm2086, %v5349
      %5766 = vst.msk [vmem:[%s292 + $0x20] sm:$0xff] %vm2086, %v5350
      %5767 = vst.msk [vmem:[%s292 + $0x28] sm:$0xff] %vm2086, %v5351
      %5768 = vst.msk [vmem:[%s292 + $0x30] sm:$0xff] %vm2086, %v5352
      %5769 = vst.msk [vmem:[%s292 + $0x38] sm:$0xff] %vm2086, %v5353
      %5770 = vst.msk [vmem:[%s292 + $0x40] sm:$0xff] %vm2086, %v5354
      %5771 = vst.msk [vmem:[%s292 + $0x48] sm:$0xff] %vm2086, %v5355
      %5772 = vst.msk [vmem:[%s292 + $0x50] sm:$0xff] %vm2086, %v5356
      %5773 = vst.msk [vmem:[%s292 + $0x58] sm:$0xff] %vm2086, %v5357
      %5774 = vst.msk [vmem:[%s292 + $0x60] sm:$0xff] %vm2086, %v5358
      %5775 = vst.msk [vmem:[%s292 + $0x68] sm:$0xff] %vm2086, %v5359
      %5776 = vst.msk [vmem:[%s292 + $0x70] sm:$0xff] %vm2086, %v5360
      %5777 = vst.msk [vmem:[%s292 + $0x78] sm:$0xff] %vm2086, %v5361
      %5778 = vst.msk [vmem:[%s292 + $0x80] sm:$0xff] %vm2086, %v5362
      %5779 = vst.msk [vmem:[%s292 + $0x88] sm:$0xff] %vm2086, %v5363
      %5780 = vst.msk [vmem:[%s292 + $0x90] sm:$0xff] %vm2086, %v5364
      %5781 = vst.msk [vmem:[%s292 + $0x98] sm:$0xff] %vm2086, %v5365
      %5782 = vst.msk [vmem:[%s292 + $0xa0] sm:$0xff] %vm2086, %v5366
      %5783 = vst.msk [vmem:[%s292 + $0xa8] sm:$0xff] %vm2086, %v5367
      %5784 = vst.msk [vmem:[%s292 + $0xb0] sm:$0xff] %vm2086, %v5368
      %5785 = vst.msk [vmem:[%s292 + $0xb8] sm:$0xff] %vm2086, %v5369
      %5786 = vst.msk [vmem:[%s292 + $0xc0] sm:$0xff] %vm2086, %v5370
      %5787 = vst.msk [vmem:[%s292 + $0xc8] sm:$0xff] %vm2086, %v5371
      %5788 = vst.msk [vmem:[%s292 + $0xd0] sm:$0xff] %vm2086, %v5372
      %5789 = vst.msk [vmem:[%s292 + $0xd8] sm:$0xff] %vm2086, %v5373
      %5790 = vst.msk [vmem:[%s292 + $0xe0] sm:$0xff] %vm2086, %v5374
      %5791 = vst.msk [vmem:[%s292 + $0xe8] sm:$0xff] %vm2086, %v5375
      %5792 = vst.msk [vmem:[%s292 + $0xf0] sm:$0xff] %vm2086, %v5376
      %5793 = vst.msk [vmem:[%s292 + $0xf8] sm:$0xff] %vm2086, %v5377
      %s5794 = sadd.s32 %s22, %s23
      %p5795 = scmp.lt.s32.totalorder %s5794, 1
      %s5796 = scalar_select %p5795, %s5794, 1
      %s5797 = smul.addr %s5796, 32
      %s5798 = smul.addr %s5797, 8
      %s5799 = scalar_lea.vmem %s5, %s5798
      %s5800 = sadd.s32 %s22, %s23
      %p5801 = scmp.lt.s32.totalorder %s5800, 1
      %s5802 = scalar_select %p5801, %s5800, 1
      %s5803 = smul.addr %s5802, 32
      %s5804 = smul.addr %s5803, 8
      %s5805 = scalar_lea.vmem %s6, %s5804
      // Predicated region
      $region41: #{tpu_custom_call.1} parent=39 // pred_check
        %p5806 = pneg %p162
      $region42: #{tpu_custom_call.1} parent=39 // pred_check_branch
        %5808 = sbr.rel (%p5806) target = $region44
      $region43: #{tpu_custom_call.1} parent=39 // pred_region
        %s5809 = sadd.s32 %s22, %s23
      $region44: #{tpu_custom_call.1} parent=39 // pred_fallthru
        _
      // Predicated region
      $region45: #{tpu_custom_call.1} parent=39 // pred_check
        %p5810 = pneg %p190
      $region46: #{tpu_custom_call.1} parent=39 // pred_check_branch
        %5812 = sbr.rel (%p5810) target = $region48
      $region47: #{tpu_custom_call.1} parent=39 // pred_region
        %s5813 = sadd.s32 %s22, %s23
      $region48: #{tpu_custom_call.1} parent=39 // pred_fallthru
        _
    $region40: #{tpu_custom_call.1} parent=5 // pred_fallthru
      _
    %p5814 = scmp.le.s32.totalorder 2, %s13
    // Predicated region
    $region49: #{tpu_custom_call.1} parent=5 // pred_check
      %p5815 = pneg %p5814
    $region50: #{tpu_custom_call.1} parent=5 // pred_check_branch
      %5817 = sbr.rel (%p5815) target = $region52
    $region51: #{tpu_custom_call.1} parent=5 // pred_region
      %s5818 = ssub.s32 %s13, 2
      // Predicated region
      $region53: #{tpu_custom_call.1} parent=51 // pred_check
        %p5819 = pneg %p168
      $region54: #{tpu_custom_call.1} parent=51 // pred_check_branch
        %5821 = sbr.rel (%p5819) target = $region56
      $region55: #{tpu_custom_call.1} parent=51 // pred_region
        %s5822 = sadd.s32 %s24, %s25
        %p5823 = scmp.lt.s32.totalorder %s5822, 1
        %s5824 = scalar_select %p5823, %s5822, 1
        %s5825 = smul.addr %s5824, 32
        %s5826 = smul.addr %s5825, 8
        %s5827 = scalar_lea.vmem %s5, %s5826
      $region56: #{tpu_custom_call.1} parent=51 // pred_fallthru
        _
      // Predicated region
      $region57: #{tpu_custom_call.1} parent=51 // pred_check
        %p5828 = pneg %p196
      $region58: #{tpu_custom_call.1} parent=51 // pred_check_branch
        %5830 = sbr.rel (%p5828) target = $region60
      $region59: #{tpu_custom_call.1} parent=51 // pred_region
        %s5831 = sadd.s32 %s24, %s25
        %p5832 = scmp.lt.s32.totalorder %s5831, 1
        %s5833 = scalar_select %p5832, %s5831, 1
        %s5834 = smul.addr %s5833, 32
        %s5835 = smul.addr %s5834, 8
        %s5836 = scalar_lea.vmem %s6, %s5835
      $region60: #{tpu_custom_call.1} parent=51 // pred_fallthru
        _
    $region52: #{tpu_custom_call.1} parent=5 // pred_fallthru
      _
  $region6: #{tpu_custom_call.1} parent=0 // loop_footer
    %s17 = sadd.s32 1, %s13
  $region7: #{tpu_custom_call.1} parent=0 // loop_footer_branch
    %12 = sbr.rel target = $region3
  $region8: #{tpu_custom_call.1} parent=0 // loop_exit
    _

</llo_original>
